<compile_context>
chip_gen: v5e
topology: v5e:2x2
jax: 0.10.0
libtpu: 0.0.40
codegen_flags: <defaults>
</compile_context>

<pallas_src>
import math
import jax
import jax.numpy as jnp
from jax.experimental import pallas as pl
from jax.experimental.pallas import tpu as pltpu

# ---- configuration (small shapes consistent with RetraNet defaults) ----
D_MODEL = 64          # dim
NHEAD = 8
HEAD_DIM = D_MODEL // NHEAD
D_FF = 128            # d_feedforward (kept small)
NUM_TOK = 32          # num_tokens
MAX_LEN = 8           # seq length == max_len (pos_emb add requires src/tgt len == max_len)
BATCH = 2
NUM_ENC = 1           # fused kernel assumes the module defaults num_encoders=num_decoders=1
NUM_DEC = 1
MAX_RUNTIME = 3       # Retra*Block while-loop trip count
LN_EPS = 1e-5
V_PAD = 128           # lane-dense logits width (>= NUM_TOK); padding stripped in the wrapper
N_ROWS = BATCH * MAX_LEN          # 16 flattened activation rows
FOLD = NHEAD * N_ROWS             # 128 folded score lanes (head-major segments of 16 keys)
NEG = -1e9
ATTN_SCALE = 1.0 / math.sqrt(HEAD_DIM)


# ----------------------------- in-kernel helpers -----------------------------

def _attend(q, a_k, v_blk, r, addmask, wo_ref, bo_ref):
    """Head-folded attention core.

    q:      (N, 64)   queries, all heads along lanes
    a_k:    (128, 64) head-block-diagonal K operand  (rows = head-major keys)
    v_blk:  (128, 64) head-block-diagonal V operand
    r:      (128, 64) 0/1 head-block mask (also yields the per-head softmax denominator)
    addmask:(N, 128)  additive mask, folded across heads (includes batch block-diag / padding)
    """
    # scores for all heads in one MXU op: S[i, h*16+j] = sum_d q[i,h*8+d] * k[j,h*8+d]
    s = jax.lax.dot_general(q, a_k, (((1,), (1,)), ((), ())),
                            preferred_element_type=jnp.float32) * ATTN_SCALE
    s = s + addmask
    # row-wide max is a valid per-segment stabilizer (constant within every head segment)
    s = s - jnp.max(s, axis=-1, keepdims=True)
    p = jnp.exp(s)                                             # (N, 128), masked lanes -> 0
    ctx = jnp.dot(p, v_blk, preferred_element_type=jnp.float32)   # un-normalized context (N, 64)
    den = jnp.dot(p, r, preferred_element_type=jnp.float32)       # per-head denom broadcast (N, 64)
    ctx = ctx * pl.reciprocal(den, approx=True)                   # EUP slot
    return jnp.dot(ctx, wo_ref[...], preferred_element_type=jnp.float32) + bo_ref[...]


def _self_attn(x, mask_ref, qkv_w_ref, qkv_b_ref, wo_ref, bo_ref, g_ref, r_ref):
    """Self-attention with fused QKV projection and head-folded score/PV matmuls."""
    qkv = jnp.dot(x, qkv_w_ref[...], preferred_element_type=jnp.float32) + qkv_b_ref[...]
    q = qkv[:, :D_MODEL]
    k = qkv[:, D_MODEL:2 * D_MODEL]
    v = qkv[:, 2 * D_MODEL:]
    g = g_ref[...]                                             # (128, 16) replicate-keys matrix
    r = r_ref[...]                                             # (128, 64) head-block mask
    a_k = jnp.dot(g, k, preferred_element_type=jnp.float32) * r
    v_blk = jnp.dot(g, v, preferred_element_type=jnp.float32) * r
    return _attend(q, a_k, v_blk, r, mask_ref[...], wo_ref, bo_ref)


def _add_ln(x, res, ln_ref, idx):
    """Post-norm: LayerNorm(x + residual); gamma/beta loaded from ln_ref rows [2*idx, 2*idx+1]."""
    gamma = ln_ref[2 * idx:2 * idx + 1, :]
    beta = ln_ref[2 * idx + 1:2 * idx + 2, :]
    y = x + res
    mu = jnp.mean(y, axis=-1, keepdims=True)
    d = y - mu
    var = jnp.mean(d * d, axis=-1, keepdims=True)
    return d * jax.lax.rsqrt(var + LN_EPS) * gamma + beta


def _ffn(x, w1_ref, b1_ref, w2_ref, b2_ref):
    """linear2(relu(linear1(x)))  (dropout = identity, eval mode)."""
    h = jnp.maximum(jnp.dot(x, w1_ref[...], preferred_element_type=jnp.float32) + b1_ref[...], 0.0)
    return jnp.dot(h, w2_ref[...], preferred_element_type=jnp.float32) + b2_ref[...]


# ----------------------------- fused whole-forward kernel -----------------------------

def _retranet_kernel(mem0_ref, tgt0_ref, enc_mask_ref, dself_mask_ref, dcross_mask_ref,
                     g_ref, r_ref,
                     e_qkv_w_ref, e_qkv_b_ref, e_wo_ref, e_bo_ref, e_ln_ref,
                     e_w1_ref, e_b1_ref, e_w2_ref, e_b2_ref,
                     dsa_qkv_w_ref, dsa_qkv_b_ref, dsa_wo_ref, dsa_bo_ref,
                     dca_q_w_ref, dca_q_b_ref, dca_kv_w_ref, dca_kv_b_ref,
                     dca_wo_ref, dca_bo_ref,
                     d_ln_ref, d_w1_ref, d_b1_ref, d_w2_ref, d_b2_ref,
                     ow_ref, ob_ref,
                     logits_ref):
    # ---------------- encoder Retra block (MAX_RUNTIME repeats) ----------------
    x = mem0_ref[...]                                          # (16, 64)
    for _ in range(MAX_RUNTIME):                               # fixed trip count (see module docstring)
        sa = _self_attn(x, enc_mask_ref, e_qkv_w_ref, e_qkv_b_ref, e_wo_ref, e_bo_ref,
                        g_ref, r_ref)
        x = _add_ln(x, sa, e_ln_ref, 0)
        f = _ffn(x, e_w1_ref, e_b1_ref, e_w2_ref, e_b2_ref)
        x = _add_ln(x, f, e_ln_ref, 1)
    mem = x                                                    # stays on-chip; no HBM round-trip

    # ---------------- decoder Retra block (MAX_RUNTIME repeats) ----------------
    # cross-attention K/V depend only on `mem` -> hoist the projections AND the
    # head-block-diagonal operand construction out of the repeat loop.
    g = g_ref[...]
    r = r_ref[...]
    ckv = jnp.dot(mem, dca_kv_w_ref[...], preferred_element_type=jnp.float32) + dca_kv_b_ref[...]
    a_kc = jnp.dot(g, ckv[:, :D_MODEL], preferred_element_type=jnp.float32) * r
    v_blkc = jnp.dot(g, ckv[:, D_MODEL:], preferred_element_type=jnp.float32) * r

    y = tgt0_ref[...]                                          # (16, 64)
    for _ in range(MAX_RUNTIME):
        sa = _self_attn(y, dself_mask_ref, dsa_qkv_w_ref, dsa_qkv_b_ref, dsa_wo_ref,
                        dsa_bo_ref, g_ref, r_ref)
        y = _add_ln(y, sa, d_ln_ref, 0)
        # cross-attention: only the query projection happens per iteration
        q = jnp.dot(y, dca_q_w_ref[...], preferred_element_type=jnp.float32) + dca_q_b_ref[...]
        ca = _attend(q, a_kc, v_blkc, r_ref[...], dcross_mask_ref[...], dca_wo_ref, dca_bo_ref)
        y = _add_ln(y, ca, d_ln_ref, 1)
        f = _ffn(y, d_w1_ref, d_b1_ref, d_w2_ref, d_b2_ref)
        y = _add_ln(y, f, d_ln_ref, 2)

    # ---------------- final lane-dense (128-wide) logits projection ----------------
    logits_ref[...] = (jnp.dot(y, ow_ref[...], preferred_element_type=jnp.float32)
                       + ob_ref[...]).astype(logits_ref.dtype)


# ----------------------------- wrapper -----------------------------

_VMEM_SPEC = pl.BlockSpec(memory_space=pltpu.MemorySpace.VMEM)


def _retranet_pallas(mem0, tgt0, enc_mask, dself_mask, dcross_mask, params):
    e = params["encoder"]
    d = params["decoder"]
    args = (mem0, tgt0, enc_mask, dself_mask, dcross_mask,
            params["gmat"], params["rmat"],
            e["sa"]["qkv_w"], e["sa"]["qkv_b"], e["sa"]["wo"], e["sa"]["bo"], e["ln"],
            e["ffn"]["w1"], e["ffn"]["b1"], e["ffn"]["w2"], e["ffn"]["b2"],
            d["sa"]["qkv_w"], d["sa"]["qkv_b"], d["sa"]["wo"], d["sa"]["bo"],
            d["ca"]["q_w"], d["ca"]["q_b"], d["ca"]["kv_w"], d["ca"]["kv_b"],
            d["ca"]["wo"], d["ca"]["bo"],
            d["ln"], d["ffn"]["w1"], d["ffn"]["b1"], d["ffn"]["w2"], d["ffn"]["b2"],
            params["out_w_pad"], params["out_b_pad"])
    return pl.pallas_call(
        _retranet_kernel,
        out_shape=jax.ShapeDtypeStruct((N_ROWS, V_PAD), jnp.float32),
        in_specs=[_VMEM_SPEC] * len(args),
        out_specs=_VMEM_SPEC,
    )(*args)


def retranet_forward(params, src, tgt, enc_mask, dec_self_mask, dec_cross_mask):
    B, S = src.shape
    T = tgt.shape[1]
    pos = params["pos_emb"][None, :, :]                        # (1, max_len, D)
    mem0 = (pos + jnp.take(params["src_emb"], src, axis=0)).reshape(B * S, D_MODEL)
    tgt0 = (pos + jnp.take(params["tgt_emb"], tgt, axis=0)).reshape(B * T, D_MODEL)

    logits_pad = _retranet_pallas(mem0, tgt0, enc_mask, dec_self_mask, dec_cross_mask, params)
    logits = logits_pad[:, :NUM_TOK].reshape(B, T, NUM_TOK)

    # the original while-loop never reassigns `action`, so each block runs max_runtime times
    avg_iterations = (MAX_RUNTIME * (NUM_ENC + NUM_DEC)) / (NUM_ENC + NUM_DEC)
    return logits, avg_iterations


# ----------------------------- host-side (trace-time-free) prep -----------------------------

def _fold_mask(attn_mask, pad_add):
    """Combine additive attn mask + key-padding mask, add -1e9 cross-batch blocks (batch fold),
    and tile across heads -> (B*S, NHEAD*B*S) additive mask consumed directly by the kernel."""
    eye = jnp.eye(BATCH, dtype=bool)[:, None, :, None]                     # (B,1,B,1)
    within = attn_mask[None, :, None, :] + pad_add[None, None, :, :]       # (1,S,B,S)
    full = jnp.where(eye, within, NEG).astype(jnp.float32)                 # (B,S,B,S)
    flat = full.reshape(N_ROWS, N_ROWS)
    return jnp.tile(flat, (1, NHEAD))                                      # (16, 128)


def prepare_masks(src_mask, tgt_mask, src_pad_add, tgt_pad_add):
    enc_mask = _fold_mask(src_mask, src_pad_add)
    dec_self_mask = _fold_mask(tgt_mask, tgt_pad_add)
    # cross-attention has no memory mask in the original code, but the batch fold still needs
    # the block-diagonal batch mask so batches do not attend to each other
    dec_cross_mask = _fold_mask(jnp.zeros((MAX_LEN, MAX_LEN), jnp.float32),
                                jnp.zeros((BATCH, MAX_LEN), jnp.float32))
    return enc_mask, dec_self_mask, dec_cross_mask


# ----------------------------- deterministic parameter init -----------------------------

def _w(key, shape, scale=0.02):
    return (scale * jax.random.normal(key, shape)).astype(jnp.float32)


def _self_attn_params(key):
    ks = jax.random.split(key, 4)
    qkv_w = jnp.concatenate([_w(ks[0], (D_MODEL, D_MODEL)),
                             _w(ks[1], (D_MODEL, D_MODEL)),
                             _w(ks[2], (D_MODEL, D_MODEL))], axis=1)       # fused (64, 192)
    return dict(qkv_w=qkv_w,
                qkv_b=jnp.zeros((1, 3 * D_MODEL), jnp.float32),
                wo=_w(ks[3], (D_MODEL, D_MODEL)),
                bo=jnp.zeros((1, D_MODEL), jnp.float32))


def _cross_attn_params(key):
    ks = jax.random.split(key, 4)
    kv_w = jnp.concatenate([_w(ks[1], (D_MODEL, D_MODEL)),
                            _w(ks[2], (D_MODEL, D_MODEL))], axis=1)        # fused (64, 128)
    return dict(q_w=_w(ks[0], (D_MODEL, D_MODEL)),
                q_b=jnp.zeros((1, D_MODEL), jnp.float32),
                kv_w=kv_w,
                kv_b=jnp.zeros((1, 2 * D_MODEL), jnp.float32),
                wo=_w(ks[3], (D_MODEL, D_MODEL)),
                bo=jnp.zeros((1, D_MODEL), jnp.float32))


def _ln_rows(n_ln):
    rows = []
    for _ in range(n_ln):
        rows.append(jnp.ones((D_MODEL,), jnp.float32))                     # gamma
        rows.append(jnp.zeros((D_MODEL,), jnp.float32))                    # beta
    return jnp.stack(rows)                                                 # (2*n_ln, D)


def _ffn_params(key):
    k1, k2 = jax.random.split(key)
    return dict(w1=_w(k1, (D_MODEL, D_FF)), b1=jnp.zeros((1, D_FF), jnp.float32),
                w2=_w(k2, (D_FF, D_MODEL)), b2=jnp.zeros((1, D_MODEL), jnp.float32))


def _head_fold_constants():
    # G (128,16): 8 stacked identities -> (G @ k)[h*16+j, :] = k[j, :]
    g = jnp.tile(jnp.eye(N_ROWS, dtype=jnp.float32), (NHEAD, 1))
    # R (128,64): head-block mask -> zeroes the off-head feature columns; also p @ R is the
    # per-head softmax denominator already broadcast over that head's 8 feature lanes
    r = jnp.kron(jnp.eye(NHEAD, dtype=jnp.float32),
                 jnp.ones((N_ROWS, HEAD_DIM), jnp.float32))
    return g, r


def init_params(key):
    assert NUM_ENC == 1 and NUM_DEC == 1, "fused whole-forward kernel assumes 1 encoder / 1 decoder"
    k = jax.random.split(key, 8)
    g, r = _head_fold_constants()
    encoder = dict(sa=_self_attn_params(k[4]), ln=_ln_rows(2), ffn=_ffn_params(k[5]))
    dk = jax.random.split(k[6], 3)
    decoder = dict(sa=_self_attn_params(dk[0]), ca=_cross_attn_params(dk[1]),
                   ln=_ln_rows(3), ffn=_ffn_params(dk[2]))
    return dict(
        src_emb=_w(k[0], (NUM_TOK, D_MODEL)),
        tgt_emb=_w(k[1], (NUM_TOK, D_MODEL)),
        pos_emb=_w(k[2], (MAX_LEN, D_MODEL)),
        # lane-dense output projection (pad NUM_TOK -> 128 zero columns) built once here
        out_w_pad=jnp.pad(_w(k[3], (D_MODEL, NUM_TOK)), ((0, 0), (0, V_PAD - NUM_TOK))),
        out_b_pad=jnp.zeros((1, V_PAD), jnp.float32),
        encoder=encoder,
        decoder=decoder,
        gmat=g,
        rmat=r,
    )


# ----------------------------- main -----------------------------

if __name__ == "__main__":
    key = jax.random.PRNGKey(0)
    pkey, skey, tkey = jax.random.split(key, 3)
    params = init_params(pkey)

    src = jax.random.randint(skey, (BATCH, MAX_LEN), 0, NUM_TOK)
    tgt = jax.random.randint(tkey, (BATCH, MAX_LEN), 0, NUM_TOK)

    # additive float attention masks (PyTorch float-mask semantics)
    src_mask = jnp.zeros((MAX_LEN, MAX_LEN), jnp.float32)
    tgt_mask = jnp.where(jnp.triu(jnp.ones((MAX_LEN, MAX_LEN)), k=1) > 0,
                         NEG, 0.0).astype(jnp.float32)          # causal
    # key-padding masks pre-converted to additive form (True->-1e9, False->0)
    src_pad_add = jnp.zeros((BATCH, MAX_LEN), jnp.float32).at[1, -1].set(NEG)
    tgt_pad_add = jnp.zeros((BATCH, MAX_LEN), jnp.float32)

    # built once, outside the jitted per-forward path
    enc_mask, dec_self_mask, dec_cross_mask = prepare_masks(
        src_mask, tgt_mask, src_pad_add, tgt_pad_add)

    fwd = jax.jit(retranet_forward)
    logits, avg_iters = fwd(params, src, tgt, enc_mask, dec_self_mask, dec_cross_mask)
    logits = jax.block_until_ready(logits)

    assert logits.shape == (BATCH, MAX_LEN, NUM_TOK)
    assert bool(jnp.isfinite(logits).all())
    assert float(avg_iters) == float(MAX_RUNTIME)
    print("KERNEL_OK")
</pallas_src>

<mosaic_0001>
module attributes {stable_mosaic.version = 11 : i64} {
  func.func @_retranet_kernel(%arg0: memref<16x64xf32, #tpu.memory_space<vmem>>, %arg1: memref<16x64xf32, #tpu.memory_space<vmem>>, %arg2: memref<16x128xf32, #tpu.memory_space<vmem>>, %arg3: memref<16x128xf32, #tpu.memory_space<vmem>>, %arg4: memref<16x128xf32, #tpu.memory_space<vmem>>, %arg5: memref<128x16xf32, #tpu.memory_space<vmem>>, %arg6: memref<128x64xf32, #tpu.memory_space<vmem>>, %arg7: memref<64x192xf32, #tpu.memory_space<vmem>>, %arg8: memref<1x192xf32, #tpu.memory_space<vmem>>, %arg9: memref<64x64xf32, #tpu.memory_space<vmem>>, %arg10: memref<1x64xf32, #tpu.memory_space<vmem>>, %arg11: memref<4x64xf32, #tpu.memory_space<vmem>>, %arg12: memref<64x128xf32, #tpu.memory_space<vmem>>, %arg13: memref<1x128xf32, #tpu.memory_space<vmem>>, %arg14: memref<128x64xf32, #tpu.memory_space<vmem>>, %arg15: memref<1x64xf32, #tpu.memory_space<vmem>>, %arg16: memref<64x192xf32, #tpu.memory_space<vmem>>, %arg17: memref<1x192xf32, #tpu.memory_space<vmem>>, %arg18: memref<64x64xf32, #tpu.memory_space<vmem>>, %arg19: memref<1x64xf32, #tpu.memory_space<vmem>>, %arg20: memref<64x64xf32, #tpu.memory_space<vmem>>, %arg21: memref<1x64xf32, #tpu.memory_space<vmem>>, %arg22: memref<64x128xf32, #tpu.memory_space<vmem>>, %arg23: memref<1x128xf32, #tpu.memory_space<vmem>>, %arg24: memref<64x64xf32, #tpu.memory_space<vmem>>, %arg25: memref<1x64xf32, #tpu.memory_space<vmem>>, %arg26: memref<6x64xf32, #tpu.memory_space<vmem>>, %arg27: memref<64x128xf32, #tpu.memory_space<vmem>>, %arg28: memref<1x128xf32, #tpu.memory_space<vmem>>, %arg29: memref<128x64xf32, #tpu.memory_space<vmem>>, %arg30: memref<1x64xf32, #tpu.memory_space<vmem>>, %arg31: memref<64x128xf32, #tpu.memory_space<vmem>>, %arg32: memref<1x128xf32, #tpu.memory_space<vmem>>, %arg33: memref<16x128xf32, #tpu.memory_space<vmem>>) attributes {dimension_semantics = [], scalar_prefetch = 0 : i64, scratch_operands = 0 : i64, tpu.core_type = #tpu.core_type<tc>} {
    %c0 = arith.constant 0 : index
    %c0_0 = arith.constant 0 : index
    %0 = vector.load %arg0[%c0, %c0_0] : memref<16x64xf32, #tpu.memory_space<vmem>>, vector<16x64xf32>
    %c0_1 = arith.constant 0 : index
    %c0_2 = arith.constant 0 : index
    %1 = vector.load %arg7[%c0_1, %c0_2] : memref<64x192xf32, #tpu.memory_space<vmem>>, vector<64x192xf32>
    %cst = arith.constant dense<0.000000e+00> : vector<16x192xf32>
    %2 = tpu.matmul %0, %1, %cst {dimension_numbers = #tpu.dot_dimension_numbers<[1], [0], [0], [1], [0, 0, 1, 1], [], []>} : vector<16x64xf32>, vector<64x192xf32>, vector<16x192xf32> -> vector<16x192xf32>
    %c0_3 = arith.constant 0 : index
    %c0_4 = arith.constant 0 : index
    %3 = vector.load %arg8[%c0_3, %c0_4] : memref<1x192xf32, #tpu.memory_space<vmem>>, vector<1x192xf32>
    %4 = vector.broadcast %3 : vector<1x192xf32> to vector<16x192xf32>
    %5 = arith.addf %2, %4 : vector<16x192xf32>
    %6 = vector.extract_strided_slice %5 {offsets = [0, 0], sizes = [16, 64], strides = [1, 1]} : vector<16x192xf32> to vector<16x64xf32>
    %7 = vector.extract_strided_slice %5 {offsets = [0, 64], sizes = [16, 64], strides = [1, 1]} : vector<16x192xf32> to vector<16x64xf32>
    %8 = vector.extract_strided_slice %5 {offsets = [0, 128], sizes = [16, 64], strides = [1, 1]} : vector<16x192xf32> to vector<16x64xf32>
    %c0_5 = arith.constant 0 : index
    %c0_6 = arith.constant 0 : index
    %9 = vector.load %arg5[%c0_5, %c0_6] : memref<128x16xf32, #tpu.memory_space<vmem>>, vector<128x16xf32>
    %c0_7 = arith.constant 0 : index
    %c0_8 = arith.constant 0 : index
    %10 = vector.load %arg6[%c0_7, %c0_8] : memref<128x64xf32, #tpu.memory_space<vmem>>, vector<128x64xf32>
    %cst_9 = arith.constant dense<0.000000e+00> : vector<128x64xf32>
    %11 = tpu.matmul %9, %7, %cst_9 {dimension_numbers = #tpu.dot_dimension_numbers<[1], [0], [0], [1], [0, 0, 1, 1], [], []>} : vector<128x16xf32>, vector<16x64xf32>, vector<128x64xf32> -> vector<128x64xf32>
    %12 = arith.mulf %11, %10 : vector<128x64xf32>
    %cst_10 = arith.constant dense<0.000000e+00> : vector<128x64xf32>
    %13 = tpu.matmul %9, %8, %cst_10 {dimension_numbers = #tpu.dot_dimension_numbers<[1], [0], [0], [1], [0, 0, 1, 1], [], []>} : vector<128x16xf32>, vector<16x64xf32>, vector<128x64xf32> -> vector<128x64xf32>
    %14 = arith.mulf %13, %10 : vector<128x64xf32>
    %c0_11 = arith.constant 0 : index
    %c0_12 = arith.constant 0 : index
    %15 = vector.load %arg2[%c0_11, %c0_12] : memref<16x128xf32, #tpu.memory_space<vmem>>, vector<16x128xf32>
    %cst_13 = arith.constant dense<0.000000e+00> : vector<16x128xf32>
    %16 = tpu.matmul %6, %12, %cst_13 {dimension_numbers = #tpu.dot_dimension_numbers<[1], [1], [0], [0], [0, 0, 1, 0], [], []>} : vector<16x64xf32>, vector<128x64xf32>, vector<16x128xf32> -> vector<16x128xf32>
    %cst_14 = arith.constant 0.353553385 : f32
    %17 = vector.broadcast %cst_14 : f32 to vector<16x128xf32>
    %18 = arith.mulf %16, %17 : vector<16x128xf32>
    %19 = arith.addf %18, %15 : vector<16x128xf32>
    %cst_15 = arith.constant dense<0xFF800000> : vector<16xf32>
    %20 = vector.multi_reduction <maximumf>, %19, %cst_15 [1] : vector<16x128xf32> to vector<16xf32>
    %21 = vector.shape_cast %20 : vector<16xf32> to vector<16x1xf32>
    %22 = vector.broadcast %21 : vector<16x1xf32> to vector<16x128xf32>
    %23 = arith.subf %19, %22 : vector<16x128xf32>
    %24 = math.exp %23 : vector<16x128xf32>
    %cst_16 = arith.constant dense<0.000000e+00> : vector<16x64xf32>
    %25 = tpu.matmul %24, %14, %cst_16 {dimension_numbers = #tpu.dot_dimension_numbers<[1], [0], [0], [1], [0, 0, 1, 1], [], []>} : vector<16x128xf32>, vector<128x64xf32>, vector<16x64xf32> -> vector<16x64xf32>
    %cst_17 = arith.constant dense<0.000000e+00> : vector<16x64xf32>
    %26 = tpu.matmul %24, %10, %cst_17 {dimension_numbers = #tpu.dot_dimension_numbers<[1], [0], [0], [1], [0, 0, 1, 1], [], []>} : vector<16x128xf32>, vector<128x64xf32>, vector<16x64xf32> -> vector<16x64xf32>
    %27 = tpu.reciprocal %26 {approx = true} : vector<16x64xf32> -> vector<16x64xf32>
    %28 = arith.mulf %25, %27 : vector<16x64xf32>
    %c0_18 = arith.constant 0 : index
    %c0_19 = arith.constant 0 : index
    %29 = vector.load %arg9[%c0_18, %c0_19] : memref<64x64xf32, #tpu.memory_space<vmem>>, vector<64x64xf32>
    %cst_20 = arith.constant dense<0.000000e+00> : vector<16x64xf32>
    %30 = tpu.matmul %28, %29, %cst_20 {dimension_numbers = #tpu.dot_dimension_numbers<[1], [0], [0], [1], [0, 0, 1, 1], [], []>} : vector<16x64xf32>, vector<64x64xf32>, vector<16x64xf32> -> vector<16x64xf32>
    %c0_21 = arith.constant 0 : index
    %c0_22 = arith.constant 0 : index
    %31 = vector.load %arg10[%c0_21, %c0_22] : memref<1x64xf32, #tpu.memory_space<vmem>>, vector<1x64xf32>
    %32 = vector.broadcast %31 : vector<1x64xf32> to vector<16x64xf32>
    %33 = arith.addf %30, %32 : vector<16x64xf32>
    %c0_23 = arith.constant 0 : index
    %c0_24 = arith.constant 0 : index
    %34 = vector.load %arg11[%c0_23, %c0_24] : memref<4x64xf32, #tpu.memory_space<vmem>>, vector<1x64xf32>
    %c1 = arith.constant 1 : index
    %c0_25 = arith.constant 0 : index
    %35 = vector.load %arg11[%c1, %c0_25] : memref<4x64xf32, #tpu.memory_space<vmem>>, vector<1x64xf32>
    %36 = arith.addf %0, %33 : vector<16x64xf32>
    %cst_26 = arith.constant dense<0.000000e+00> : vector<16xf32>
    %37 = vector.multi_reduction <add>, %36, %cst_26 [1] : vector<16x64xf32> to vector<16xf32>
    %38 = vector.shape_cast %37 : vector<16xf32> to vector<16x1xf32>
    %cst_27 = arith.constant 6.400000e+01 : f32
    %39 = vector.broadcast %cst_27 : f32 to vector<16x1xf32>
    %40 = arith.divf %38, %39 : vector<16x1xf32>
    %41 = vector.broadcast %40 : vector<16x1xf32> to vector<16x64xf32>
    %42 = arith.subf %36, %41 : vector<16x64xf32>
    %43 = arith.mulf %42, %42 : vector<16x64xf32>
    %cst_28 = arith.constant dense<0.000000e+00> : vector<16xf32>
    %44 = vector.multi_reduction <add>, %43, %cst_28 [1] : vector<16x64xf32> to vector<16xf32>
    %45 = vector.shape_cast %44 : vector<16xf32> to vector<16x1xf32>
    %cst_29 = arith.constant 6.400000e+01 : f32
    %46 = vector.broadcast %cst_29 : f32 to vector<16x1xf32>
    %47 = arith.divf %45, %46 : vector<16x1xf32>
    %cst_30 = arith.constant 9.99999974E-6 : f32
    %48 = vector.broadcast %cst_30 : f32 to vector<16x1xf32>
    %49 = arith.addf %47, %48 : vector<16x1xf32>
    %50 = math.rsqrt %49 : vector<16x1xf32>
    %51 = vector.broadcast %50 : vector<16x1xf32> to vector<16x64xf32>
    %52 = arith.mulf %42, %51 : vector<16x64xf32>
    %53 = vector.broadcast %34 : vector<1x64xf32> to vector<16x64xf32>
    %54 = arith.mulf %52, %53 : vector<16x64xf32>
    %55 = vector.broadcast %35 : vector<1x64xf32> to vector<16x64xf32>
    %56 = arith.addf %54, %55 : vector<16x64xf32>
    %c0_31 = arith.constant 0 : index
    %c0_32 = arith.constant 0 : index
    %57 = vector.load %arg12[%c0_31, %c0_32] : memref<64x128xf32, #tpu.memory_space<vmem>>, vector<64x128xf32>
    %cst_33 = arith.constant dense<0.000000e+00> : vector<16x128xf32>
    %58 = tpu.matmul %56, %57, %cst_33 {dimension_numbers = #tpu.dot_dimension_numbers<[1], [0], [0], [1], [0, 0, 1, 1], [], []>} : vector<16x64xf32>, vector<64x128xf32>, vector<16x128xf32> -> vector<16x128xf32>
    %c0_34 = arith.constant 0 : index
    %c0_35 = arith.constant 0 : index
    %59 = vector.load %arg13[%c0_34, %c0_35] : memref<1x128xf32, #tpu.memory_space<vmem>>, vector<1x128xf32>
    %60 = vector.broadcast %59 : vector<1x128xf32> to vector<16x128xf32>
    %61 = arith.addf %58, %60 : vector<16x128xf32>
    %cst_36 = arith.constant 0.000000e+00 : f32
    %62 = vector.broadcast %cst_36 : f32 to vector<16x128xf32>
    %63 = arith.maximumf %61, %62 : vector<16x128xf32>
    %c0_37 = arith.constant 0 : index
    %c0_38 = arith.constant 0 : index
    %64 = vector.load %arg14[%c0_37, %c0_38] : memref<128x64xf32, #tpu.memory_space<vmem>>, vector<128x64xf32>
    %cst_39 = arith.constant dense<0.000000e+00> : vector<16x64xf32>
    %65 = tpu.matmul %63, %64, %cst_39 {dimension_numbers = #tpu.dot_dimension_numbers<[1], [0], [0], [1], [0, 0, 1, 1], [], []>} : vector<16x128xf32>, vector<128x64xf32>, vector<16x64xf32> -> vector<16x64xf32>
    %c0_40 = arith.constant 0 : index
    %c0_41 = arith.constant 0 : index
    %66 = vector.load %arg15[%c0_40, %c0_41] : memref<1x64xf32, #tpu.memory_space<vmem>>, vector<1x64xf32>
    %67 = vector.broadcast %66 : vector<1x64xf32> to vector<16x64xf32>
    %68 = arith.addf %65, %67 : vector<16x64xf32>
    %c2 = arith.constant 2 : index
    %c0_42 = arith.constant 0 : index
    %69 = vector.load %arg11[%c2, %c0_42] : memref<4x64xf32, #tpu.memory_space<vmem>>, vector<1x64xf32>
    %c3 = arith.constant 3 : index
    %c0_43 = arith.constant 0 : index
    %70 = vector.load %arg11[%c3, %c0_43] : memref<4x64xf32, #tpu.memory_space<vmem>>, vector<1x64xf32>
    %71 = arith.addf %56, %68 : vector<16x64xf32>
    %cst_44 = arith.constant dense<0.000000e+00> : vector<16xf32>
    %72 = vector.multi_reduction <add>, %71, %cst_44 [1] : vector<16x64xf32> to vector<16xf32>
    %73 = vector.shape_cast %72 : vector<16xf32> to vector<16x1xf32>
    %cst_45 = arith.constant 6.400000e+01 : f32
    %74 = vector.broadcast %cst_45 : f32 to vector<16x1xf32>
    %75 = arith.divf %73, %74 : vector<16x1xf32>
    %76 = vector.broadcast %75 : vector<16x1xf32> to vector<16x64xf32>
    %77 = arith.subf %71, %76 : vector<16x64xf32>
    %78 = arith.mulf %77, %77 : vector<16x64xf32>
    %cst_46 = arith.constant dense<0.000000e+00> : vector<16xf32>
    %79 = vector.multi_reduction <add>, %78, %cst_46 [1] : vector<16x64xf32> to vector<16xf32>
    %80 = vector.shape_cast %79 : vector<16xf32> to vector<16x1xf32>
    %cst_47 = arith.constant 6.400000e+01 : f32
    %81 = vector.broadcast %cst_47 : f32 to vector<16x1xf32>
    %82 = arith.divf %80, %81 : vector<16x1xf32>
    %cst_48 = arith.constant 9.99999974E-6 : f32
    %83 = vector.broadcast %cst_48 : f32 to vector<16x1xf32>
    %84 = arith.addf %82, %83 : vector<16x1xf32>
    %85 = math.rsqrt %84 : vector<16x1xf32>
    %86 = vector.broadcast %85 : vector<16x1xf32> to vector<16x64xf32>
    %87 = arith.mulf %77, %86 : vector<16x64xf32>
    %88 = vector.broadcast %69 : vector<1x64xf32> to vector<16x64xf32>
    %89 = arith.mulf %87, %88 : vector<16x64xf32>
    %90 = vector.broadcast %70 : vector<1x64xf32> to vector<16x64xf32>
    %91 = arith.addf %89, %90 : vector<16x64xf32>
    %c0_49 = arith.constant 0 : index
    %c0_50 = arith.constant 0 : index
    %92 = vector.load %arg7[%c0_49, %c0_50] : memref<64x192xf32, #tpu.memory_space<vmem>>, vector<64x192xf32>
    %cst_51 = arith.constant dense<0.000000e+00> : vector<16x192xf32>
    %93 = tpu.matmul %91, %92, %cst_51 {dimension_numbers = #tpu.dot_dimension_numbers<[1], [0], [0], [1], [0, 0, 1, 1], [], []>} : vector<16x64xf32>, vector<64x192xf32>, vector<16x192xf32> -> vector<16x192xf32>
    %c0_52 = arith.constant 0 : index
    %c0_53 = arith.constant 0 : index
    %94 = vector.load %arg8[%c0_52, %c0_53] : memref<1x192xf32, #tpu.memory_space<vmem>>, vector<1x192xf32>
    %95 = vector.broadcast %94 : vector<1x192xf32> to vector<16x192xf32>
    %96 = arith.addf %93, %95 : vector<16x192xf32>
    %97 = vector.extract_strided_slice %96 {offsets = [0, 0], sizes = [16, 64], strides = [1, 1]} : vector<16x192xf32> to vector<16x64xf32>
    %98 = vector.extract_strided_slice %96 {offsets = [0, 64], sizes = [16, 64], strides = [1, 1]} : vector<16x192xf32> to vector<16x64xf32>
    %99 = vector.extract_strided_slice %96 {offsets = [0, 128], sizes = [16, 64], strides = [1, 1]} : vector<16x192xf32> to vector<16x64xf32>
    %c0_54 = arith.constant 0 : index
    %c0_55 = arith.constant 0 : index
    %100 = vector.load %arg5[%c0_54, %c0_55] : memref<128x16xf32, #tpu.memory_space<vmem>>, vector<128x16xf32>
    %c0_56 = arith.constant 0 : index
    %c0_57 = arith.constant 0 : index
    %101 = vector.load %arg6[%c0_56, %c0_57] : memref<128x64xf32, #tpu.memory_space<vmem>>, vector<128x64xf32>
    %cst_58 = arith.constant dense<0.000000e+00> : vector<128x64xf32>
    %102 = tpu.matmul %100, %98, %cst_58 {dimension_numbers = #tpu.dot_dimension_numbers<[1], [0], [0], [1], [0, 0, 1, 1], [], []>} : vector<128x16xf32>, vector<16x64xf32>, vector<128x64xf32> -> vector<128x64xf32>
    %103 = arith.mulf %102, %101 : vector<128x64xf32>
    %cst_59 = arith.constant dense<0.000000e+00> : vector<128x64xf32>
    %104 = tpu.matmul %100, %99, %cst_59 {dimension_numbers = #tpu.dot_dimension_numbers<[1], [0], [0], [1], [0, 0, 1, 1], [], []>} : vector<128x16xf32>, vector<16x64xf32>, vector<128x64xf32> -> vector<128x64xf32>
    %105 = arith.mulf %104, %101 : vector<128x64xf32>
    %c0_60 = arith.constant 0 : index
    %c0_61 = arith.constant 0 : index
    %106 = vector.load %arg2[%c0_60, %c0_61] : memref<16x128xf32, #tpu.memory_space<vmem>>, vector<16x128xf32>
    %cst_62 = arith.constant dense<0.000000e+00> : vector<16x128xf32>
    %107 = tpu.matmul %97, %103, %cst_62 {dimension_numbers = #tpu.dot_dimension_numbers<[1], [1], [0], [0], [0, 0, 1, 0], [], []>} : vector<16x64xf32>, vector<128x64xf32>, vector<16x128xf32> -> vector<16x128xf32>
    %cst_63 = arith.constant 0.353553385 : f32
    %108 = vector.broadcast %cst_63 : f32 to vector<16x128xf32>
    %109 = arith.mulf %107, %108 : vector<16x128xf32>
    %110 = arith.addf %109, %106 : vector<16x128xf32>
    %cst_64 = arith.constant dense<0xFF800000> : vector<16xf32>
    %111 = vector.multi_reduction <maximumf>, %110, %cst_64 [1] : vector<16x128xf32> to vector<16xf32>
    %112 = vector.shape_cast %111 : vector<16xf32> to vector<16x1xf32>
    %113 = vector.broadcast %112 : vector<16x1xf32> to vector<16x128xf32>
    %114 = arith.subf %110, %113 : vector<16x128xf32>
    %115 = math.exp %114 : vector<16x128xf32>
    %cst_65 = arith.constant dense<0.000000e+00> : vector<16x64xf32>
    %116 = tpu.matmul %115, %105, %cst_65 {dimension_numbers = #tpu.dot_dimension_numbers<[1], [0], [0], [1], [0, 0, 1, 1], [], []>} : vector<16x128xf32>, vector<128x64xf32>, vector<16x64xf32> -> vector<16x64xf32>
    %cst_66 = arith.constant dense<0.000000e+00> : vector<16x64xf32>
    %117 = tpu.matmul %115, %101, %cst_66 {dimension_numbers = #tpu.dot_dimension_numbers<[1], [0], [0], [1], [0, 0, 1, 1], [], []>} : vector<16x128xf32>, vector<128x64xf32>, vector<16x64xf32> -> vector<16x64xf32>
    %118 = tpu.reciprocal %117 {approx = true} : vector<16x64xf32> -> vector<16x64xf32>
    %119 = arith.mulf %116, %118 : vector<16x64xf32>
    %c0_67 = arith.constant 0 : index
    %c0_68 = arith.constant 0 : index
    %120 = vector.load %arg9[%c0_67, %c0_68] : memref<64x64xf32, #tpu.memory_space<vmem>>, vector<64x64xf32>
    %cst_69 = arith.constant dense<0.000000e+00> : vector<16x64xf32>
    %121 = tpu.matmul %119, %120, %cst_69 {dimension_numbers = #tpu.dot_dimension_numbers<[1], [0], [0], [1], [0, 0, 1, 1], [], []>} : vector<16x64xf32>, vector<64x64xf32>, vector<16x64xf32> -> vector<16x64xf32>
    %c0_70 = arith.constant 0 : index
    %c0_71 = arith.constant 0 : index
    %122 = vector.load %arg10[%c0_70, %c0_71] : memref<1x64xf32, #tpu.memory_space<vmem>>, vector<1x64xf32>
    %123 = vector.broadcast %122 : vector<1x64xf32> to vector<16x64xf32>
    %124 = arith.addf %121, %123 : vector<16x64xf32>
    %c0_72 = arith.constant 0 : index
    %c0_73 = arith.constant 0 : index
    %125 = vector.load %arg11[%c0_72, %c0_73] : memref<4x64xf32, #tpu.memory_space<vmem>>, vector<1x64xf32>
    %c1_74 = arith.constant 1 : index
    %c0_75 = arith.constant 0 : index
    %126 = vector.load %arg11[%c1_74, %c0_75] : memref<4x64xf32, #tpu.memory_space<vmem>>, vector<1x64xf32>
    %127 = arith.addf %91, %124 : vector<16x64xf32>
    %cst_76 = arith.constant dense<0.000000e+00> : vector<16xf32>
    %128 = vector.multi_reduction <add>, %127, %cst_76 [1] : vector<16x64xf32> to vector<16xf32>
    %129 = vector.shape_cast %128 : vector<16xf32> to vector<16x1xf32>
    %cst_77 = arith.constant 6.400000e+01 : f32
    %130 = vector.broadcast %cst_77 : f32 to vector<16x1xf32>
    %131 = arith.divf %129, %130 : vector<16x1xf32>
    %132 = vector.broadcast %131 : vector<16x1xf32> to vector<16x64xf32>
    %133 = arith.subf %127, %132 : vector<16x64xf32>
    %134 = arith.mulf %133, %133 : vector<16x64xf32>
    %cst_78 = arith.constant dense<0.000000e+00> : vector<16xf32>
    %135 = vector.multi_reduction <add>, %134, %cst_78 [1] : vector<16x64xf32> to vector<16xf32>
    %136 = vector.shape_cast %135 : vector<16xf32> to vector<16x1xf32>
    %cst_79 = arith.constant 6.400000e+01 : f32
    %137 = vector.broadcast %cst_79 : f32 to vector<16x1xf32>
    %138 = arith.divf %136, %137 : vector<16x1xf32>
    %cst_80 = arith.constant 9.99999974E-6 : f32
    %139 = vector.broadcast %cst_80 : f32 to vector<16x1xf32>
    %140 = arith.addf %138, %139 : vector<16x1xf32>
    %141 = math.rsqrt %140 : vector<16x1xf32>
    %142 = vector.broadcast %141 : vector<16x1xf32> to vector<16x64xf32>
    %143 = arith.mulf %133, %142 : vector<16x64xf32>
    %144 = vector.broadcast %125 : vector<1x64xf32> to vector<16x64xf32>
    %145 = arith.mulf %143, %144 : vector<16x64xf32>
    %146 = vector.broadcast %126 : vector<1x64xf32> to vector<16x64xf32>
    %147 = arith.addf %145, %146 : vector<16x64xf32>
    %c0_81 = arith.constant 0 : index
    %c0_82 = arith.constant 0 : index
    %148 = vector.load %arg12[%c0_81, %c0_82] : memref<64x128xf32, #tpu.memory_space<vmem>>, vector<64x128xf32>
    %cst_83 = arith.constant dense<0.000000e+00> : vector<16x128xf32>
    %149 = tpu.matmul %147, %148, %cst_83 {dimension_numbers = #tpu.dot_dimension_numbers<[1], [0], [0], [1], [0, 0, 1, 1], [], []>} : vector<16x64xf32>, vector<64x128xf32>, vector<16x128xf32> -> vector<16x128xf32>
    %c0_84 = arith.constant 0 : index
    %c0_85 = arith.constant 0 : index
    %150 = vector.load %arg13[%c0_84, %c0_85] : memref<1x128xf32, #tpu.memory_space<vmem>>, vector<1x128xf32>
    %151 = vector.broadcast %150 : vector<1x128xf32> to vector<16x128xf32>
    %152 = arith.addf %149, %151 : vector<16x128xf32>
    %cst_86 = arith.constant 0.000000e+00 : f32
    %153 = vector.broadcast %cst_86 : f32 to vector<16x128xf32>
    %154 = arith.maximumf %152, %153 : vector<16x128xf32>
    %c0_87 = arith.constant 0 : index
    %c0_88 = arith.constant 0 : index
    %155 = vector.load %arg14[%c0_87, %c0_88] : memref<128x64xf32, #tpu.memory_space<vmem>>, vector<128x64xf32>
    %cst_89 = arith.constant dense<0.000000e+00> : vector<16x64xf32>
    %156 = tpu.matmul %154, %155, %cst_89 {dimension_numbers = #tpu.dot_dimension_numbers<[1], [0], [0], [1], [0, 0, 1, 1], [], []>} : vector<16x128xf32>, vector<128x64xf32>, vector<16x64xf32> -> vector<16x64xf32>
    %c0_90 = arith.constant 0 : index
    %c0_91 = arith.constant 0 : index
    %157 = vector.load %arg15[%c0_90, %c0_91] : memref<1x64xf32, #tpu.memory_space<vmem>>, vector<1x64xf32>
    %158 = vector.broadcast %157 : vector<1x64xf32> to vector<16x64xf32>
    %159 = arith.addf %156, %158 : vector<16x64xf32>
    %c2_92 = arith.constant 2 : index
    %c0_93 = arith.constant 0 : index
    %160 = vector.load %arg11[%c2_92, %c0_93] : memref<4x64xf32, #tpu.memory_space<vmem>>, vector<1x64xf32>
    %c3_94 = arith.constant 3 : index
    %c0_95 = arith.constant 0 : index
    %161 = vector.load %arg11[%c3_94, %c0_95] : memref<4x64xf32, #tpu.memory_space<vmem>>, vector<1x64xf32>
    %162 = arith.addf %147, %159 : vector<16x64xf32>
    %cst_96 = arith.constant dense<0.000000e+00> : vector<16xf32>
    %163 = vector.multi_reduction <add>, %162, %cst_96 [1] : vector<16x64xf32> to vector<16xf32>
    %164 = vector.shape_cast %163 : vector<16xf32> to vector<16x1xf32>
    %cst_97 = arith.constant 6.400000e+01 : f32
    %165 = vector.broadcast %cst_97 : f32 to vector<16x1xf32>
    %166 = arith.divf %164, %165 : vector<16x1xf32>
    %167 = vector.broadcast %166 : vector<16x1xf32> to vector<16x64xf32>
    %168 = arith.subf %162, %167 : vector<16x64xf32>
    %169 = arith.mulf %168, %168 : vector<16x64xf32>
    %cst_98 = arith.constant dense<0.000000e+00> : vector<16xf32>
    %170 = vector.multi_reduction <add>, %169, %cst_98 [1] : vector<16x64xf32> to vector<16xf32>
    %171 = vector.shape_cast %170 : vector<16xf32> to vector<16x1xf32>
    %cst_99 = arith.constant 6.400000e+01 : f32
    %172 = vector.broadcast %cst_99 : f32 to vector<16x1xf32>
    %173 = arith.divf %171, %172 : vector<16x1xf32>
    %cst_100 = arith.constant 9.99999974E-6 : f32
    %174 = vector.broadcast %cst_100 : f32 to vector<16x1xf32>
    %175 = arith.addf %173, %174 : vector<16x1xf32>
    %176 = math.rsqrt %175 : vector<16x1xf32>
    %177 = vector.broadcast %176 : vector<16x1xf32> to vector<16x64xf32>
    %178 = arith.mulf %168, %177 : vector<16x64xf32>
    %179 = vector.broadcast %160 : vector<1x64xf32> to vector<16x64xf32>
    %180 = arith.mulf %178, %179 : vector<16x64xf32>
    %181 = vector.broadcast %161 : vector<1x64xf32> to vector<16x64xf32>
    %182 = arith.addf %180, %181 : vector<16x64xf32>
    %c0_101 = arith.constant 0 : index
    %c0_102 = arith.constant 0 : index
    %183 = vector.load %arg7[%c0_101, %c0_102] : memref<64x192xf32, #tpu.memory_space<vmem>>, vector<64x192xf32>
    %cst_103 = arith.constant dense<0.000000e+00> : vector<16x192xf32>
    %184 = tpu.matmul %182, %183, %cst_103 {dimension_numbers = #tpu.dot_dimension_numbers<[1], [0], [0], [1], [0, 0, 1, 1], [], []>} : vector<16x64xf32>, vector<64x192xf32>, vector<16x192xf32> -> vector<16x192xf32>
    %c0_104 = arith.constant 0 : index
    %c0_105 = arith.constant 0 : index
    %185 = vector.load %arg8[%c0_104, %c0_105] : memref<1x192xf32, #tpu.memory_space<vmem>>, vector<1x192xf32>
    %186 = vector.broadcast %185 : vector<1x192xf32> to vector<16x192xf32>
    %187 = arith.addf %184, %186 : vector<16x192xf32>
    %188 = vector.extract_strided_slice %187 {offsets = [0, 0], sizes = [16, 64], strides = [1, 1]} : vector<16x192xf32> to vector<16x64xf32>
    %189 = vector.extract_strided_slice %187 {offsets = [0, 64], sizes = [16, 64], strides = [1, 1]} : vector<16x192xf32> to vector<16x64xf32>
    %190 = vector.extract_strided_slice %187 {offsets = [0, 128], sizes = [16, 64], strides = [1, 1]} : vector<16x192xf32> to vector<16x64xf32>
    %c0_106 = arith.constant 0 : index
    %c0_107 = arith.constant 0 : index
    %191 = vector.load %arg5[%c0_106, %c0_107] : memref<128x16xf32, #tpu.memory_space<vmem>>, vector<128x16xf32>
    %c0_108 = arith.constant 0 : index
    %c0_109 = arith.constant 0 : index
    %192 = vector.load %arg6[%c0_108, %c0_109] : memref<128x64xf32, #tpu.memory_space<vmem>>, vector<128x64xf32>
    %cst_110 = arith.constant dense<0.000000e+00> : vector<128x64xf32>
    %193 = tpu.matmul %191, %189, %cst_110 {dimension_numbers = #tpu.dot_dimension_numbers<[1], [0], [0], [1], [0, 0, 1, 1], [], []>} : vector<128x16xf32>, vector<16x64xf32>, vector<128x64xf32> -> vector<128x64xf32>
    %194 = arith.mulf %193, %192 : vector<128x64xf32>
    %cst_111 = arith.constant dense<0.000000e+00> : vector<128x64xf32>
    %195 = tpu.matmul %191, %190, %cst_111 {dimension_numbers = #tpu.dot_dimension_numbers<[1], [0], [0], [1], [0, 0, 1, 1], [], []>} : vector<128x16xf32>, vector<16x64xf32>, vector<128x64xf32> -> vector<128x64xf32>
    %196 = arith.mulf %195, %192 : vector<128x64xf32>
    %c0_112 = arith.constant 0 : index
    %c0_113 = arith.constant 0 : index
    %197 = vector.load %arg2[%c0_112, %c0_113] : memref<16x128xf32, #tpu.memory_space<vmem>>, vector<16x128xf32>
    %cst_114 = arith.constant dense<0.000000e+00> : vector<16x128xf32>
    %198 = tpu.matmul %188, %194, %cst_114 {dimension_numbers = #tpu.dot_dimension_numbers<[1], [1], [0], [0], [0, 0, 1, 0], [], []>} : vector<16x64xf32>, vector<128x64xf32>, vector<16x128xf32> -> vector<16x128xf32>
    %cst_115 = arith.constant 0.353553385 : f32
    %199 = vector.broadcast %cst_115 : f32 to vector<16x128xf32>
    %200 = arith.mulf %198, %199 : vector<16x128xf32>
    %201 = arith.addf %200, %197 : vector<16x128xf32>
    %cst_116 = arith.constant dense<0xFF800000> : vector<16xf32>
    %202 = vector.multi_reduction <maximumf>, %201, %cst_116 [1] : vector<16x128xf32> to vector<16xf32>
    %203 = vector.shape_cast %202 : vector<16xf32> to vector<16x1xf32>
    %204 = vector.broadcast %203 : vector<16x1xf32> to vector<16x128xf32>
    %205 = arith.subf %201, %204 : vector<16x128xf32>
    %206 = math.exp %205 : vector<16x128xf32>
    %cst_117 = arith.constant dense<0.000000e+00> : vector<16x64xf32>
    %207 = tpu.matmul %206, %196, %cst_117 {dimension_numbers = #tpu.dot_dimension_numbers<[1], [0], [0], [1], [0, 0, 1, 1], [], []>} : vector<16x128xf32>, vector<128x64xf32>, vector<16x64xf32> -> vector<16x64xf32>
    %cst_118 = arith.constant dense<0.000000e+00> : vector<16x64xf32>
    %208 = tpu.matmul %206, %192, %cst_118 {dimension_numbers = #tpu.dot_dimension_numbers<[1], [0], [0], [1], [0, 0, 1, 1], [], []>} : vector<16x128xf32>, vector<128x64xf32>, vector<16x64xf32> -> vector<16x64xf32>
    %209 = tpu.reciprocal %208 {approx = true} : vector<16x64xf32> -> vector<16x64xf32>
    %210 = arith.mulf %207, %209 : vector<16x64xf32>
    %c0_119 = arith.constant 0 : index
    %c0_120 = arith.constant 0 : index
    %211 = vector.load %arg9[%c0_119, %c0_120] : memref<64x64xf32, #tpu.memory_space<vmem>>, vector<64x64xf32>
    %cst_121 = arith.constant dense<0.000000e+00> : vector<16x64xf32>
    %212 = tpu.matmul %210, %211, %cst_121 {dimension_numbers = #tpu.dot_dimension_numbers<[1], [0], [0], [1], [0, 0, 1, 1], [], []>} : vector<16x64xf32>, vector<64x64xf32>, vector<16x64xf32> -> vector<16x64xf32>
    %c0_122 = arith.constant 0 : index
    %c0_123 = arith.constant 0 : index
    %213 = vector.load %arg10[%c0_122, %c0_123] : memref<1x64xf32, #tpu.memory_space<vmem>>, vector<1x64xf32>
    %214 = vector.broadcast %213 : vector<1x64xf32> to vector<16x64xf32>
    %215 = arith.addf %212, %214 : vector<16x64xf32>
    %c0_124 = arith.constant 0 : index
    %c0_125 = arith.constant 0 : index
    %216 = vector.load %arg11[%c0_124, %c0_125] : memref<4x64xf32, #tpu.memory_space<vmem>>, vector<1x64xf32>
    %c1_126 = arith.constant 1 : index
    %c0_127 = arith.constant 0 : index
    %217 = vector.load %arg11[%c1_126, %c0_127] : memref<4x64xf32, #tpu.memory_space<vmem>>, vector<1x64xf32>
    %218 = arith.addf %182, %215 : vector<16x64xf32>
    %cst_128 = arith.constant dense<0.000000e+00> : vector<16xf32>
    %219 = vector.multi_reduction <add>, %218, %cst_128 [1] : vector<16x64xf32> to vector<16xf32>
    %220 = vector.shape_cast %219 : vector<16xf32> to vector<16x1xf32>
    %cst_129 = arith.constant 6.400000e+01 : f32
    %221 = vector.broadcast %cst_129 : f32 to vector<16x1xf32>
    %222 = arith.divf %220, %221 : vector<16x1xf32>
    %223 = vector.broadcast %222 : vector<16x1xf32> to vector<16x64xf32>
    %224 = arith.subf %218, %223 : vector<16x64xf32>
    %225 = arith.mulf %224, %224 : vector<16x64xf32>
    %cst_130 = arith.constant dense<0.000000e+00> : vector<16xf32>
    %226 = vector.multi_reduction <add>, %225, %cst_130 [1] : vector<16x64xf32> to vector<16xf32>
    %227 = vector.shape_cast %226 : vector<16xf32> to vector<16x1xf32>
    %cst_131 = arith.constant 6.400000e+01 : f32
    %228 = vector.broadcast %cst_131 : f32 to vector<16x1xf32>
    %229 = arith.divf %227, %228 : vector<16x1xf32>
    %cst_132 = arith.constant 9.99999974E-6 : f32
    %230 = vector.broadcast %cst_132 : f32 to vector<16x1xf32>
    %231 = arith.addf %229, %230 : vector<16x1xf32>
    %232 = math.rsqrt %231 : vector<16x1xf32>
    %233 = vector.broadcast %232 : vector<16x1xf32> to vector<16x64xf32>
    %234 = arith.mulf %224, %233 : vector<16x64xf32>
    %235 = vector.broadcast %216 : vector<1x64xf32> to vector<16x64xf32>
    %236 = arith.mulf %234, %235 : vector<16x64xf32>
    %237 = vector.broadcast %217 : vector<1x64xf32> to vector<16x64xf32>
    %238 = arith.addf %236, %237 : vector<16x64xf32>
    %c0_133 = arith.constant 0 : index
    %c0_134 = arith.constant 0 : index
    %239 = vector.load %arg12[%c0_133, %c0_134] : memref<64x128xf32, #tpu.memory_space<vmem>>, vector<64x128xf32>
    %cst_135 = arith.constant dense<0.000000e+00> : vector<16x128xf32>
    %240 = tpu.matmul %238, %239, %cst_135 {dimension_numbers = #tpu.dot_dimension_numbers<[1], [0], [0], [1], [0, 0, 1, 1], [], []>} : vector<16x64xf32>, vector<64x128xf32>, vector<16x128xf32> -> vector<16x128xf32>
    %c0_136 = arith.constant 0 : index
    %c0_137 = arith.constant 0 : index
    %241 = vector.load %arg13[%c0_136, %c0_137] : memref<1x128xf32, #tpu.memory_space<vmem>>, vector<1x128xf32>
    %242 = vector.broadcast %241 : vector<1x128xf32> to vector<16x128xf32>
    %243 = arith.addf %240, %242 : vector<16x128xf32>
    %cst_138 = arith.constant 0.000000e+00 : f32
    %244 = vector.broadcast %cst_138 : f32 to vector<16x128xf32>
    %245 = arith.maximumf %243, %244 : vector<16x128xf32>
    %c0_139 = arith.constant 0 : index
    %c0_140 = arith.constant 0 : index
    %246 = vector.load %arg14[%c0_139, %c0_140] : memref<128x64xf32, #tpu.memory_space<vmem>>, vector<128x64xf32>
    %cst_141 = arith.constant dense<0.000000e+00> : vector<16x64xf32>
    %247 = tpu.matmul %245, %246, %cst_141 {dimension_numbers = #tpu.dot_dimension_numbers<[1], [0], [0], [1], [0, 0, 1, 1], [], []>} : vector<16x128xf32>, vector<128x64xf32>, vector<16x64xf32> -> vector<16x64xf32>
    %c0_142 = arith.constant 0 : index
    %c0_143 = arith.constant 0 : index
    %248 = vector.load %arg15[%c0_142, %c0_143] : memref<1x64xf32, #tpu.memory_space<vmem>>, vector<1x64xf32>
    %249 = vector.broadcast %248 : vector<1x64xf32> to vector<16x64xf32>
    %250 = arith.addf %247, %249 : vector<16x64xf32>
    %c2_144 = arith.constant 2 : index
    %c0_145 = arith.constant 0 : index
    %251 = vector.load %arg11[%c2_144, %c0_145] : memref<4x64xf32, #tpu.memory_space<vmem>>, vector<1x64xf32>
    %c3_146 = arith.constant 3 : index
    %c0_147 = arith.constant 0 : index
    %252 = vector.load %arg11[%c3_146, %c0_147] : memref<4x64xf32, #tpu.memory_space<vmem>>, vector<1x64xf32>
    %253 = arith.addf %238, %250 : vector<16x64xf32>
    %cst_148 = arith.constant dense<0.000000e+00> : vector<16xf32>
    %254 = vector.multi_reduction <add>, %253, %cst_148 [1] : vector<16x64xf32> to vector<16xf32>
    %255 = vector.shape_cast %254 : vector<16xf32> to vector<16x1xf32>
    %cst_149 = arith.constant 6.400000e+01 : f32
    %256 = vector.broadcast %cst_149 : f32 to vector<16x1xf32>
    %257 = arith.divf %255, %256 : vector<16x1xf32>
    %258 = vector.broadcast %257 : vector<16x1xf32> to vector<16x64xf32>
    %259 = arith.subf %253, %258 : vector<16x64xf32>
    %260 = arith.mulf %259, %259 : vector<16x64xf32>
    %cst_150 = arith.constant dense<0.000000e+00> : vector<16xf32>
    %261 = vector.multi_reduction <add>, %260, %cst_150 [1] : vector<16x64xf32> to vector<16xf32>
    %262 = vector.shape_cast %261 : vector<16xf32> to vector<16x1xf32>
    %cst_151 = arith.constant 6.400000e+01 : f32
    %263 = vector.broadcast %cst_151 : f32 to vector<16x1xf32>
    %264 = arith.divf %262, %263 : vector<16x1xf32>
    %cst_152 = arith.constant 9.99999974E-6 : f32
    %265 = vector.broadcast %cst_152 : f32 to vector<16x1xf32>
    %266 = arith.addf %264, %265 : vector<16x1xf32>
    %267 = math.rsqrt %266 : vector<16x1xf32>
    %268 = vector.broadcast %267 : vector<16x1xf32> to vector<16x64xf32>
    %269 = arith.mulf %259, %268 : vector<16x64xf32>
    %270 = vector.broadcast %251 : vector<1x64xf32> to vector<16x64xf32>
    %271 = arith.mulf %269, %270 : vector<16x64xf32>
    %272 = vector.broadcast %252 : vector<1x64xf32> to vector<16x64xf32>
    %273 = arith.addf %271, %272 : vector<16x64xf32>
    %c0_153 = arith.constant 0 : index
    %c0_154 = arith.constant 0 : index
    %274 = vector.load %arg5[%c0_153, %c0_154] : memref<128x16xf32, #tpu.memory_space<vmem>>, vector<128x16xf32>
    %c0_155 = arith.constant 0 : index
    %c0_156 = arith.constant 0 : index
    %275 = vector.load %arg6[%c0_155, %c0_156] : memref<128x64xf32, #tpu.memory_space<vmem>>, vector<128x64xf32>
    %c0_157 = arith.constant 0 : index
    %c0_158 = arith.constant 0 : index
    %276 = vector.load %arg22[%c0_157, %c0_158] : memref<64x128xf32, #tpu.memory_space<vmem>>, vector<64x128xf32>
    %cst_159 = arith.constant dense<0.000000e+00> : vector<16x128xf32>
    %277 = tpu.matmul %273, %276, %cst_159 {dimension_numbers = #tpu.dot_dimension_numbers<[1], [0], [0], [1], [0, 0, 1, 1], [], []>} : vector<16x64xf32>, vector<64x128xf32>, vector<16x128xf32> -> vector<16x128xf32>
    %c0_160 = arith.constant 0 : index
    %c0_161 = arith.constant 0 : index
    %278 = vector.load %arg23[%c0_160, %c0_161] : memref<1x128xf32, #tpu.memory_space<vmem>>, vector<1x128xf32>
    %279 = vector.broadcast %278 : vector<1x128xf32> to vector<16x128xf32>
    %280 = arith.addf %277, %279 : vector<16x128xf32>
    %281 = vector.extract_strided_slice %280 {offsets = [0, 0], sizes = [16, 64], strides = [1, 1]} : vector<16x128xf32> to vector<16x64xf32>
    %cst_162 = arith.constant dense<0.000000e+00> : vector<128x64xf32>
    %282 = tpu.matmul %274, %281, %cst_162 {dimension_numbers = #tpu.dot_dimension_numbers<[1], [0], [0], [1], [0, 0, 1, 1], [], []>} : vector<128x16xf32>, vector<16x64xf32>, vector<128x64xf32> -> vector<128x64xf32>
    %283 = arith.mulf %282, %275 : vector<128x64xf32>
    %284 = vector.extract_strided_slice %280 {offsets = [0, 64], sizes = [16, 64], strides = [1, 1]} : vector<16x128xf32> to vector<16x64xf32>
    %cst_163 = arith.constant dense<0.000000e+00> : vector<128x64xf32>
    %285 = tpu.matmul %274, %284, %cst_163 {dimension_numbers = #tpu.dot_dimension_numbers<[1], [0], [0], [1], [0, 0, 1, 1], [], []>} : vector<128x16xf32>, vector<16x64xf32>, vector<128x64xf32> -> vector<128x64xf32>
    %286 = arith.mulf %285, %275 : vector<128x64xf32>
    %c0_164 = arith.constant 0 : index
    %c0_165 = arith.constant 0 : index
    %287 = vector.load %arg1[%c0_164, %c0_165] : memref<16x64xf32, #tpu.memory_space<vmem>>, vector<16x64xf32>
    %c0_166 = arith.constant 0 : index
    %c0_167 = arith.constant 0 : index
    %288 = vector.load %arg16[%c0_166, %c0_167] : memref<64x192xf32, #tpu.memory_space<vmem>>, vector<64x192xf32>
    %cst_168 = arith.constant dense<0.000000e+00> : vector<16x192xf32>
    %289 = tpu.matmul %287, %288, %cst_168 {dimension_numbers = #tpu.dot_dimension_numbers<[1], [0], [0], [1], [0, 0, 1, 1], [], []>} : vector<16x64xf32>, vector<64x192xf32>, vector<16x192xf32> -> vector<16x192xf32>
    %c0_169 = arith.constant 0 : index
    %c0_170 = arith.constant 0 : index
    %290 = vector.load %arg17[%c0_169, %c0_170] : memref<1x192xf32, #tpu.memory_space<vmem>>, vector<1x192xf32>
    %291 = vector.broadcast %290 : vector<1x192xf32> to vector<16x192xf32>
    %292 = arith.addf %289, %291 : vector<16x192xf32>
    %293 = vector.extract_strided_slice %292 {offsets = [0, 0], sizes = [16, 64], strides = [1, 1]} : vector<16x192xf32> to vector<16x64xf32>
    %294 = vector.extract_strided_slice %292 {offsets = [0, 64], sizes = [16, 64], strides = [1, 1]} : vector<16x192xf32> to vector<16x64xf32>
    %295 = vector.extract_strided_slice %292 {offsets = [0, 128], sizes = [16, 64], strides = [1, 1]} : vector<16x192xf32> to vector<16x64xf32>
    %c0_171 = arith.constant 0 : index
    %c0_172 = arith.constant 0 : index
    %296 = vector.load %arg5[%c0_171, %c0_172] : memref<128x16xf32, #tpu.memory_space<vmem>>, vector<128x16xf32>
    %c0_173 = arith.constant 0 : index
    %c0_174 = arith.constant 0 : index
    %297 = vector.load %arg6[%c0_173, %c0_174] : memref<128x64xf32, #tpu.memory_space<vmem>>, vector<128x64xf32>
    %cst_175 = arith.constant dense<0.000000e+00> : vector<128x64xf32>
    %298 = tpu.matmul %296, %294, %cst_175 {dimension_numbers = #tpu.dot_dimension_numbers<[1], [0], [0], [1], [0, 0, 1, 1], [], []>} : vector<128x16xf32>, vector<16x64xf32>, vector<128x64xf32> -> vector<128x64xf32>
    %299 = arith.mulf %298, %297 : vector<128x64xf32>
    %cst_176 = arith.constant dense<0.000000e+00> : vector<128x64xf32>
    %300 = tpu.matmul %296, %295, %cst_176 {dimension_numbers = #tpu.dot_dimension_numbers<[1], [0], [0], [1], [0, 0, 1, 1], [], []>} : vector<128x16xf32>, vector<16x64xf32>, vector<128x64xf32> -> vector<128x64xf32>
    %301 = arith.mulf %300, %297 : vector<128x64xf32>
    %c0_177 = arith.constant 0 : index
    %c0_178 = arith.constant 0 : index
    %302 = vector.load %arg3[%c0_177, %c0_178] : memref<16x128xf32, #tpu.memory_space<vmem>>, vector<16x128xf32>
    %cst_179 = arith.constant dense<0.000000e+00> : vector<16x128xf32>
    %303 = tpu.matmul %293, %299, %cst_179 {dimension_numbers = #tpu.dot_dimension_numbers<[1], [1], [0], [0], [0, 0, 1, 0], [], []>} : vector<16x64xf32>, vector<128x64xf32>, vector<16x128xf32> -> vector<16x128xf32>
    %cst_180 = arith.constant 0.353553385 : f32
    %304 = vector.broadcast %cst_180 : f32 to vector<16x128xf32>
    %305 = arith.mulf %303, %304 : vector<16x128xf32>
    %306 = arith.addf %305, %302 : vector<16x128xf32>
    %cst_181 = arith.constant dense<0xFF800000> : vector<16xf32>
    %307 = vector.multi_reduction <maximumf>, %306, %cst_181 [1] : vector<16x128xf32> to vector<16xf32>
    %308 = vector.shape_cast %307 : vector<16xf32> to vector<16x1xf32>
    %309 = vector.broadcast %308 : vector<16x1xf32> to vector<16x128xf32>
    %310 = arith.subf %306, %309 : vector<16x128xf32>
    %311 = math.exp %310 : vector<16x128xf32>
    %cst_182 = arith.constant dense<0.000000e+00> : vector<16x64xf32>
    %312 = tpu.matmul %311, %301, %cst_182 {dimension_numbers = #tpu.dot_dimension_numbers<[1], [0], [0], [1], [0, 0, 1, 1], [], []>} : vector<16x128xf32>, vector<128x64xf32>, vector<16x64xf32> -> vector<16x64xf32>
    %cst_183 = arith.constant dense<0.000000e+00> : vector<16x64xf32>
    %313 = tpu.matmul %311, %297, %cst_183 {dimension_numbers = #tpu.dot_dimension_numbers<[1], [0], [0], [1], [0, 0, 1, 1], [], []>} : vector<16x128xf32>, vector<128x64xf32>, vector<16x64xf32> -> vector<16x64xf32>
    %314 = tpu.reciprocal %313 {approx = true} : vector<16x64xf32> -> vector<16x64xf32>
    %315 = arith.mulf %312, %314 : vector<16x64xf32>
    %c0_184 = arith.constant 0 : index
    %c0_185 = arith.constant 0 : index
    %316 = vector.load %arg18[%c0_184, %c0_185] : memref<64x64xf32, #tpu.memory_space<vmem>>, vector<64x64xf32>
    %cst_186 = arith.constant dense<0.000000e+00> : vector<16x64xf32>
    %317 = tpu.matmul %315, %316, %cst_186 {dimension_numbers = #tpu.dot_dimension_numbers<[1], [0], [0], [1], [0, 0, 1, 1], [], []>} : vector<16x64xf32>, vector<64x64xf32>, vector<16x64xf32> -> vector<16x64xf32>
    %c0_187 = arith.constant 0 : index
    %c0_188 = arith.constant 0 : index
    %318 = vector.load %arg19[%c0_187, %c0_188] : memref<1x64xf32, #tpu.memory_space<vmem>>, vector<1x64xf32>
    %319 = vector.broadcast %318 : vector<1x64xf32> to vector<16x64xf32>
    %320 = arith.addf %317, %319 : vector<16x64xf32>
    %c0_189 = arith.constant 0 : index
    %c0_190 = arith.constant 0 : index
    %321 = vector.load %arg26[%c0_189, %c0_190] : memref<6x64xf32, #tpu.memory_space<vmem>>, vector<1x64xf32>
    %c1_191 = arith.constant 1 : index
    %c0_192 = arith.constant 0 : index
    %322 = vector.load %arg26[%c1_191, %c0_192] : memref<6x64xf32, #tpu.memory_space<vmem>>, vector<1x64xf32>
    %323 = arith.addf %287, %320 : vector<16x64xf32>
    %cst_193 = arith.constant dense<0.000000e+00> : vector<16xf32>
    %324 = vector.multi_reduction <add>, %323, %cst_193 [1] : vector<16x64xf32> to vector<16xf32>
    %325 = vector.shape_cast %324 : vector<16xf32> to vector<16x1xf32>
    %cst_194 = arith.constant 6.400000e+01 : f32
    %326 = vector.broadcast %cst_194 : f32 to vector<16x1xf32>
    %327 = arith.divf %325, %326 : vector<16x1xf32>
    %328 = vector.broadcast %327 : vector<16x1xf32> to vector<16x64xf32>
    %329 = arith.subf %323, %328 : vector<16x64xf32>
    %330 = arith.mulf %329, %329 : vector<16x64xf32>
    %cst_195 = arith.constant dense<0.000000e+00> : vector<16xf32>
    %331 = vector.multi_reduction <add>, %330, %cst_195 [1] : vector<16x64xf32> to vector<16xf32>
    %332 = vector.shape_cast %331 : vector<16xf32> to vector<16x1xf32>
    %cst_196 = arith.constant 6.400000e+01 : f32
    %333 = vector.broadcast %cst_196 : f32 to vector<16x1xf32>
    %334 = arith.divf %332, %333 : vector<16x1xf32>
    %cst_197 = arith.constant 9.99999974E-6 : f32
    %335 = vector.broadcast %cst_197 : f32 to vector<16x1xf32>
    %336 = arith.addf %334, %335 : vector<16x1xf32>
    %337 = math.rsqrt %336 : vector<16x1xf32>
    %338 = vector.broadcast %337 : vector<16x1xf32> to vector<16x64xf32>
    %339 = arith.mulf %329, %338 : vector<16x64xf32>
    %340 = vector.broadcast %321 : vector<1x64xf32> to vector<16x64xf32>
    %341 = arith.mulf %339, %340 : vector<16x64xf32>
    %342 = vector.broadcast %322 : vector<1x64xf32> to vector<16x64xf32>
    %343 = arith.addf %341, %342 : vector<16x64xf32>
    %c0_198 = arith.constant 0 : index
    %c0_199 = arith.constant 0 : index
    %344 = vector.load %arg20[%c0_198, %c0_199] : memref<64x64xf32, #tpu.memory_space<vmem>>, vector<64x64xf32>
    %cst_200 = arith.constant dense<0.000000e+00> : vector<16x64xf32>
    %345 = tpu.matmul %343, %344, %cst_200 {dimension_numbers = #tpu.dot_dimension_numbers<[1], [0], [0], [1], [0, 0, 1, 1], [], []>} : vector<16x64xf32>, vector<64x64xf32>, vector<16x64xf32> -> vector<16x64xf32>
    %c0_201 = arith.constant 0 : index
    %c0_202 = arith.constant 0 : index
    %346 = vector.load %arg21[%c0_201, %c0_202] : memref<1x64xf32, #tpu.memory_space<vmem>>, vector<1x64xf32>
    %347 = vector.broadcast %346 : vector<1x64xf32> to vector<16x64xf32>
    %348 = arith.addf %345, %347 : vector<16x64xf32>
    %c0_203 = arith.constant 0 : index
    %c0_204 = arith.constant 0 : index
    %349 = vector.load %arg6[%c0_203, %c0_204] : memref<128x64xf32, #tpu.memory_space<vmem>>, vector<128x64xf32>
    %c0_205 = arith.constant 0 : index
    %c0_206 = arith.constant 0 : index
    %350 = vector.load %arg4[%c0_205, %c0_206] : memref<16x128xf32, #tpu.memory_space<vmem>>, vector<16x128xf32>
    %cst_207 = arith.constant dense<0.000000e+00> : vector<16x128xf32>
    %351 = tpu.matmul %348, %283, %cst_207 {dimension_numbers = #tpu.dot_dimension_numbers<[1], [1], [0], [0], [0, 0, 1, 0], [], []>} : vector<16x64xf32>, vector<128x64xf32>, vector<16x128xf32> -> vector<16x128xf32>
    %cst_208 = arith.constant 0.353553385 : f32
    %352 = vector.broadcast %cst_208 : f32 to vector<16x128xf32>
    %353 = arith.mulf %351, %352 : vector<16x128xf32>
    %354 = arith.addf %353, %350 : vector<16x128xf32>
    %cst_209 = arith.constant dense<0xFF800000> : vector<16xf32>
    %355 = vector.multi_reduction <maximumf>, %354, %cst_209 [1] : vector<16x128xf32> to vector<16xf32>
    %356 = vector.shape_cast %355 : vector<16xf32> to vector<16x1xf32>
    %357 = vector.broadcast %356 : vector<16x1xf32> to vector<16x128xf32>
    %358 = arith.subf %354, %357 : vector<16x128xf32>
    %359 = math.exp %358 : vector<16x128xf32>
    %cst_210 = arith.constant dense<0.000000e+00> : vector<16x64xf32>
    %360 = tpu.matmul %359, %286, %cst_210 {dimension_numbers = #tpu.dot_dimension_numbers<[1], [0], [0], [1], [0, 0, 1, 1], [], []>} : vector<16x128xf32>, vector<128x64xf32>, vector<16x64xf32> -> vector<16x64xf32>
    %cst_211 = arith.constant dense<0.000000e+00> : vector<16x64xf32>
    %361 = tpu.matmul %359, %349, %cst_211 {dimension_numbers = #tpu.dot_dimension_numbers<[1], [0], [0], [1], [0, 0, 1, 1], [], []>} : vector<16x128xf32>, vector<128x64xf32>, vector<16x64xf32> -> vector<16x64xf32>
    %362 = tpu.reciprocal %361 {approx = true} : vector<16x64xf32> -> vector<16x64xf32>
    %363 = arith.mulf %360, %362 : vector<16x64xf32>
    %c0_212 = arith.constant 0 : index
    %c0_213 = arith.constant 0 : index
    %364 = vector.load %arg24[%c0_212, %c0_213] : memref<64x64xf32, #tpu.memory_space<vmem>>, vector<64x64xf32>
    %cst_214 = arith.constant dense<0.000000e+00> : vector<16x64xf32>
    %365 = tpu.matmul %363, %364, %cst_214 {dimension_numbers = #tpu.dot_dimension_numbers<[1], [0], [0], [1], [0, 0, 1, 1], [], []>} : vector<16x64xf32>, vector<64x64xf32>, vector<16x64xf32> -> vector<16x64xf32>
    %c0_215 = arith.constant 0 : index
    %c0_216 = arith.constant 0 : index
    %366 = vector.load %arg25[%c0_215, %c0_216] : memref<1x64xf32, #tpu.memory_space<vmem>>, vector<1x64xf32>
    %367 = vector.broadcast %366 : vector<1x64xf32> to vector<16x64xf32>
    %368 = arith.addf %365, %367 : vector<16x64xf32>
    %c2_217 = arith.constant 2 : index
    %c0_218 = arith.constant 0 : index
    %369 = vector.load %arg26[%c2_217, %c0_218] : memref<6x64xf32, #tpu.memory_space<vmem>>, vector<1x64xf32>
    %c3_219 = arith.constant 3 : index
    %c0_220 = arith.constant 0 : index
    %370 = vector.load %arg26[%c3_219, %c0_220] : memref<6x64xf32, #tpu.memory_space<vmem>>, vector<1x64xf32>
    %371 = arith.addf %343, %368 : vector<16x64xf32>
    %cst_221 = arith.constant dense<0.000000e+00> : vector<16xf32>
    %372 = vector.multi_reduction <add>, %371, %cst_221 [1] : vector<16x64xf32> to vector<16xf32>
    %373 = vector.shape_cast %372 : vector<16xf32> to vector<16x1xf32>
    %cst_222 = arith.constant 6.400000e+01 : f32
    %374 = vector.broadcast %cst_222 : f32 to vector<16x1xf32>
    %375 = arith.divf %373, %374 : vector<16x1xf32>
    %376 = vector.broadcast %375 : vector<16x1xf32> to vector<16x64xf32>
    %377 = arith.subf %371, %376 : vector<16x64xf32>
    %378 = arith.mulf %377, %377 : vector<16x64xf32>
    %cst_223 = arith.constant dense<0.000000e+00> : vector<16xf32>
    %379 = vector.multi_reduction <add>, %378, %cst_223 [1] : vector<16x64xf32> to vector<16xf32>
    %380 = vector.shape_cast %379 : vector<16xf32> to vector<16x1xf32>
    %cst_224 = arith.constant 6.400000e+01 : f32
    %381 = vector.broadcast %cst_224 : f32 to vector<16x1xf32>
    %382 = arith.divf %380, %381 : vector<16x1xf32>
    %cst_225 = arith.constant 9.99999974E-6 : f32
    %383 = vector.broadcast %cst_225 : f32 to vector<16x1xf32>
    %384 = arith.addf %382, %383 : vector<16x1xf32>
    %385 = math.rsqrt %384 : vector<16x1xf32>
    %386 = vector.broadcast %385 : vector<16x1xf32> to vector<16x64xf32>
    %387 = arith.mulf %377, %386 : vector<16x64xf32>
    %388 = vector.broadcast %369 : vector<1x64xf32> to vector<16x64xf32>
    %389 = arith.mulf %387, %388 : vector<16x64xf32>
    %390 = vector.broadcast %370 : vector<1x64xf32> to vector<16x64xf32>
    %391 = arith.addf %389, %390 : vector<16x64xf32>
    %c0_226 = arith.constant 0 : index
    %c0_227 = arith.constant 0 : index
    %392 = vector.load %arg27[%c0_226, %c0_227] : memref<64x128xf32, #tpu.memory_space<vmem>>, vector<64x128xf32>
    %cst_228 = arith.constant dense<0.000000e+00> : vector<16x128xf32>
    %393 = tpu.matmul %391, %392, %cst_228 {dimension_numbers = #tpu.dot_dimension_numbers<[1], [0], [0], [1], [0, 0, 1, 1], [], []>} : vector<16x64xf32>, vector<64x128xf32>, vector<16x128xf32> -> vector<16x128xf32>
    %c0_229 = arith.constant 0 : index
    %c0_230 = arith.constant 0 : index
    %394 = vector.load %arg28[%c0_229, %c0_230] : memref<1x128xf32, #tpu.memory_space<vmem>>, vector<1x128xf32>
    %395 = vector.broadcast %394 : vector<1x128xf32> to vector<16x128xf32>
    %396 = arith.addf %393, %395 : vector<16x128xf32>
    %cst_231 = arith.constant 0.000000e+00 : f32
    %397 = vector.broadcast %cst_231 : f32 to vector<16x128xf32>
    %398 = arith.maximumf %396, %397 : vector<16x128xf32>
    %c0_232 = arith.constant 0 : index
    %c0_233 = arith.constant 0 : index
    %399 = vector.load %arg29[%c0_232, %c0_233] : memref<128x64xf32, #tpu.memory_space<vmem>>, vector<128x64xf32>
    %cst_234 = arith.constant dense<0.000000e+00> : vector<16x64xf32>
    %400 = tpu.matmul %398, %399, %cst_234 {dimension_numbers = #tpu.dot_dimension_numbers<[1], [0], [0], [1], [0, 0, 1, 1], [], []>} : vector<16x128xf32>, vector<128x64xf32>, vector<16x64xf32> -> vector<16x64xf32>
    %c0_235 = arith.constant 0 : index
    %c0_236 = arith.constant 0 : index
    %401 = vector.load %arg30[%c0_235, %c0_236] : memref<1x64xf32, #tpu.memory_space<vmem>>, vector<1x64xf32>
    %402 = vector.broadcast %401 : vector<1x64xf32> to vector<16x64xf32>
    %403 = arith.addf %400, %402 : vector<16x64xf32>
    %c4 = arith.constant 4 : index
    %c0_237 = arith.constant 0 : index
    %404 = vector.load %arg26[%c4, %c0_237] : memref<6x64xf32, #tpu.memory_space<vmem>>, vector<1x64xf32>
    %c5 = arith.constant 5 : index
    %c0_238 = arith.constant 0 : index
    %405 = vector.load %arg26[%c5, %c0_238] : memref<6x64xf32, #tpu.memory_space<vmem>>, vector<1x64xf32>
    %406 = arith.addf %391, %403 : vector<16x64xf32>
    %cst_239 = arith.constant dense<0.000000e+00> : vector<16xf32>
    %407 = vector.multi_reduction <add>, %406, %cst_239 [1] : vector<16x64xf32> to vector<16xf32>
    %408 = vector.shape_cast %407 : vector<16xf32> to vector<16x1xf32>
    %cst_240 = arith.constant 6.400000e+01 : f32
    %409 = vector.broadcast %cst_240 : f32 to vector<16x1xf32>
    %410 = arith.divf %408, %409 : vector<16x1xf32>
    %411 = vector.broadcast %410 : vector<16x1xf32> to vector<16x64xf32>
    %412 = arith.subf %406, %411 : vector<16x64xf32>
    %413 = arith.mulf %412, %412 : vector<16x64xf32>
    %cst_241 = arith.constant dense<0.000000e+00> : vector<16xf32>
    %414 = vector.multi_reduction <add>, %413, %cst_241 [1] : vector<16x64xf32> to vector<16xf32>
    %415 = vector.shape_cast %414 : vector<16xf32> to vector<16x1xf32>
    %cst_242 = arith.constant 6.400000e+01 : f32
    %416 = vector.broadcast %cst_242 : f32 to vector<16x1xf32>
    %417 = arith.divf %415, %416 : vector<16x1xf32>
    %cst_243 = arith.constant 9.99999974E-6 : f32
    %418 = vector.broadcast %cst_243 : f32 to vector<16x1xf32>
    %419 = arith.addf %417, %418 : vector<16x1xf32>
    %420 = math.rsqrt %419 : vector<16x1xf32>
    %421 = vector.broadcast %420 : vector<16x1xf32> to vector<16x64xf32>
    %422 = arith.mulf %412, %421 : vector<16x64xf32>
    %423 = vector.broadcast %404 : vector<1x64xf32> to vector<16x64xf32>
    %424 = arith.mulf %422, %423 : vector<16x64xf32>
    %425 = vector.broadcast %405 : vector<1x64xf32> to vector<16x64xf32>
    %426 = arith.addf %424, %425 : vector<16x64xf32>
    %c0_244 = arith.constant 0 : index
    %c0_245 = arith.constant 0 : index
    %427 = vector.load %arg16[%c0_244, %c0_245] : memref<64x192xf32, #tpu.memory_space<vmem>>, vector<64x192xf32>
    %cst_246 = arith.constant dense<0.000000e+00> : vector<16x192xf32>
    %428 = tpu.matmul %426, %427, %cst_246 {dimension_numbers = #tpu.dot_dimension_numbers<[1], [0], [0], [1], [0, 0, 1, 1], [], []>} : vector<16x64xf32>, vector<64x192xf32>, vector<16x192xf32> -> vector<16x192xf32>
    %c0_247 = arith.constant 0 : index
    %c0_248 = arith.constant 0 : index
    %429 = vector.load %arg17[%c0_247, %c0_248] : memref<1x192xf32, #tpu.memory_space<vmem>>, vector<1x192xf32>
    %430 = vector.broadcast %429 : vector<1x192xf32> to vector<16x192xf32>
    %431 = arith.addf %428, %430 : vector<16x192xf32>
    %432 = vector.extract_strided_slice %431 {offsets = [0, 0], sizes = [16, 64], strides = [1, 1]} : vector<16x192xf32> to vector<16x64xf32>
    %433 = vector.extract_strided_slice %431 {offsets = [0, 64], sizes = [16, 64], strides = [1, 1]} : vector<16x192xf32> to vector<16x64xf32>
    %434 = vector.extract_strided_slice %431 {offsets = [0, 128], sizes = [16, 64], strides = [1, 1]} : vector<16x192xf32> to vector<16x64xf32>
    %c0_249 = arith.constant 0 : index
    %c0_250 = arith.constant 0 : index
    %435 = vector.load %arg5[%c0_249, %c0_250] : memref<128x16xf32, #tpu.memory_space<vmem>>, vector<128x16xf32>
    %c0_251 = arith.constant 0 : index
    %c0_252 = arith.constant 0 : index
    %436 = vector.load %arg6[%c0_251, %c0_252] : memref<128x64xf32, #tpu.memory_space<vmem>>, vector<128x64xf32>
    %cst_253 = arith.constant dense<0.000000e+00> : vector<128x64xf32>
    %437 = tpu.matmul %435, %433, %cst_253 {dimension_numbers = #tpu.dot_dimension_numbers<[1], [0], [0], [1], [0, 0, 1, 1], [], []>} : vector<128x16xf32>, vector<16x64xf32>, vector<128x64xf32> -> vector<128x64xf32>
    %438 = arith.mulf %437, %436 : vector<128x64xf32>
    %cst_254 = arith.constant dense<0.000000e+00> : vector<128x64xf32>
    %439 = tpu.matmul %435, %434, %cst_254 {dimension_numbers = #tpu.dot_dimension_numbers<[1], [0], [0], [1], [0, 0, 1, 1], [], []>} : vector<128x16xf32>, vector<16x64xf32>, vector<128x64xf32> -> vector<128x64xf32>
    %440 = arith.mulf %439, %436 : vector<128x64xf32>
    %c0_255 = arith.constant 0 : index
    %c0_256 = arith.constant 0 : index
    %441 = vector.load %arg3[%c0_255, %c0_256] : memref<16x128xf32, #tpu.memory_space<vmem>>, vector<16x128xf32>
    %cst_257 = arith.constant dense<0.000000e+00> : vector<16x128xf32>
    %442 = tpu.matmul %432, %438, %cst_257 {dimension_numbers = #tpu.dot_dimension_numbers<[1], [1], [0], [0], [0, 0, 1, 0], [], []>} : vector<16x64xf32>, vector<128x64xf32>, vector<16x128xf32> -> vector<16x128xf32>
    %cst_258 = arith.constant 0.353553385 : f32
    %443 = vector.broadcast %cst_258 : f32 to vector<16x128xf32>
    %444 = arith.mulf %442, %443 : vector<16x128xf32>
    %445 = arith.addf %444, %441 : vector<16x128xf32>
    %cst_259 = arith.constant dense<0xFF800000> : vector<16xf32>
    %446 = vector.multi_reduction <maximumf>, %445, %cst_259 [1] : vector<16x128xf32> to vector<16xf32>
    %447 = vector.shape_cast %446 : vector<16xf32> to vector<16x1xf32>
    %448 = vector.broadcast %447 : vector<16x1xf32> to vector<16x128xf32>
    %449 = arith.subf %445, %448 : vector<16x128xf32>
    %450 = math.exp %449 : vector<16x128xf32>
    %cst_260 = arith.constant dense<0.000000e+00> : vector<16x64xf32>
    %451 = tpu.matmul %450, %440, %cst_260 {dimension_numbers = #tpu.dot_dimension_numbers<[1], [0], [0], [1], [0, 0, 1, 1], [], []>} : vector<16x128xf32>, vector<128x64xf32>, vector<16x64xf32> -> vector<16x64xf32>
    %cst_261 = arith.constant dense<0.000000e+00> : vector<16x64xf32>
    %452 = tpu.matmul %450, %436, %cst_261 {dimension_numbers = #tpu.dot_dimension_numbers<[1], [0], [0], [1], [0, 0, 1, 1], [], []>} : vector<16x128xf32>, vector<128x64xf32>, vector<16x64xf32> -> vector<16x64xf32>
    %453 = tpu.reciprocal %452 {approx = true} : vector<16x64xf32> -> vector<16x64xf32>
    %454 = arith.mulf %451, %453 : vector<16x64xf32>
    %c0_262 = arith.constant 0 : index
    %c0_263 = arith.constant 0 : index
    %455 = vector.load %arg18[%c0_262, %c0_263] : memref<64x64xf32, #tpu.memory_space<vmem>>, vector<64x64xf32>
    %cst_264 = arith.constant dense<0.000000e+00> : vector<16x64xf32>
    %456 = tpu.matmul %454, %455, %cst_264 {dimension_numbers = #tpu.dot_dimension_numbers<[1], [0], [0], [1], [0, 0, 1, 1], [], []>} : vector<16x64xf32>, vector<64x64xf32>, vector<16x64xf32> -> vector<16x64xf32>
    %c0_265 = arith.constant 0 : index
    %c0_266 = arith.constant 0 : index
    %457 = vector.load %arg19[%c0_265, %c0_266] : memref<1x64xf32, #tpu.memory_space<vmem>>, vector<1x64xf32>
    %458 = vector.broadcast %457 : vector<1x64xf32> to vector<16x64xf32>
    %459 = arith.addf %456, %458 : vector<16x64xf32>
    %c0_267 = arith.constant 0 : index
    %c0_268 = arith.constant 0 : index
    %460 = vector.load %arg26[%c0_267, %c0_268] : memref<6x64xf32, #tpu.memory_space<vmem>>, vector<1x64xf32>
    %c1_269 = arith.constant 1 : index
    %c0_270 = arith.constant 0 : index
    %461 = vector.load %arg26[%c1_269, %c0_270] : memref<6x64xf32, #tpu.memory_space<vmem>>, vector<1x64xf32>
    %462 = arith.addf %426, %459 : vector<16x64xf32>
    %cst_271 = arith.constant dense<0.000000e+00> : vector<16xf32>
    %463 = vector.multi_reduction <add>, %462, %cst_271 [1] : vector<16x64xf32> to vector<16xf32>
    %464 = vector.shape_cast %463 : vector<16xf32> to vector<16x1xf32>
    %cst_272 = arith.constant 6.400000e+01 : f32
    %465 = vector.broadcast %cst_272 : f32 to vector<16x1xf32>
    %466 = arith.divf %464, %465 : vector<16x1xf32>
    %467 = vector.broadcast %466 : vector<16x1xf32> to vector<16x64xf32>
    %468 = arith.subf %462, %467 : vector<16x64xf32>
    %469 = arith.mulf %468, %468 : vector<16x64xf32>
    %cst_273 = arith.constant dense<0.000000e+00> : vector<16xf32>
    %470 = vector.multi_reduction <add>, %469, %cst_273 [1] : vector<16x64xf32> to vector<16xf32>
    %471 = vector.shape_cast %470 : vector<16xf32> to vector<16x1xf32>
    %cst_274 = arith.constant 6.400000e+01 : f32
    %472 = vector.broadcast %cst_274 : f32 to vector<16x1xf32>
    %473 = arith.divf %471, %472 : vector<16x1xf32>
    %cst_275 = arith.constant 9.99999974E-6 : f32
    %474 = vector.broadcast %cst_275 : f32 to vector<16x1xf32>
    %475 = arith.addf %473, %474 : vector<16x1xf32>
    %476 = math.rsqrt %475 : vector<16x1xf32>
    %477 = vector.broadcast %476 : vector<16x1xf32> to vector<16x64xf32>
    %478 = arith.mulf %468, %477 : vector<16x64xf32>
    %479 = vector.broadcast %460 : vector<1x64xf32> to vector<16x64xf32>
    %480 = arith.mulf %478, %479 : vector<16x64xf32>
    %481 = vector.broadcast %461 : vector<1x64xf32> to vector<16x64xf32>
    %482 = arith.addf %480, %481 : vector<16x64xf32>
    %c0_276 = arith.constant 0 : index
    %c0_277 = arith.constant 0 : index
    %483 = vector.load %arg20[%c0_276, %c0_277] : memref<64x64xf32, #tpu.memory_space<vmem>>, vector<64x64xf32>
    %cst_278 = arith.constant dense<0.000000e+00> : vector<16x64xf32>
    %484 = tpu.matmul %482, %483, %cst_278 {dimension_numbers = #tpu.dot_dimension_numbers<[1], [0], [0], [1], [0, 0, 1, 1], [], []>} : vector<16x64xf32>, vector<64x64xf32>, vector<16x64xf32> -> vector<16x64xf32>
    %c0_279 = arith.constant 0 : index
    %c0_280 = arith.constant 0 : index
    %485 = vector.load %arg21[%c0_279, %c0_280] : memref<1x64xf32, #tpu.memory_space<vmem>>, vector<1x64xf32>
    %486 = vector.broadcast %485 : vector<1x64xf32> to vector<16x64xf32>
    %487 = arith.addf %484, %486 : vector<16x64xf32>
    %c0_281 = arith.constant 0 : index
    %c0_282 = arith.constant 0 : index
    %488 = vector.load %arg6[%c0_281, %c0_282] : memref<128x64xf32, #tpu.memory_space<vmem>>, vector<128x64xf32>
    %c0_283 = arith.constant 0 : index
    %c0_284 = arith.constant 0 : index
    %489 = vector.load %arg4[%c0_283, %c0_284] : memref<16x128xf32, #tpu.memory_space<vmem>>, vector<16x128xf32>
    %cst_285 = arith.constant dense<0.000000e+00> : vector<16x128xf32>
    %490 = tpu.matmul %487, %283, %cst_285 {dimension_numbers = #tpu.dot_dimension_numbers<[1], [1], [0], [0], [0, 0, 1, 0], [], []>} : vector<16x64xf32>, vector<128x64xf32>, vector<16x128xf32> -> vector<16x128xf32>
    %cst_286 = arith.constant 0.353553385 : f32
    %491 = vector.broadcast %cst_286 : f32 to vector<16x128xf32>
    %492 = arith.mulf %490, %491 : vector<16x128xf32>
    %493 = arith.addf %492, %489 : vector<16x128xf32>
    %cst_287 = arith.constant dense<0xFF800000> : vector<16xf32>
    %494 = vector.multi_reduction <maximumf>, %493, %cst_287 [1] : vector<16x128xf32> to vector<16xf32>
    %495 = vector.shape_cast %494 : vector<16xf32> to vector<16x1xf32>
    %496 = vector.broadcast %495 : vector<16x1xf32> to vector<16x128xf32>
    %497 = arith.subf %493, %496 : vector<16x128xf32>
    %498 = math.exp %497 : vector<16x128xf32>
    %cst_288 = arith.constant dense<0.000000e+00> : vector<16x64xf32>
    %499 = tpu.matmul %498, %286, %cst_288 {dimension_numbers = #tpu.dot_dimension_numbers<[1], [0], [0], [1], [0, 0, 1, 1], [], []>} : vector<16x128xf32>, vector<128x64xf32>, vector<16x64xf32> -> vector<16x64xf32>
    %cst_289 = arith.constant dense<0.000000e+00> : vector<16x64xf32>
    %500 = tpu.matmul %498, %488, %cst_289 {dimension_numbers = #tpu.dot_dimension_numbers<[1], [0], [0], [1], [0, 0, 1, 1], [], []>} : vector<16x128xf32>, vector<128x64xf32>, vector<16x64xf32> -> vector<16x64xf32>
    %501 = tpu.reciprocal %500 {approx = true} : vector<16x64xf32> -> vector<16x64xf32>
    %502 = arith.mulf %499, %501 : vector<16x64xf32>
    %c0_290 = arith.constant 0 : index
    %c0_291 = arith.constant 0 : index
    %503 = vector.load %arg24[%c0_290, %c0_291] : memref<64x64xf32, #tpu.memory_space<vmem>>, vector<64x64xf32>
    %cst_292 = arith.constant dense<0.000000e+00> : vector<16x64xf32>
    %504 = tpu.matmul %502, %503, %cst_292 {dimension_numbers = #tpu.dot_dimension_numbers<[1], [0], [0], [1], [0, 0, 1, 1], [], []>} : vector<16x64xf32>, vector<64x64xf32>, vector<16x64xf32> -> vector<16x64xf32>
    %c0_293 = arith.constant 0 : index
    %c0_294 = arith.constant 0 : index
    %505 = vector.load %arg25[%c0_293, %c0_294] : memref<1x64xf32, #tpu.memory_space<vmem>>, vector<1x64xf32>
    %506 = vector.broadcast %505 : vector<1x64xf32> to vector<16x64xf32>
    %507 = arith.addf %504, %506 : vector<16x64xf32>
    %c2_295 = arith.constant 2 : index
    %c0_296 = arith.constant 0 : index
    %508 = vector.load %arg26[%c2_295, %c0_296] : memref<6x64xf32, #tpu.memory_space<vmem>>, vector<1x64xf32>
    %c3_297 = arith.constant 3 : index
    %c0_298 = arith.constant 0 : index
    %509 = vector.load %arg26[%c3_297, %c0_298] : memref<6x64xf32, #tpu.memory_space<vmem>>, vector<1x64xf32>
    %510 = arith.addf %482, %507 : vector<16x64xf32>
    %cst_299 = arith.constant dense<0.000000e+00> : vector<16xf32>
    %511 = vector.multi_reduction <add>, %510, %cst_299 [1] : vector<16x64xf32> to vector<16xf32>
    %512 = vector.shape_cast %511 : vector<16xf32> to vector<16x1xf32>
    %cst_300 = arith.constant 6.400000e+01 : f32
    %513 = vector.broadcast %cst_300 : f32 to vector<16x1xf32>
    %514 = arith.divf %512, %513 : vector<16x1xf32>
    %515 = vector.broadcast %514 : vector<16x1xf32> to vector<16x64xf32>
    %516 = arith.subf %510, %515 : vector<16x64xf32>
    %517 = arith.mulf %516, %516 : vector<16x64xf32>
    %cst_301 = arith.constant dense<0.000000e+00> : vector<16xf32>
    %518 = vector.multi_reduction <add>, %517, %cst_301 [1] : vector<16x64xf32> to vector<16xf32>
    %519 = vector.shape_cast %518 : vector<16xf32> to vector<16x1xf32>
    %cst_302 = arith.constant 6.400000e+01 : f32
    %520 = vector.broadcast %cst_302 : f32 to vector<16x1xf32>
    %521 = arith.divf %519, %520 : vector<16x1xf32>
    %cst_303 = arith.constant 9.99999974E-6 : f32
    %522 = vector.broadcast %cst_303 : f32 to vector<16x1xf32>
    %523 = arith.addf %521, %522 : vector<16x1xf32>
    %524 = math.rsqrt %523 : vector<16x1xf32>
    %525 = vector.broadcast %524 : vector<16x1xf32> to vector<16x64xf32>
    %526 = arith.mulf %516, %525 : vector<16x64xf32>
    %527 = vector.broadcast %508 : vector<1x64xf32> to vector<16x64xf32>
    %528 = arith.mulf %526, %527 : vector<16x64xf32>
    %529 = vector.broadcast %509 : vector<1x64xf32> to vector<16x64xf32>
    %530 = arith.addf %528, %529 : vector<16x64xf32>
    %c0_304 = arith.constant 0 : index
    %c0_305 = arith.constant 0 : index
    %531 = vector.load %arg27[%c0_304, %c0_305] : memref<64x128xf32, #tpu.memory_space<vmem>>, vector<64x128xf32>
    %cst_306 = arith.constant dense<0.000000e+00> : vector<16x128xf32>
    %532 = tpu.matmul %530, %531, %cst_306 {dimension_numbers = #tpu.dot_dimension_numbers<[1], [0], [0], [1], [0, 0, 1, 1], [], []>} : vector<16x64xf32>, vector<64x128xf32>, vector<16x128xf32> -> vector<16x128xf32>
    %c0_307 = arith.constant 0 : index
    %c0_308 = arith.constant 0 : index
    %533 = vector.load %arg28[%c0_307, %c0_308] : memref<1x128xf32, #tpu.memory_space<vmem>>, vector<1x128xf32>
    %534 = vector.broadcast %533 : vector<1x128xf32> to vector<16x128xf32>
    %535 = arith.addf %532, %534 : vector<16x128xf32>
    %cst_309 = arith.constant 0.000000e+00 : f32
    %536 = vector.broadcast %cst_309 : f32 to vector<16x128xf32>
    %537 = arith.maximumf %535, %536 : vector<16x128xf32>
    %c0_310 = arith.constant 0 : index
    %c0_311 = arith.constant 0 : index
    %538 = vector.load %arg29[%c0_310, %c0_311] : memref<128x64xf32, #tpu.memory_space<vmem>>, vector<128x64xf32>
    %cst_312 = arith.constant dense<0.000000e+00> : vector<16x64xf32>
    %539 = tpu.matmul %537, %538, %cst_312 {dimension_numbers = #tpu.dot_dimension_numbers<[1], [0], [0], [1], [0, 0, 1, 1], [], []>} : vector<16x128xf32>, vector<128x64xf32>, vector<16x64xf32> -> vector<16x64xf32>
    %c0_313 = arith.constant 0 : index
    %c0_314 = arith.constant 0 : index
    %540 = vector.load %arg30[%c0_313, %c0_314] : memref<1x64xf32, #tpu.memory_space<vmem>>, vector<1x64xf32>
    %541 = vector.broadcast %540 : vector<1x64xf32> to vector<16x64xf32>
    %542 = arith.addf %539, %541 : vector<16x64xf32>
    %c4_315 = arith.constant 4 : index
    %c0_316 = arith.constant 0 : index
    %543 = vector.load %arg26[%c4_315, %c0_316] : memref<6x64xf32, #tpu.memory_space<vmem>>, vector<1x64xf32>
    %c5_317 = arith.constant 5 : index
    %c0_318 = arith.constant 0 : index
    %544 = vector.load %arg26[%c5_317, %c0_318] : memref<6x64xf32, #tpu.memory_space<vmem>>, vector<1x64xf32>
    %545 = arith.addf %530, %542 : vector<16x64xf32>
    %cst_319 = arith.constant dense<0.000000e+00> : vector<16xf32>
    %546 = vector.multi_reduction <add>, %545, %cst_319 [1] : vector<16x64xf32> to vector<16xf32>
    %547 = vector.shape_cast %546 : vector<16xf32> to vector<16x1xf32>
    %cst_320 = arith.constant 6.400000e+01 : f32
    %548 = vector.broadcast %cst_320 : f32 to vector<16x1xf32>
    %549 = arith.divf %547, %548 : vector<16x1xf32>
    %550 = vector.broadcast %549 : vector<16x1xf32> to vector<16x64xf32>
    %551 = arith.subf %545, %550 : vector<16x64xf32>
    %552 = arith.mulf %551, %551 : vector<16x64xf32>
    %cst_321 = arith.constant dense<0.000000e+00> : vector<16xf32>
    %553 = vector.multi_reduction <add>, %552, %cst_321 [1] : vector<16x64xf32> to vector<16xf32>
    %554 = vector.shape_cast %553 : vector<16xf32> to vector<16x1xf32>
    %cst_322 = arith.constant 6.400000e+01 : f32
    %555 = vector.broadcast %cst_322 : f32 to vector<16x1xf32>
    %556 = arith.divf %554, %555 : vector<16x1xf32>
    %cst_323 = arith.constant 9.99999974E-6 : f32
    %557 = vector.broadcast %cst_323 : f32 to vector<16x1xf32>
    %558 = arith.addf %556, %557 : vector<16x1xf32>
    %559 = math.rsqrt %558 : vector<16x1xf32>
    %560 = vector.broadcast %559 : vector<16x1xf32> to vector<16x64xf32>
    %561 = arith.mulf %551, %560 : vector<16x64xf32>
    %562 = vector.broadcast %543 : vector<1x64xf32> to vector<16x64xf32>
    %563 = arith.mulf %561, %562 : vector<16x64xf32>
    %564 = vector.broadcast %544 : vector<1x64xf32> to vector<16x64xf32>
    %565 = arith.addf %563, %564 : vector<16x64xf32>
    %c0_324 = arith.constant 0 : index
    %c0_325 = arith.constant 0 : index
    %566 = vector.load %arg16[%c0_324, %c0_325] : memref<64x192xf32, #tpu.memory_space<vmem>>, vector<64x192xf32>
    %cst_326 = arith.constant dense<0.000000e+00> : vector<16x192xf32>
    %567 = tpu.matmul %565, %566, %cst_326 {dimension_numbers = #tpu.dot_dimension_numbers<[1], [0], [0], [1], [0, 0, 1, 1], [], []>} : vector<16x64xf32>, vector<64x192xf32>, vector<16x192xf32> -> vector<16x192xf32>
    %c0_327 = arith.constant 0 : index
    %c0_328 = arith.constant 0 : index
    %568 = vector.load %arg17[%c0_327, %c0_328] : memref<1x192xf32, #tpu.memory_space<vmem>>, vector<1x192xf32>
    %569 = vector.broadcast %568 : vector<1x192xf32> to vector<16x192xf32>
    %570 = arith.addf %567, %569 : vector<16x192xf32>
    %571 = vector.extract_strided_slice %570 {offsets = [0, 0], sizes = [16, 64], strides = [1, 1]} : vector<16x192xf32> to vector<16x64xf32>
    %572 = vector.extract_strided_slice %570 {offsets = [0, 64], sizes = [16, 64], strides = [1, 1]} : vector<16x192xf32> to vector<16x64xf32>
    %573 = vector.extract_strided_slice %570 {offsets = [0, 128], sizes = [16, 64], strides = [1, 1]} : vector<16x192xf32> to vector<16x64xf32>
    %c0_329 = arith.constant 0 : index
    %c0_330 = arith.constant 0 : index
    %574 = vector.load %arg5[%c0_329, %c0_330] : memref<128x16xf32, #tpu.memory_space<vmem>>, vector<128x16xf32>
    %c0_331 = arith.constant 0 : index
    %c0_332 = arith.constant 0 : index
    %575 = vector.load %arg6[%c0_331, %c0_332] : memref<128x64xf32, #tpu.memory_space<vmem>>, vector<128x64xf32>
    %cst_333 = arith.constant dense<0.000000e+00> : vector<128x64xf32>
    %576 = tpu.matmul %574, %572, %cst_333 {dimension_numbers = #tpu.dot_dimension_numbers<[1], [0], [0], [1], [0, 0, 1, 1], [], []>} : vector<128x16xf32>, vector<16x64xf32>, vector<128x64xf32> -> vector<128x64xf32>
    %577 = arith.mulf %576, %575 : vector<128x64xf32>
    %cst_334 = arith.constant dense<0.000000e+00> : vector<128x64xf32>
    %578 = tpu.matmul %574, %573, %cst_334 {dimension_numbers = #tpu.dot_dimension_numbers<[1], [0], [0], [1], [0, 0, 1, 1], [], []>} : vector<128x16xf32>, vector<16x64xf32>, vector<128x64xf32> -> vector<128x64xf32>
    %579 = arith.mulf %578, %575 : vector<128x64xf32>
    %c0_335 = arith.constant 0 : index
    %c0_336 = arith.constant 0 : index
    %580 = vector.load %arg3[%c0_335, %c0_336] : memref<16x128xf32, #tpu.memory_space<vmem>>, vector<16x128xf32>
    %cst_337 = arith.constant dense<0.000000e+00> : vector<16x128xf32>
    %581 = tpu.matmul %571, %577, %cst_337 {dimension_numbers = #tpu.dot_dimension_numbers<[1], [1], [0], [0], [0, 0, 1, 0], [], []>} : vector<16x64xf32>, vector<128x64xf32>, vector<16x128xf32> -> vector<16x128xf32>
    %cst_338 = arith.constant 0.353553385 : f32
    %582 = vector.broadcast %cst_338 : f32 to vector<16x128xf32>
    %583 = arith.mulf %581, %582 : vector<16x128xf32>
    %584 = arith.addf %583, %580 : vector<16x128xf32>
    %cst_339 = arith.constant dense<0xFF800000> : vector<16xf32>
    %585 = vector.multi_reduction <maximumf>, %584, %cst_339 [1] : vector<16x128xf32> to vector<16xf32>
    %586 = vector.shape_cast %585 : vector<16xf32> to vector<16x1xf32>
    %587 = vector.broadcast %586 : vector<16x1xf32> to vector<16x128xf32>
    %588 = arith.subf %584, %587 : vector<16x128xf32>
    %589 = math.exp %588 : vector<16x128xf32>
    %cst_340 = arith.constant dense<0.000000e+00> : vector<16x64xf32>
    %590 = tpu.matmul %589, %579, %cst_340 {dimension_numbers = #tpu.dot_dimension_numbers<[1], [0], [0], [1], [0, 0, 1, 1], [], []>} : vector<16x128xf32>, vector<128x64xf32>, vector<16x64xf32> -> vector<16x64xf32>
    %cst_341 = arith.constant dense<0.000000e+00> : vector<16x64xf32>
    %591 = tpu.matmul %589, %575, %cst_341 {dimension_numbers = #tpu.dot_dimension_numbers<[1], [0], [0], [1], [0, 0, 1, 1], [], []>} : vector<16x128xf32>, vector<128x64xf32>, vector<16x64xf32> -> vector<16x64xf32>
    %592 = tpu.reciprocal %591 {approx = true} : vector<16x64xf32> -> vector<16x64xf32>
    %593 = arith.mulf %590, %592 : vector<16x64xf32>
    %c0_342 = arith.constant 0 : index
    %c0_343 = arith.constant 0 : index
    %594 = vector.load %arg18[%c0_342, %c0_343] : memref<64x64xf32, #tpu.memory_space<vmem>>, vector<64x64xf32>
    %cst_344 = arith.constant dense<0.000000e+00> : vector<16x64xf32>
    %595 = tpu.matmul %593, %594, %cst_344 {dimension_numbers = #tpu.dot_dimension_numbers<[1], [0], [0], [1], [0, 0, 1, 1], [], []>} : vector<16x64xf32>, vector<64x64xf32>, vector<16x64xf32> -> vector<16x64xf32>
    %c0_345 = arith.constant 0 : index
    %c0_346 = arith.constant 0 : index
    %596 = vector.load %arg19[%c0_345, %c0_346] : memref<1x64xf32, #tpu.memory_space<vmem>>, vector<1x64xf32>
    %597 = vector.broadcast %596 : vector<1x64xf32> to vector<16x64xf32>
    %598 = arith.addf %595, %597 : vector<16x64xf32>
    %c0_347 = arith.constant 0 : index
    %c0_348 = arith.constant 0 : index
    %599 = vector.load %arg26[%c0_347, %c0_348] : memref<6x64xf32, #tpu.memory_space<vmem>>, vector<1x64xf32>
    %c1_349 = arith.constant 1 : index
    %c0_350 = arith.constant 0 : index
    %600 = vector.load %arg26[%c1_349, %c0_350] : memref<6x64xf32, #tpu.memory_space<vmem>>, vector<1x64xf32>
    %601 = arith.addf %565, %598 : vector<16x64xf32>
    %cst_351 = arith.constant dense<0.000000e+00> : vector<16xf32>
    %602 = vector.multi_reduction <add>, %601, %cst_351 [1] : vector<16x64xf32> to vector<16xf32>
    %603 = vector.shape_cast %602 : vector<16xf32> to vector<16x1xf32>
    %cst_352 = arith.constant 6.400000e+01 : f32
    %604 = vector.broadcast %cst_352 : f32 to vector<16x1xf32>
    %605 = arith.divf %603, %604 : vector<16x1xf32>
    %606 = vector.broadcast %605 : vector<16x1xf32> to vector<16x64xf32>
    %607 = arith.subf %601, %606 : vector<16x64xf32>
    %608 = arith.mulf %607, %607 : vector<16x64xf32>
    %cst_353 = arith.constant dense<0.000000e+00> : vector<16xf32>
    %609 = vector.multi_reduction <add>, %608, %cst_353 [1] : vector<16x64xf32> to vector<16xf32>
    %610 = vector.shape_cast %609 : vector<16xf32> to vector<16x1xf32>
    %cst_354 = arith.constant 6.400000e+01 : f32
    %611 = vector.broadcast %cst_354 : f32 to vector<16x1xf32>
    %612 = arith.divf %610, %611 : vector<16x1xf32>
    %cst_355 = arith.constant 9.99999974E-6 : f32
    %613 = vector.broadcast %cst_355 : f32 to vector<16x1xf32>
    %614 = arith.addf %612, %613 : vector<16x1xf32>
    %615 = math.rsqrt %614 : vector<16x1xf32>
    %616 = vector.broadcast %615 : vector<16x1xf32> to vector<16x64xf32>
    %617 = arith.mulf %607, %616 : vector<16x64xf32>
    %618 = vector.broadcast %599 : vector<1x64xf32> to vector<16x64xf32>
    %619 = arith.mulf %617, %618 : vector<16x64xf32>
    %620 = vector.broadcast %600 : vector<1x64xf32> to vector<16x64xf32>
    %621 = arith.addf %619, %620 : vector<16x64xf32>
    %c0_356 = arith.constant 0 : index
    %c0_357 = arith.constant 0 : index
    %622 = vector.load %arg20[%c0_356, %c0_357] : memref<64x64xf32, #tpu.memory_space<vmem>>, vector<64x64xf32>
    %cst_358 = arith.constant dense<0.000000e+00> : vector<16x64xf32>
    %623 = tpu.matmul %621, %622, %cst_358 {dimension_numbers = #tpu.dot_dimension_numbers<[1], [0], [0], [1], [0, 0, 1, 1], [], []>} : vector<16x64xf32>, vector<64x64xf32>, vector<16x64xf32> -> vector<16x64xf32>
    %c0_359 = arith.constant 0 : index
    %c0_360 = arith.constant 0 : index
    %624 = vector.load %arg21[%c0_359, %c0_360] : memref<1x64xf32, #tpu.memory_space<vmem>>, vector<1x64xf32>
    %625 = vector.broadcast %624 : vector<1x64xf32> to vector<16x64xf32>
    %626 = arith.addf %623, %625 : vector<16x64xf32>
    %c0_361 = arith.constant 0 : index
    %c0_362 = arith.constant 0 : index
    %627 = vector.load %arg6[%c0_361, %c0_362] : memref<128x64xf32, #tpu.memory_space<vmem>>, vector<128x64xf32>
    %c0_363 = arith.constant 0 : index
    %c0_364 = arith.constant 0 : index
    %628 = vector.load %arg4[%c0_363, %c0_364] : memref<16x128xf32, #tpu.memory_space<vmem>>, vector<16x128xf32>
    %cst_365 = arith.constant dense<0.000000e+00> : vector<16x128xf32>
    %629 = tpu.matmul %626, %283, %cst_365 {dimension_numbers = #tpu.dot_dimension_numbers<[1], [1], [0], [0], [0, 0, 1, 0], [], []>} : vector<16x64xf32>, vector<128x64xf32>, vector<16x128xf32> -> vector<16x128xf32>
    %cst_366 = arith.constant 0.353553385 : f32
    %630 = vector.broadcast %cst_366 : f32 to vector<16x128xf32>
    %631 = arith.mulf %629, %630 : vector<16x128xf32>
    %632 = arith.addf %631, %628 : vector<16x128xf32>
    %cst_367 = arith.constant dense<0xFF800000> : vector<16xf32>
    %633 = vector.multi_reduction <maximumf>, %632, %cst_367 [1] : vector<16x128xf32> to vector<16xf32>
    %634 = vector.shape_cast %633 : vector<16xf32> to vector<16x1xf32>
    %635 = vector.broadcast %634 : vector<16x1xf32> to vector<16x128xf32>
    %636 = arith.subf %632, %635 : vector<16x128xf32>
    %637 = math.exp %636 : vector<16x128xf32>
    %cst_368 = arith.constant dense<0.000000e+00> : vector<16x64xf32>
    %638 = tpu.matmul %637, %286, %cst_368 {dimension_numbers = #tpu.dot_dimension_numbers<[1], [0], [0], [1], [0, 0, 1, 1], [], []>} : vector<16x128xf32>, vector<128x64xf32>, vector<16x64xf32> -> vector<16x64xf32>
    %cst_369 = arith.constant dense<0.000000e+00> : vector<16x64xf32>
    %639 = tpu.matmul %637, %627, %cst_369 {dimension_numbers = #tpu.dot_dimension_numbers<[1], [0], [0], [1], [0, 0, 1, 1], [], []>} : vector<16x128xf32>, vector<128x64xf32>, vector<16x64xf32> -> vector<16x64xf32>
    %640 = tpu.reciprocal %639 {approx = true} : vector<16x64xf32> -> vector<16x64xf32>
    %641 = arith.mulf %638, %640 : vector<16x64xf32>
    %c0_370 = arith.constant 0 : index
    %c0_371 = arith.constant 0 : index
    %642 = vector.load %arg24[%c0_370, %c0_371] : memref<64x64xf32, #tpu.memory_space<vmem>>, vector<64x64xf32>
    %cst_372 = arith.constant dense<0.000000e+00> : vector<16x64xf32>
    %643 = tpu.matmul %641, %642, %cst_372 {dimension_numbers = #tpu.dot_dimension_numbers<[1], [0], [0], [1], [0, 0, 1, 1], [], []>} : vector<16x64xf32>, vector<64x64xf32>, vector<16x64xf32> -> vector<16x64xf32>
    %c0_373 = arith.constant 0 : index
    %c0_374 = arith.constant 0 : index
    %644 = vector.load %arg25[%c0_373, %c0_374] : memref<1x64xf32, #tpu.memory_space<vmem>>, vector<1x64xf32>
    %645 = vector.broadcast %644 : vector<1x64xf32> to vector<16x64xf32>
    %646 = arith.addf %643, %645 : vector<16x64xf32>
    %c2_375 = arith.constant 2 : index
    %c0_376 = arith.constant 0 : index
    %647 = vector.load %arg26[%c2_375, %c0_376] : memref<6x64xf32, #tpu.memory_space<vmem>>, vector<1x64xf32>
    %c3_377 = arith.constant 3 : index
    %c0_378 = arith.constant 0 : index
    %648 = vector.load %arg26[%c3_377, %c0_378] : memref<6x64xf32, #tpu.memory_space<vmem>>, vector<1x64xf32>
    %649 = arith.addf %621, %646 : vector<16x64xf32>
    %cst_379 = arith.constant dense<0.000000e+00> : vector<16xf32>
    %650 = vector.multi_reduction <add>, %649, %cst_379 [1] : vector<16x64xf32> to vector<16xf32>
    %651 = vector.shape_cast %650 : vector<16xf32> to vector<16x1xf32>
    %cst_380 = arith.constant 6.400000e+01 : f32
    %652 = vector.broadcast %cst_380 : f32 to vector<16x1xf32>
    %653 = arith.divf %651, %652 : vector<16x1xf32>
    %654 = vector.broadcast %653 : vector<16x1xf32> to vector<16x64xf32>
    %655 = arith.subf %649, %654 : vector<16x64xf32>
    %656 = arith.mulf %655, %655 : vector<16x64xf32>
    %cst_381 = arith.constant dense<0.000000e+00> : vector<16xf32>
    %657 = vector.multi_reduction <add>, %656, %cst_381 [1] : vector<16x64xf32> to vector<16xf32>
    %658 = vector.shape_cast %657 : vector<16xf32> to vector<16x1xf32>
    %cst_382 = arith.constant 6.400000e+01 : f32
    %659 = vector.broadcast %cst_382 : f32 to vector<16x1xf32>
    %660 = arith.divf %658, %659 : vector<16x1xf32>
    %cst_383 = arith.constant 9.99999974E-6 : f32
    %661 = vector.broadcast %cst_383 : f32 to vector<16x1xf32>
    %662 = arith.addf %660, %661 : vector<16x1xf32>
    %663 = math.rsqrt %662 : vector<16x1xf32>
    %664 = vector.broadcast %663 : vector<16x1xf32> to vector<16x64xf32>
    %665 = arith.mulf %655, %664 : vector<16x64xf32>
    %666 = vector.broadcast %647 : vector<1x64xf32> to vector<16x64xf32>
    %667 = arith.mulf %665, %666 : vector<16x64xf32>
    %668 = vector.broadcast %648 : vector<1x64xf32> to vector<16x64xf32>
    %669 = arith.addf %667, %668 : vector<16x64xf32>
    %c0_384 = arith.constant 0 : index
    %c0_385 = arith.constant 0 : index
    %670 = vector.load %arg27[%c0_384, %c0_385] : memref<64x128xf32, #tpu.memory_space<vmem>>, vector<64x128xf32>
    %cst_386 = arith.constant dense<0.000000e+00> : vector<16x128xf32>
    %671 = tpu.matmul %669, %670, %cst_386 {dimension_numbers = #tpu.dot_dimension_numbers<[1], [0], [0], [1], [0, 0, 1, 1], [], []>} : vector<16x64xf32>, vector<64x128xf32>, vector<16x128xf32> -> vector<16x128xf32>
    %c0_387 = arith.constant 0 : index
    %c0_388 = arith.constant 0 : index
    %672 = vector.load %arg28[%c0_387, %c0_388] : memref<1x128xf32, #tpu.memory_space<vmem>>, vector<1x128xf32>
    %673 = vector.broadcast %672 : vector<1x128xf32> to vector<16x128xf32>
    %674 = arith.addf %671, %673 : vector<16x128xf32>
    %cst_389 = arith.constant 0.000000e+00 : f32
    %675 = vector.broadcast %cst_389 : f32 to vector<16x128xf32>
    %676 = arith.maximumf %674, %675 : vector<16x128xf32>
    %c0_390 = arith.constant 0 : index
    %c0_391 = arith.constant 0 : index
    %677 = vector.load %arg29[%c0_390, %c0_391] : memref<128x64xf32, #tpu.memory_space<vmem>>, vector<128x64xf32>
    %cst_392 = arith.constant dense<0.000000e+00> : vector<16x64xf32>
    %678 = tpu.matmul %676, %677, %cst_392 {dimension_numbers = #tpu.dot_dimension_numbers<[1], [0], [0], [1], [0, 0, 1, 1], [], []>} : vector<16x128xf32>, vector<128x64xf32>, vector<16x64xf32> -> vector<16x64xf32>
    %c0_393 = arith.constant 0 : index
    %c0_394 = arith.constant 0 : index
    %679 = vector.load %arg30[%c0_393, %c0_394] : memref<1x64xf32, #tpu.memory_space<vmem>>, vector<1x64xf32>
    %680 = vector.broadcast %679 : vector<1x64xf32> to vector<16x64xf32>
    %681 = arith.addf %678, %680 : vector<16x64xf32>
    %c4_395 = arith.constant 4 : index
    %c0_396 = arith.constant 0 : index
    %682 = vector.load %arg26[%c4_395, %c0_396] : memref<6x64xf32, #tpu.memory_space<vmem>>, vector<1x64xf32>
    %c5_397 = arith.constant 5 : index
    %c0_398 = arith.constant 0 : index
    %683 = vector.load %arg26[%c5_397, %c0_398] : memref<6x64xf32, #tpu.memory_space<vmem>>, vector<1x64xf32>
    %684 = arith.addf %669, %681 : vector<16x64xf32>
    %cst_399 = arith.constant dense<0.000000e+00> : vector<16xf32>
    %685 = vector.multi_reduction <add>, %684, %cst_399 [1] : vector<16x64xf32> to vector<16xf32>
    %686 = vector.shape_cast %685 : vector<16xf32> to vector<16x1xf32>
    %cst_400 = arith.constant 6.400000e+01 : f32
    %687 = vector.broadcast %cst_400 : f32 to vector<16x1xf32>
    %688 = arith.divf %686, %687 : vector<16x1xf32>
    %689 = vector.broadcast %688 : vector<16x1xf32> to vector<16x64xf32>
    %690 = arith.subf %684, %689 : vector<16x64xf32>
    %691 = arith.mulf %690, %690 : vector<16x64xf32>
    %cst_401 = arith.constant dense<0.000000e+00> : vector<16xf32>
    %692 = vector.multi_reduction <add>, %691, %cst_401 [1] : vector<16x64xf32> to vector<16xf32>
    %693 = vector.shape_cast %692 : vector<16xf32> to vector<16x1xf32>
    %cst_402 = arith.constant 6.400000e+01 : f32
    %694 = vector.broadcast %cst_402 : f32 to vector<16x1xf32>
    %695 = arith.divf %693, %694 : vector<16x1xf32>
    %cst_403 = arith.constant 9.99999974E-6 : f32
    %696 = vector.broadcast %cst_403 : f32 to vector<16x1xf32>
    %697 = arith.addf %695, %696 : vector<16x1xf32>
    %698 = math.rsqrt %697 : vector<16x1xf32>
    %699 = vector.broadcast %698 : vector<16x1xf32> to vector<16x64xf32>
    %700 = arith.mulf %690, %699 : vector<16x64xf32>
    %701 = vector.broadcast %682 : vector<1x64xf32> to vector<16x64xf32>
    %702 = arith.mulf %700, %701 : vector<16x64xf32>
    %703 = vector.broadcast %683 : vector<1x64xf32> to vector<16x64xf32>
    %704 = arith.addf %702, %703 : vector<16x64xf32>
    %c0_404 = arith.constant 0 : index
    %c0_405 = arith.constant 0 : index
    %705 = vector.load %arg31[%c0_404, %c0_405] : memref<64x128xf32, #tpu.memory_space<vmem>>, vector<64x128xf32>
    %cst_406 = arith.constant dense<0.000000e+00> : vector<16x128xf32>
    %706 = tpu.matmul %704, %705, %cst_406 {dimension_numbers = #tpu.dot_dimension_numbers<[1], [0], [0], [1], [0, 0, 1, 1], [], []>} : vector<16x64xf32>, vector<64x128xf32>, vector<16x128xf32> -> vector<16x128xf32>
    %c0_407 = arith.constant 0 : index
    %c0_408 = arith.constant 0 : index
    %707 = vector.load %arg32[%c0_407, %c0_408] : memref<1x128xf32, #tpu.memory_space<vmem>>, vector<1x128xf32>
    %708 = vector.broadcast %707 : vector<1x128xf32> to vector<16x128xf32>
    %709 = arith.addf %706, %708 : vector<16x128xf32>
    %c0_409 = arith.constant 0 : index
    %c0_410 = arith.constant 0 : index
    %710 = vector.load %arg33[%c0_409, %c0_410] : memref<16x128xf32, #tpu.memory_space<vmem>>, vector<16x128xf32>
    tpu.vector_store %arg33[%c0_409, %c0_410], %709 {strides = array<i32>} : memref<16x128xf32, #tpu.memory_space<vmem>>, vector<16x128xf32>,
    return
  }
}

</mosaic_0001>

<llo_original>
// kernel: retranet_forward.1
$region0: #{retranet_forward.1}
  #allocation0 [shape = 'u32[]', space=smem, size = 0x4, offset = 0x4, fixed_abs, tag = 'smem constant byte address 0x4 - core index']
  #allocation1 [shape = 'u32[72,128]{1,0:T(1,128)}', space=vmem, size = 0x9000, scoped, tag = 'internal scratch']
  %s0 = inlined_call_operand.smem [shape: u32[34], index: -1, kind: input, shape index: {}]
  %s1 = sld [smem:[%s0]]
  %s2 = scalar_lea.smem %s0, 1
  %s3 = sld [smem:[%s2]]
  %s4 = scalar_lea.smem %s0, 2
  %s5 = sld [smem:[%s4]]
  %s6 = scalar_lea.smem %s0, 3
  %s7 = sld [smem:[%s6]]
  %s8 = scalar_lea.smem %s0, 4
  %s9 = sld [smem:[%s8]]
  %s10 = scalar_lea.smem %s0, 5
  %s11 = sld [smem:[%s10]]
  %s12 = scalar_lea.smem %s0, 6
  %s13 = sld [smem:[%s12]]
  %s14 = scalar_lea.smem %s0, 7
  %s15 = sld [smem:[%s14]]
  %s16 = scalar_lea.smem %s0, 8
  %s17 = sld [smem:[%s16]]
  %s18 = scalar_lea.smem %s0, 9
  %s19 = sld [smem:[%s18]]
  %s20 = scalar_lea.smem %s0, 10
  %s21 = sld [smem:[%s20]]
  %s22 = scalar_lea.smem %s0, 11
  %s23 = sld [smem:[%s22]]
  %s24 = scalar_lea.smem %s0, 12
  %s25 = sld [smem:[%s24]]
  %s26 = scalar_lea.smem %s0, 13
  %s27 = sld [smem:[%s26]]
  %s28 = scalar_lea.smem %s0, 14
  %s29 = sld [smem:[%s28]]
  %s30 = scalar_lea.smem %s0, 15
  %s31 = sld [smem:[%s30]]
  %s32 = scalar_lea.smem %s0, 16
  %s33 = sld [smem:[%s32]]
  %s34 = scalar_lea.smem %s0, 17
  %s35 = sld [smem:[%s34]]
  %s36 = scalar_lea.smem %s0, 18
  %s37 = sld [smem:[%s36]]
  %s38 = scalar_lea.smem %s0, 19
  %s39 = sld [smem:[%s38]]
  %s40 = scalar_lea.smem %s0, 20
  %s41 = sld [smem:[%s40]]
  %s42 = scalar_lea.smem %s0, 21
  %s43 = sld [smem:[%s42]]
  %s44 = scalar_lea.smem %s0, 22
  %s45 = sld [smem:[%s44]]
  %s46 = scalar_lea.smem %s0, 23
  %s47 = sld [smem:[%s46]]
  %s48 = scalar_lea.smem %s0, 24
  %s49 = sld [smem:[%s48]]
  %s50 = scalar_lea.smem %s0, 25
  %s51 = sld [smem:[%s50]]
  %s52 = scalar_lea.smem %s0, 26
  %s53 = sld [smem:[%s52]]
  %s54 = scalar_lea.smem %s0, 27
  %s55 = sld [smem:[%s54]]
  %s56 = scalar_lea.smem %s0, 28
  %s57 = sld [smem:[%s56]]
  %s58 = scalar_lea.smem %s0, 29
  %s59 = sld [smem:[%s58]]
  %s60 = scalar_lea.smem %s0, 30
  %s61 = sld [smem:[%s60]]
  %s62 = scalar_lea.smem %s0, 31
  %s63 = sld [smem:[%s62]]
  %s64 = scalar_lea.smem %s0, 32
  %s65 = sld [smem:[%s64]]
  %s66 = scalar_lea.smem %s0, 33
  %s67 = sld [smem:[%s66]]
  %s68 = sld [smem:[#allocation0]]
  $region142: #{retranet_forward.1} parent=0
    _
  %s70 = ssub.s32 1, %s68
  %s71 = scalar_select 0, %s70, %s68
  // Predicated region
  $region2: #{retranet_forward.1} parent=0 // pred_check
    _
  $region3: #{retranet_forward.1} parent=0 // pred_check_branch
    %73 = sbr.rel (0) target = $region5
  $region4: #{retranet_forward.1} parent=0 // pred_region
    _
  $region5: #{retranet_forward.1} parent=0 // pred_fallthru
    _
  // Predicated region
  $region6: #{retranet_forward.1} parent=0 // pred_check
    _
  $region7: #{retranet_forward.1} parent=0 // pred_check_branch
    %75 = sbr.rel (0) target = $region9
  $region8: #{retranet_forward.1} parent=0 // pred_region
    _
  $region9: #{retranet_forward.1} parent=0 // pred_fallthru
    _
  // Predicated region
  $region10: #{retranet_forward.1} parent=0 // pred_check
    _
  $region11: #{retranet_forward.1} parent=0 // pred_check_branch
    %77 = sbr.rel (0) target = $region13
  $region12: #{retranet_forward.1} parent=0 // pred_region
    _
  $region13: #{retranet_forward.1} parent=0 // pred_fallthru
    _
  // Predicated region
  $region14: #{retranet_forward.1} parent=0 // pred_check
    _
  $region15: #{retranet_forward.1} parent=0 // pred_check_branch
    %79 = sbr.rel (0) target = $region17
  $region16: #{retranet_forward.1} parent=0 // pred_region
    _
  $region17: #{retranet_forward.1} parent=0 // pred_fallthru
    _
  // Predicated region
  $region18: #{retranet_forward.1} parent=0 // pred_check
    _
  $region19: #{retranet_forward.1} parent=0 // pred_check_branch
    %81 = sbr.rel (0) target = $region21
  $region20: #{retranet_forward.1} parent=0 // pred_region
    _
  $region21: #{retranet_forward.1} parent=0 // pred_fallthru
    _
  // Predicated region
  $region22: #{retranet_forward.1} parent=0 // pred_check
    _
  $region23: #{retranet_forward.1} parent=0 // pred_check_branch
    %83 = sbr.rel (0) target = $region25
  $region24: #{retranet_forward.1} parent=0 // pred_region
    _
  $region25: #{retranet_forward.1} parent=0 // pred_fallthru
    _
  // Predicated region
  $region26: #{retranet_forward.1} parent=0 // pred_check
    _
  $region27: #{retranet_forward.1} parent=0 // pred_check_branch
    %85 = sbr.rel (0) target = $region29
  $region28: #{retranet_forward.1} parent=0 // pred_region
    _
  $region29: #{retranet_forward.1} parent=0 // pred_fallthru
    _
  // Predicated region
  $region30: #{retranet_forward.1} parent=0 // pred_check
    _
  $region31: #{retranet_forward.1} parent=0 // pred_check_branch
    %87 = sbr.rel (0) target = $region33
  $region32: #{retranet_forward.1} parent=0 // pred_region
    _
  $region33: #{retranet_forward.1} parent=0 // pred_fallthru
    _
  // Predicated region
  $region34: #{retranet_forward.1} parent=0 // pred_check
    _
  $region35: #{retranet_forward.1} parent=0 // pred_check_branch
    %89 = sbr.rel (0) target = $region37
  $region36: #{retranet_forward.1} parent=0 // pred_region
    _
  $region37: #{retranet_forward.1} parent=0 // pred_fallthru
    _
  // Predicated region
  $region38: #{retranet_forward.1} parent=0 // pred_check
    _
  $region39: #{retranet_forward.1} parent=0 // pred_check_branch
    %91 = sbr.rel (0) target = $region41
  $region40: #{retranet_forward.1} parent=0 // pred_region
    _
  $region41: #{retranet_forward.1} parent=0 // pred_fallthru
    _
  // Predicated region
  $region42: #{retranet_forward.1} parent=0 // pred_check
    _
  $region43: #{retranet_forward.1} parent=0 // pred_check_branch
    %93 = sbr.rel (0) target = $region45
  $region44: #{retranet_forward.1} parent=0 // pred_region
    _
  $region45: #{retranet_forward.1} parent=0 // pred_fallthru
    _
  // Predicated region
  $region46: #{retranet_forward.1} parent=0 // pred_check
    _
  $region47: #{retranet_forward.1} parent=0 // pred_check_branch
    %95 = sbr.rel (0) target = $region49
  $region48: #{retranet_forward.1} parent=0 // pred_region
    _
  $region49: #{retranet_forward.1} parent=0 // pred_fallthru
    _
  // Predicated region
  $region50: #{retranet_forward.1} parent=0 // pred_check
    _
  $region51: #{retranet_forward.1} parent=0 // pred_check_branch
    %97 = sbr.rel (0) target = $region53
  $region52: #{retranet_forward.1} parent=0 // pred_region
    _
  $region53: #{retranet_forward.1} parent=0 // pred_fallthru
    _
  // Predicated region
  $region54: #{retranet_forward.1} parent=0 // pred_check
    _
  $region55: #{retranet_forward.1} parent=0 // pred_check_branch
    %99 = sbr.rel (0) target = $region57
  $region56: #{retranet_forward.1} parent=0 // pred_region
    _
  $region57: #{retranet_forward.1} parent=0 // pred_fallthru
    _
  // Predicated region
  $region58: #{retranet_forward.1} parent=0 // pred_check
    _
  $region59: #{retranet_forward.1} parent=0 // pred_check_branch
    %101 = sbr.rel (0) target = $region61
  $region60: #{retranet_forward.1} parent=0 // pred_region
    _
  $region61: #{retranet_forward.1} parent=0 // pred_fallthru
    _
  // Predicated region
  $region62: #{retranet_forward.1} parent=0 // pred_check
    _
  $region63: #{retranet_forward.1} parent=0 // pred_check_branch
    %103 = sbr.rel (0) target = $region65
  $region64: #{retranet_forward.1} parent=0 // pred_region
    _
  $region65: #{retranet_forward.1} parent=0 // pred_fallthru
    _
  // Predicated region
  $region66: #{retranet_forward.1} parent=0 // pred_check
    _
  $region67: #{retranet_forward.1} parent=0 // pred_check_branch
    %105 = sbr.rel (0) target = $region69
  $region68: #{retranet_forward.1} parent=0 // pred_region
    _
  $region69: #{retranet_forward.1} parent=0 // pred_fallthru
    _
  // Predicated region
  $region70: #{retranet_forward.1} parent=0 // pred_check
    _
  $region71: #{retranet_forward.1} parent=0 // pred_check_branch
    %107 = sbr.rel (0) target = $region73
  $region72: #{retranet_forward.1} parent=0 // pred_region
    _
  $region73: #{retranet_forward.1} parent=0 // pred_fallthru
    _
  // Predicated region
  $region74: #{retranet_forward.1} parent=0 // pred_check
    _
  $region75: #{retranet_forward.1} parent=0 // pred_check_branch
    %109 = sbr.rel (0) target = $region77
  $region76: #{retranet_forward.1} parent=0 // pred_region
    _
  $region77: #{retranet_forward.1} parent=0 // pred_fallthru
    _
  // Predicated region
  $region78: #{retranet_forward.1} parent=0 // pred_check
    _
  $region79: #{retranet_forward.1} parent=0 // pred_check_branch
    %111 = sbr.rel (0) target = $region81
  $region80: #{retranet_forward.1} parent=0 // pred_region
    _
  $region81: #{retranet_forward.1} parent=0 // pred_fallthru
    _
  // Predicated region
  $region82: #{retranet_forward.1} parent=0 // pred_check
    _
  $region83: #{retranet_forward.1} parent=0 // pred_check_branch
    %113 = sbr.rel (0) target = $region85
  $region84: #{retranet_forward.1} parent=0 // pred_region
    _
  $region85: #{retranet_forward.1} parent=0 // pred_fallthru
    _
  // Predicated region
  $region86: #{retranet_forward.1} parent=0 // pred_check
    _
  $region87: #{retranet_forward.1} parent=0 // pred_check_branch
    %115 = sbr.rel (0) target = $region89
  $region88: #{retranet_forward.1} parent=0 // pred_region
    _
  $region89: #{retranet_forward.1} parent=0 // pred_fallthru
    _
  // Predicated region
  $region90: #{retranet_forward.1} parent=0 // pred_check
    _
  $region91: #{retranet_forward.1} parent=0 // pred_check_branch
    %117 = sbr.rel (0) target = $region93
  $region92: #{retranet_forward.1} parent=0 // pred_region
    _
  $region93: #{retranet_forward.1} parent=0 // pred_fallthru
    _
  // Predicated region
  $region94: #{retranet_forward.1} parent=0 // pred_check
    _
  $region95: #{retranet_forward.1} parent=0 // pred_check_branch
    %119 = sbr.rel (0) target = $region97
  $region96: #{retranet_forward.1} parent=0 // pred_region
    _
  $region97: #{retranet_forward.1} parent=0 // pred_fallthru
    _
  // Predicated region
  $region98: #{retranet_forward.1} parent=0 // pred_check
    _
  $region99: #{retranet_forward.1} parent=0 // pred_check_branch
    %121 = sbr.rel (0) target = $region101
  $region100: #{retranet_forward.1} parent=0 // pred_region
    _
  $region101: #{retranet_forward.1} parent=0 // pred_fallthru
    _
  // Predicated region
  $region102: #{retranet_forward.1} parent=0 // pred_check
    _
  $region103: #{retranet_forward.1} parent=0 // pred_check_branch
    %123 = sbr.rel (0) target = $region105
  $region104: #{retranet_forward.1} parent=0 // pred_region
    _
  $region105: #{retranet_forward.1} parent=0 // pred_fallthru
    _
  // Predicated region
  $region106: #{retranet_forward.1} parent=0 // pred_check
    _
  $region107: #{retranet_forward.1} parent=0 // pred_check_branch
    %125 = sbr.rel (0) target = $region109
  $region108: #{retranet_forward.1} parent=0 // pred_region
    _
  $region109: #{retranet_forward.1} parent=0 // pred_fallthru
    _
  // Predicated region
  $region110: #{retranet_forward.1} parent=0 // pred_check
    _
  $region111: #{retranet_forward.1} parent=0 // pred_check_branch
    %127 = sbr.rel (0) target = $region113
  $region112: #{retranet_forward.1} parent=0 // pred_region
    _
  $region113: #{retranet_forward.1} parent=0 // pred_fallthru
    _
  // Predicated region
  $region114: #{retranet_forward.1} parent=0 // pred_check
    _
  $region115: #{retranet_forward.1} parent=0 // pred_check_branch
    %129 = sbr.rel (0) target = $region117
  $region116: #{retranet_forward.1} parent=0 // pred_region
    _
  $region117: #{retranet_forward.1} parent=0 // pred_fallthru
    _
  // Predicated region
  $region118: #{retranet_forward.1} parent=0 // pred_check
    _
  $region119: #{retranet_forward.1} parent=0 // pred_check_branch
    %131 = sbr.rel (0) target = $region121
  $region120: #{retranet_forward.1} parent=0 // pred_region
    _
  $region121: #{retranet_forward.1} parent=0 // pred_fallthru
    _
  // Predicated region
  $region122: #{retranet_forward.1} parent=0 // pred_check
    _
  $region123: #{retranet_forward.1} parent=0 // pred_check_branch
    %133 = sbr.rel (0) target = $region125
  $region124: #{retranet_forward.1} parent=0 // pred_region
    _
  $region125: #{retranet_forward.1} parent=0 // pred_fallthru
    _
  // Predicated region
  $region126: #{retranet_forward.1} parent=0 // pred_check
    _
  $region127: #{retranet_forward.1} parent=0 // pred_check_branch
    %135 = sbr.rel (0) target = $region129
  $region128: #{retranet_forward.1} parent=0 // pred_region
    _
  $region129: #{retranet_forward.1} parent=0 // pred_fallthru
    _
  // Predicated region
  $region130: #{retranet_forward.1} parent=0 // pred_check
    _
  $region131: #{retranet_forward.1} parent=0 // pred_check_branch
    %137 = sbr.rel (0) target = $region133
  $region132: #{retranet_forward.1} parent=0 // pred_region
    _
  $region133: #{retranet_forward.1} parent=0 // pred_fallthru
    _
  %v138 = vld [vmem:[%s1] sm:$0xff]
  %v139 = vld [vmem:[%s1 + $0x8] sm:$0xff]
  %v140 = vld [vmem:[%s15] sm:$0xff]
  %v141 = vld [vmem:[%s15 + $0x8] sm:$0xff]
  %v142 = vld [vmem:[%s15 + $0x10] sm:$0xff]
  %v143 = vld [vmem:[%s15 + $0x18] sm:$0xff]
  %v144 = vld [vmem:[%s15 + $0x20] sm:$0xff]
  %v145 = vld [vmem:[%s15 + $0x28] sm:$0xff]
  %v146 = vld [vmem:[%s15 + $0x30] sm:$0xff]
  %v147 = vld [vmem:[%s15 + $0x38] sm:$0xff]
  %v148 = vld [vmem:[%s15 + $0x40] sm:$0xff]
  %v149 = vld [vmem:[%s15 + $0x48] sm:$0xff]
  %v150 = vld [vmem:[%s15 + $0x50] sm:$0xff]
  %v151 = vld [vmem:[%s15 + $0x58] sm:$0xff]
  %v152 = vld [vmem:[%s15 + $0x60] sm:$0xff]
  %v153 = vld [vmem:[%s15 + $0x68] sm:$0xff]
  %v154 = vld [vmem:[%s15 + $0x70] sm:$0xff]
  %v155 = vld [vmem:[%s15 + $0x78] sm:$0xff]
  %v156 = vld [vmem:[%s17] sm:$0x3]
  %v158 = vperm.slane %v156, 0
  %v159 = vperm.slane %v156, 1
  %vm162 = vcmask 523264
  %v164 = vsel %vm162, %v138, 0
  %v167 = vsel %vm162, %v139, 0
  %169 = vmatpush.msra.mxu0 0.0
  %170 = vmatpush.msra.mxu0 0.0
  %171 = vmatpush.msra.mxu0 0.0
  %172 = vmatpush.msra.mxu0 0.0
  %173 = vmatpush.msra.mxu0 0.0
  %174 = vmatpush.msra.mxu0 0.0
  %175 = vmatpush.msra.mxu0 0.0
  %176 = vmatpush.msra.mxu0 0.0
  %177 = vmatpush.msra.mxu0 %v154
  %178 = vmatpush.msra.mxu0 %v152
  %179 = vmatpush.msra.mxu0 %v150
  %180 = vmatpush.msra.mxu0 %v148
  %181 = vmatpush.msra.mxu0 %v146
  %182 = vmatpush.msra.mxu0 %v144
  %183 = vmatpush.msra.mxu0 %v142
  %184 = vmatpush.msra.mxu0 %v140
  %185 = vmatmul.f32.gmra.mxu0 %v164
  %v186 = vpop.f32.mrf.mxu0
  %v187 = vadd.f32 %v158, %v186
  %188 = vmatmul.f32.gmra.mxu0 %v167
  %v189 = vpop.f32.mrf.mxu0
  %v190 = vadd.f32 %v158, %v189
  %191 = vdwg.mxu0
  %192 = vmatpush.msra.mxu0 0.0
  %193 = vmatpush.msra.mxu0 0.0
  %194 = vmatpush.msra.mxu0 0.0
  %195 = vmatpush.msra.mxu0 0.0
  %196 = vmatpush.msra.mxu0 0.0
  %197 = vmatpush.msra.mxu0 0.0
  %198 = vmatpush.msra.mxu0 0.0
  %199 = vmatpush.msra.mxu0 0.0
  %200 = vmatpush.msra.mxu0 %v155
  %201 = vmatpush.msra.mxu0 %v153
  %202 = vmatpush.msra.mxu0 %v151
  %203 = vmatpush.msra.mxu0 %v149
  %204 = vmatpush.msra.mxu0 %v147
  %205 = vmatpush.msra.mxu0 %v145
  %206 = vmatpush.msra.mxu0 %v143
  %207 = vmatpush.msra.mxu0 %v141
  %208 = vmatmul.f32.gmra.mxu0 %v164
  %v209 = vpop.f32.mrf.mxu0
  %v210 = vadd.f32 %v159, %v209
  %211 = vmatmul.f32.gmra.mxu0 %v167
  %v212 = vpop.f32.mrf.mxu0
  %v213 = vadd.f32 %v159, %v212
  %214 = vdwg.mxu0
  %v215 = vld [vmem:[%s11] sm:$0xff]
  %v216 = vld [vmem:[%s11 + $0x8] sm:$0xff]
  %v217 = vld [vmem:[%s11 + $0x10] sm:$0xff]
  %v218 = vld [vmem:[%s11 + $0x18] sm:$0xff]
  %v219 = vld [vmem:[%s11 + $0x20] sm:$0xff]
  %v220 = vld [vmem:[%s11 + $0x28] sm:$0xff]
  %v221 = vld [vmem:[%s11 + $0x30] sm:$0xff]
  %v222 = vld [vmem:[%s11 + $0x38] sm:$0xff]
  %v223 = vld [vmem:[%s11 + $0x40] sm:$0xff]
  %v224 = vld [vmem:[%s11 + $0x48] sm:$0xff]
  %v225 = vld [vmem:[%s11 + $0x50] sm:$0xff]
  %v226 = vld [vmem:[%s11 + $0x58] sm:$0xff]
  %v227 = vld [vmem:[%s11 + $0x60] sm:$0xff]
  %v228 = vld [vmem:[%s11 + $0x68] sm:$0xff]
  %v229 = vld [vmem:[%s11 + $0x70] sm:$0xff]
  %v230 = vld [vmem:[%s11 + $0x78] sm:$0xff]
  %v231 = vld [vmem:[%s13] sm:$0xff]
  %v232 = vld [vmem:[%s13 + $0x8] sm:$0xff]
  %v233 = vld [vmem:[%s13 + $0x10] sm:$0xff]
  %v234 = vld [vmem:[%s13 + $0x18] sm:$0xff]
  %v235 = vld [vmem:[%s13 + $0x20] sm:$0xff]
  %v236 = vld [vmem:[%s13 + $0x28] sm:$0xff]
  %v237 = vld [vmem:[%s13 + $0x30] sm:$0xff]
  %v238 = vld [vmem:[%s13 + $0x38] sm:$0xff]
  %v239 = vld [vmem:[%s13 + $0x40] sm:$0xff]
  %v240 = vld [vmem:[%s13 + $0x48] sm:$0xff]
  %v241 = vld [vmem:[%s13 + $0x50] sm:$0xff]
  %v242 = vld [vmem:[%s13 + $0x58] sm:$0xff]
  %v243 = vld [vmem:[%s13 + $0x60] sm:$0xff]
  %v244 = vld [vmem:[%s13 + $0x68] sm:$0xff]
  %v245 = vld [vmem:[%s13 + $0x70] sm:$0xff]
  %v246 = vld [vmem:[%s13 + $0x78] sm:$0xff]
  %249 = vrot.lane.b32.xlu0 %v187, 64
  %v250 = vpop.permute.xlu0 %249
  %251 = vrot.lane.b32.xlu0 %v190, 64
  %v252 = vpop.permute.xlu0 %251
  %vm255 = vcmask 130048
  %v257 = vsel %vm255, %v215, 0
  %v260 = vsel %vm255, %v216, 0
  %v263 = vsel %vm255, %v217, 0
  %v266 = vsel %vm255, %v218, 0
  %v269 = vsel %vm255, %v219, 0
  %v272 = vsel %vm255, %v220, 0
  %v275 = vsel %vm255, %v221, 0
  %v278 = vsel %vm255, %v222, 0
  %v281 = vsel %vm255, %v223, 0
  %v284 = vsel %vm255, %v224, 0
  %v287 = vsel %vm255, %v225, 0
  %v290 = vsel %vm255, %v226, 0
  %v293 = vsel %vm255, %v227, 0
  %v296 = vsel %vm255, %v228, 0
  %v299 = vsel %vm255, %v229, 0
  %v302 = vsel %vm255, %v230, 0
  %304 = vmatpush.msra.mxu0 0.0
  %305 = vmatpush.msra.mxu0 0.0
  %306 = vmatpush.msra.mxu0 0.0
  %307 = vmatpush.msra.mxu0 0.0
  %308 = vmatpush.msra.mxu0 0.0
  %309 = vmatpush.msra.mxu0 0.0
  %310 = vmatpush.msra.mxu0 0.0
  %311 = vmatpush.msra.mxu0 0.0
  %312 = vmatpush.msra.mxu0 0.0
  %313 = vmatpush.msra.mxu0 0.0
  %314 = vmatpush.msra.mxu0 0.0
  %315 = vmatpush.msra.mxu0 0.0
  %316 = vmatpush.msra.mxu0 0.0
  %317 = vmatpush.msra.mxu0 0.0
  %318 = vmatpush.msra.mxu0 %v252
  %319 = vmatpush.msra.mxu0 %v250
  %320 = vmatmul.f32.gmra.mxu0 %v257
  %v321 = vpop.f32.mrf.mxu0
  %v322 = vadd.f32 0.0, %v321
  %323 = vmatmul.f32.gmra.mxu0 %v260
  %v324 = vpop.f32.mrf.mxu0
  %v325 = vadd.f32 0.0, %v324
  %326 = vmatmul.f32.gmra.mxu0 %v263
  %v327 = vpop.f32.mrf.mxu0
  %v328 = vadd.f32 0.0, %v327
  %329 = vmatmul.f32.gmra.mxu0 %v266
  %v330 = vpop.f32.mrf.mxu0
  %v331 = vadd.f32 0.0, %v330
  %332 = vmatmul.f32.gmra.mxu0 %v269
  %v333 = vpop.f32.mrf.mxu0
  %v334 = vadd.f32 0.0, %v333
  %335 = vmatmul.f32.gmra.mxu0 %v272
  %v336 = vpop.f32.mrf.mxu0
  %v337 = vadd.f32 0.0, %v336
  %338 = vmatmul.f32.gmra.mxu0 %v275
  %v339 = vpop.f32.mrf.mxu0
  %v340 = vadd.f32 0.0, %v339
  %341 = vmatmul.f32.gmra.mxu0 %v278
  %v342 = vpop.f32.mrf.mxu0
  %v343 = vadd.f32 0.0, %v342
  %344 = vmatmul.f32.gmra.mxu0 %v281
  %v345 = vpop.f32.mrf.mxu0
  %v346 = vadd.f32 0.0, %v345
  %347 = vmatmul.f32.gmra.mxu0 %v284
  %v348 = vpop.f32.mrf.mxu0
  %v349 = vadd.f32 0.0, %v348
  %350 = vmatmul.f32.gmra.mxu0 %v287
  %v351 = vpop.f32.mrf.mxu0
  %v352 = vadd.f32 0.0, %v351
  %353 = vmatmul.f32.gmra.mxu0 %v290
  %v354 = vpop.f32.mrf.mxu0
  %v355 = vadd.f32 0.0, %v354
  %356 = vmatmul.f32.gmra.mxu0 %v293
  %v357 = vpop.f32.mrf.mxu0
  %v358 = vadd.f32 0.0, %v357
  %359 = vmatmul.f32.gmra.mxu0 %v296
  %v360 = vpop.f32.mrf.mxu0
  %v361 = vadd.f32 0.0, %v360
  %362 = vmatmul.f32.gmra.mxu0 %v299
  %v363 = vpop.f32.mrf.mxu0
  %v364 = vadd.f32 0.0, %v363
  %365 = vmatmul.f32.gmra.mxu0 %v302
  %v366 = vpop.f32.mrf.mxu0
  %v367 = vadd.f32 0.0, %v366
  %368 = vdwg.mxu0
  %v369 = vmul.f32 %v322, %v231
  %v370 = vmul.f32 %v325, %v232
  %v371 = vmul.f32 %v328, %v233
  %v372 = vmul.f32 %v331, %v234
  %v373 = vmul.f32 %v334, %v235
  %v374 = vmul.f32 %v337, %v236
  %v375 = vmul.f32 %v340, %v237
  %v376 = vmul.f32 %v343, %v238
  %v377 = vmul.f32 %v346, %v239
  %v378 = vmul.f32 %v349, %v240
  %v379 = vmul.f32 %v352, %v241
  %v380 = vmul.f32 %v355, %v242
  %v381 = vmul.f32 %v358, %v243
  %v382 = vmul.f32 %v361, %v244
  %v383 = vmul.f32 %v364, %v245
  %v384 = vmul.f32 %v367, %v246
  %385 = vmatpush.msra.mxu0 0.0
  %386 = vmatpush.msra.mxu0 0.0
  %387 = vmatpush.msra.mxu0 0.0
  %388 = vmatpush.msra.mxu0 0.0
  %389 = vmatpush.msra.mxu0 0.0
  %390 = vmatpush.msra.mxu0 0.0
  %391 = vmatpush.msra.mxu0 0.0
  %392 = vmatpush.msra.mxu0 0.0
  %393 = vmatpush.msra.mxu0 0.0
  %394 = vmatpush.msra.mxu0 0.0
  %395 = vmatpush.msra.mxu0 0.0
  %396 = vmatpush.msra.mxu0 0.0
  %397 = vmatpush.msra.mxu0 0.0
  %398 = vmatpush.msra.mxu0 0.0
  %399 = vmatpush.msra.mxu0 %v213
  %400 = vmatpush.msra.mxu0 %v210
  %401 = vmatmul.f32.gmra.mxu0 %v257
  %v402 = vpop.f32.mrf.mxu0
  %v403 = vadd.f32 0.0, %v402
  %404 = vmatmul.f32.gmra.mxu0 %v260
  %v405 = vpop.f32.mrf.mxu0
  %v406 = vadd.f32 0.0, %v405
  %407 = vmatmul.f32.gmra.mxu0 %v263
  %v408 = vpop.f32.mrf.mxu0
  %v409 = vadd.f32 0.0, %v408
  %410 = vmatmul.f32.gmra.mxu0 %v266
  %v411 = vpop.f32.mrf.mxu0
  %v412 = vadd.f32 0.0, %v411
  %413 = vmatmul.f32.gmra.mxu0 %v269
  %v414 = vpop.f32.mrf.mxu0
  %v415 = vadd.f32 0.0, %v414
  %416 = vmatmul.f32.gmra.mxu0 %v272
  %v417 = vpop.f32.mrf.mxu0
  %v418 = vadd.f32 0.0, %v417
  %419 = vmatmul.f32.gmra.mxu0 %v275
  %v420 = vpop.f32.mrf.mxu0
  %v421 = vadd.f32 0.0, %v420
  %422 = vmatmul.f32.gmra.mxu0 %v278
  %v423 = vpop.f32.mrf.mxu0
  %v424 = vadd.f32 0.0, %v423
  %425 = vmatmul.f32.gmra.mxu0 %v281
  %v426 = vpop.f32.mrf.mxu0
  %v427 = vadd.f32 0.0, %v426
  %428 = vmatmul.f32.gmra.mxu0 %v284
  %v429 = vpop.f32.mrf.mxu0
  %v430 = vadd.f32 0.0, %v429
  %431 = vmatmul.f32.gmra.mxu0 %v287
  %v432 = vpop.f32.mrf.mxu0
  %v433 = vadd.f32 0.0, %v432
  %434 = vmatmul.f32.gmra.mxu0 %v290
  %v435 = vpop.f32.mrf.mxu0
  %v436 = vadd.f32 0.0, %v435
  %437 = vmatmul.f32.gmra.mxu0 %v293
  %v438 = vpop.f32.mrf.mxu0
  %v439 = vadd.f32 0.0, %v438
  %440 = vmatmul.f32.gmra.mxu0 %v296
  %v441 = vpop.f32.mrf.mxu0
  %v442 = vadd.f32 0.0, %v441
  %443 = vmatmul.f32.gmra.mxu0 %v299
  %v444 = vpop.f32.mrf.mxu0
  %v445 = vadd.f32 0.0, %v444
  %446 = vmatmul.f32.gmra.mxu0 %v302
  %v447 = vpop.f32.mrf.mxu0
  %v448 = vadd.f32 0.0, %v447
  %449 = vdwg.mxu0
  %v450 = vmul.f32 %v403, %v231
  %v451 = vmul.f32 %v406, %v232
  %v452 = vmul.f32 %v409, %v233
  %v453 = vmul.f32 %v412, %v234
  %v454 = vmul.f32 %v415, %v235
  %v455 = vmul.f32 %v418, %v236
  %v456 = vmul.f32 %v421, %v237
  %v457 = vmul.f32 %v424, %v238
  %v458 = vmul.f32 %v427, %v239
  %v459 = vmul.f32 %v430, %v240
  %v460 = vmul.f32 %v433, %v241
  %v461 = vmul.f32 %v436, %v242
  %v462 = vmul.f32 %v439, %v243
  %v463 = vmul.f32 %v442, %v244
  %v464 = vmul.f32 %v445, %v245
  %v465 = vmul.f32 %v448, %v246
  %v466 = vld [vmem:[%s5] sm:$0xff]
  %v467 = vld [vmem:[%s5 + $0x8] sm:$0xff]
  %v468 = vsel %vm162, %v187, 0
  %v470 = vsel %vm162, %v190, 0
  %v473 = vsel %vm162, %v369, 0
  %v476 = vsel %vm162, %v370, 0
  %v479 = vsel %vm162, %v371, 0
  %v482 = vsel %vm162, %v372, 0
  %v485 = vsel %vm162, %v373, 0
  %v488 = vsel %vm162, %v374, 0
  %v491 = vsel %vm162, %v375, 0
  %v494 = vsel %vm162, %v376, 0
  %v497 = vsel %vm162, %v377, 0
  %v500 = vsel %vm162, %v378, 0
  %v503 = vsel %vm162, %v379, 0
  %v506 = vsel %vm162, %v380, 0
  %v509 = vsel %vm162, %v381, 0
  %v512 = vsel %vm162, %v382, 0
  %v515 = vsel %vm162, %v383, 0
  %v518 = vsel %vm162, %v384, 0
  %520 = vmatpush.xpose.msra.mxu0 %v518
  %521 = vmatpush.xpose.msra.mxu0 %v515
  %522 = vmatpush.xpose.msra.mxu0 %v512
  %523 = vmatpush.xpose.msra.mxu0 %v509
  %524 = vmatpush.xpose.msra.mxu0 %v506
  %525 = vmatpush.xpose.msra.mxu0 %v503
  %526 = vmatpush.xpose.msra.mxu0 %v500
  %527 = vmatpush.xpose.msra.mxu0 %v497
  %528 = vmatpush.xpose.msra.mxu0 %v494
  %529 = vmatpush.xpose.msra.mxu0 %v491
  %530 = vmatpush.xpose.msra.mxu0 %v488
  %531 = vmatpush.xpose.msra.mxu0 %v485
  %532 = vmatpush.xpose.msra.mxu0 %v482
  %533 = vmatpush.xpose.msra.mxu0 %v479
  %534 = vmatpush.xpose.msra.mxu0 %v476
  %535 = vmatpush.xpose.msra.mxu0 %v473
  %536 = vmatmul.f32.gmra.mxu0 %v468
  %v537 = vpop.f32.mrf.mxu0
  %v538 = vadd.f32 0.0, %v537
  %539 = vmatmul.f32.gmra.mxu0 %v470
  %v540 = vpop.f32.mrf.mxu0
  %v541 = vadd.f32 0.0, %v540
  %542 = vdwg.mxu0
  %v543 = vmul.f32 %v538, 0.35355338
  %v544 = vmul.f32 %v541, 0.35355338
  %v545 = vadd.f32 %v543, %v466
  %v546 = vadd.f32 %v544, %v467
  %547 = vmax.xlane.f32.xlu0 %v545
  %v548 = vpop.xlane.xlu0 %547
  %549 = vmax.xlane.f32.xlu0 %v546
  %v550 = vpop.xlane.xlu0 %549
  %v551 = vsub.f32 %v545, %v548
  %v552 = vsub.f32 %v546, %v550
  %v553 = vmul.f32 %v551, 1.442695
  %v554 = vpow.pop %v553
  %v555 = vmul.f32 %v552, 1.442695
  %v556 = vpow.pop %v555
  %557 = vmatpush.msra.mxu0 %v465
  %558 = vmatpush.msra.mxu0 %v464
  %559 = vmatpush.msra.mxu0 %v463
  %560 = vmatpush.msra.mxu0 %v462
  %561 = vmatpush.msra.mxu0 %v461
  %562 = vmatpush.msra.mxu0 %v460
  %563 = vmatpush.msra.mxu0 %v459
  %564 = vmatpush.msra.mxu0 %v458
  %565 = vmatpush.msra.mxu0 %v457
  %566 = vmatpush.msra.mxu0 %v456
  %567 = vmatpush.msra.mxu0 %v455
  %568 = vmatpush.msra.mxu0 %v454
  %569 = vmatpush.msra.mxu0 %v453
  %570 = vmatpush.msra.mxu0 %v452
  %571 = vmatpush.msra.mxu0 %v451
  %572 = vmatpush.msra.mxu0 %v450
  %573 = vmatmul.f32.gmra.mxu0 %v554
  %v574 = vpop.f32.mrf.mxu0
  %v575 = vadd.f32 0.0, %v574
  %576 = vmatmul.f32.gmra.mxu0 %v556
  %v577 = vpop.f32.mrf.mxu0
  %v578 = vadd.f32 0.0, %v577
  %579 = vdwg.mxu0
  %580 = vmatpush.msra.mxu0 %v246
  %581 = vmatpush.msra.mxu0 %v245
  %582 = vmatpush.msra.mxu0 %v244
  %583 = vmatpush.msra.mxu0 %v243
  %584 = vmatpush.msra.mxu0 %v242
  %585 = vmatpush.msra.mxu0 %v241
  %586 = vmatpush.msra.mxu0 %v240
  %587 = vmatpush.msra.mxu0 %v239
  %588 = vmatpush.msra.mxu0 %v238
  %589 = vmatpush.msra.mxu0 %v237
  %590 = vmatpush.msra.mxu0 %v236
  %591 = vmatpush.msra.mxu0 %v235
  %592 = vmatpush.msra.mxu0 %v234
  %593 = vmatpush.msra.mxu0 %v233
  %594 = vmatpush.msra.mxu0 %v232
  %595 = vmatpush.msra.mxu0 %v231
  %596 = vmatmul.f32.gmra.mxu0 %v554
  %v597 = vpop.f32.mrf.mxu0
  %v598 = vadd.f32 0.0, %v597
  %599 = vmatmul.f32.gmra.mxu0 %v556
  %v600 = vpop.f32.mrf.mxu0
  %v601 = vadd.f32 0.0, %v600
  %602 = vdwg.mxu0
  %v603 = vrcp.pop %v598
  %v604 = vrcp.pop %v601
  %v605 = vmul.f32 %v575, %v603
  %v606 = vmul.f32 %v578, %v604
  %v607 = vld [vmem:[%s19] sm:$0xff]
  %v608 = vld [vmem:[%s19 + $0x8] sm:$0xff]
  %v609 = vld [vmem:[%s19 + $0x10] sm:$0xff]
  %v610 = vld [vmem:[%s19 + $0x18] sm:$0xff]
  %v611 = vld [vmem:[%s19 + $0x20] sm:$0xff]
  %v612 = vld [vmem:[%s19 + $0x28] sm:$0xff]
  %v613 = vld [vmem:[%s19 + $0x30] sm:$0xff]
  %v614 = vld [vmem:[%s19 + $0x38] sm:$0xff]
  %v615 = vld [vmem:[%s21] sm:$0x1]
  %v617 = vperm.slane %v615, 0
  %v620 = vsel %vm162, %v605, 0
  %v623 = vsel %vm162, %v606, 0
  %625 = vmatpush.msra.mxu0 0.0
  %626 = vmatpush.msra.mxu0 0.0
  %627 = vmatpush.msra.mxu0 0.0
  %628 = vmatpush.msra.mxu0 0.0
  %629 = vmatpush.msra.mxu0 0.0
  %630 = vmatpush.msra.mxu0 0.0
  %631 = vmatpush.msra.mxu0 0.0
  %632 = vmatpush.msra.mxu0 0.0
  %633 = vmatpush.msra.mxu0 %v614
  %634 = vmatpush.msra.mxu0 %v613
  %635 = vmatpush.msra.mxu0 %v612
  %636 = vmatpush.msra.mxu0 %v611
  %637 = vmatpush.msra.mxu0 %v610
  %638 = vmatpush.msra.mxu0 %v609
  %639 = vmatpush.msra.mxu0 %v608
  %640 = vmatpush.msra.mxu0 %v607
  %641 = vmatmul.f32.gmra.mxu0 %v620
  %v642 = vpop.f32.mrf.mxu0
  %v643 = vadd.f32 %v617, %v642
  %644 = vmatmul.f32.gmra.mxu0 %v623
  %v645 = vpop.f32.mrf.mxu0
  %v646 = vadd.f32 %v617, %v645
  %647 = vdwg.mxu0
  %v648 = vld [vmem:[%s23] sm:$0x1]
  %v649 = vld [vmem:[%s23 + $0x1] sm:$0x1]
  %v650 = vadd.f32 %v138, %v643
  %v651 = vadd.f32 %v139, %v646
  %v652 = vsel %vm162, %v650, 0.0
  %653 = vadd.xlane.f32.xlu0 %v652
  %v654 = vpop.xlane.xlu0 %653
  %v655 = vsel %vm162, %v651, 0.0
  %656 = vadd.xlane.f32.xlu0 %v655
  %v657 = vpop.xlane.xlu0 %656
  %v658 = vrcp.pop 64.0
  %v659 = vmul.f32 64.0, %v658
  %v660 = vsub.f32 1.0, %v659
  %v661 = vmul.f32 %v658, %v660
  %v662 = vadd.f32 %v658, %v661
  %vm663 = vweird.f32 %v658
  %v664 = vsel %vm663, %v658, %v662
  %v665 = vmul.f32 %v654, %v664
  %v666 = vmul.f32 %v657, %v664
  %v667 = vsub.f32 %v650, %v665
  %v668 = vsub.f32 %v651, %v666
  %v669 = vmul.f32 %v667, %v667
  %v670 = vmul.f32 %v668, %v668
  %v671 = vsel %vm162, %v669, 0.0
  %672 = vadd.xlane.f32.xlu0 %v671
  %v673 = vpop.xlane.xlu0 %672
  %v674 = vsel %vm162, %v670, 0.0
  %675 = vadd.xlane.f32.xlu0 %v674
  %v676 = vpop.xlane.xlu0 %675
  %v677 = vmul.f32 %v673, %v664
  %v678 = vmul.f32 %v676, %v664
  %v679 = vadd.f32 %v677, 1e-05
  %v680 = vadd.f32 %v678, 1e-05
  %v681 = vrsqrt.pop %v679
  %v682 = vmul.f32 %v681, %v679
  %v683 = vmul.f32 %v682, %v681
  %v684 = vmul.f32 0.5, %v683
  %v685 = vsub.f32 1.5, %v684
  %v686 = vmul.f32 %v681, %v685
  %vm687 = vweird.f32 %v679
  %vm688 = vweird.f32 %v681
  %vm689 = vmor %vm687, %vm688
  %v690 = vsel %vm689, %v681, %v686
  %v691 = vrsqrt.pop %v680
  %v692 = vmul.f32 %v691, %v680
  %v693 = vmul.f32 %v692, %v691
  %v694 = vmul.f32 0.5, %v693
  %v695 = vsub.f32 1.5, %v694
  %v696 = vmul.f32 %v691, %v695
  %vm697 = vweird.f32 %v680
  %vm698 = vweird.f32 %v691
  %vm699 = vmor %vm697, %vm698
  %v700 = vsel %vm699, %v691, %v696
  %v701 = vmul.f32 %v667, %v690
  %v702 = vmul.f32 %v668, %v700
  %v703 = vperm.slane %v648, 0
  %v704 = vmul.f32 %v701, %v703
  %v705 = vmul.f32 %v702, %v703
  %v706 = vperm.slane %v649, 0
  %v707 = vadd.f32 %v704, %v706
  %v708 = vadd.f32 %v705, %v706
  %v709 = vld [vmem:[%s25] sm:$0xff]
  %v710 = vld [vmem:[%s25 + $0x8] sm:$0xff]
  %v711 = vld [vmem:[%s25 + $0x10] sm:$0xff]
  %v712 = vld [vmem:[%s25 + $0x18] sm:$0xff]
  %v713 = vld [vmem:[%s25 + $0x20] sm:$0xff]
  %v714 = vld [vmem:[%s25 + $0x28] sm:$0xff]
  %v715 = vld [vmem:[%s25 + $0x30] sm:$0xff]
  %v716 = vld [vmem:[%s25 + $0x38] sm:$0xff]
  %v717 = vld [vmem:[%s27] sm:$0x1]
  %v719 = vperm.slane %v717, 0
  %v722 = vsel %vm162, %v707, 0
  %v725 = vsel %vm162, %v708, 0
  %727 = vmatpush.msra.mxu0 0.0
  %728 = vmatpush.msra.mxu0 0.0
  %729 = vmatpush.msra.mxu0 0.0
  %730 = vmatpush.msra.mxu0 0.0
  %731 = vmatpush.msra.mxu0 0.0
  %732 = vmatpush.msra.mxu0 0.0
  %733 = vmatpush.msra.mxu0 0.0
  %734 = vmatpush.msra.mxu0 0.0
  %735 = vmatpush.msra.mxu0 %v716
  %736 = vmatpush.msra.mxu0 %v715
  %737 = vmatpush.msra.mxu0 %v714
  %738 = vmatpush.msra.mxu0 %v713
  %739 = vmatpush.msra.mxu0 %v712
  %740 = vmatpush.msra.mxu0 %v711
  %741 = vmatpush.msra.mxu0 %v710
  %742 = vmatpush.msra.mxu0 %v709
  %743 = vmatmul.f32.gmra.mxu0 %v722
  %v744 = vpop.f32.mrf.mxu0
  %v745 = vadd.f32 %v719, %v744
  %746 = vmatmul.f32.gmra.mxu0 %v725
  %v747 = vpop.f32.mrf.mxu0
  %v748 = vadd.f32 %v719, %v747
  %749 = vdwg.mxu0
  %v750 = vmax.f32 %v745, 0.0
  %v751 = vmax.f32 %v748, 0.0
  %v752 = vld [vmem:[%s29] sm:$0xff]
  %v753 = vld [vmem:[%s29 + $0x8] sm:$0xff]
  %v754 = vld [vmem:[%s29 + $0x10] sm:$0xff]
  %v755 = vld [vmem:[%s29 + $0x18] sm:$0xff]
  %v756 = vld [vmem:[%s29 + $0x20] sm:$0xff]
  %v757 = vld [vmem:[%s29 + $0x28] sm:$0xff]
  %v758 = vld [vmem:[%s29 + $0x30] sm:$0xff]
  %v759 = vld [vmem:[%s29 + $0x38] sm:$0xff]
  %v760 = vld [vmem:[%s29 + $0x40] sm:$0xff]
  %v761 = vld [vmem:[%s29 + $0x48] sm:$0xff]
  %v762 = vld [vmem:[%s29 + $0x50] sm:$0xff]
  %v763 = vld [vmem:[%s29 + $0x58] sm:$0xff]
  %v764 = vld [vmem:[%s29 + $0x60] sm:$0xff]
  %v765 = vld [vmem:[%s29 + $0x68] sm:$0xff]
  %v766 = vld [vmem:[%s29 + $0x70] sm:$0xff]
  %v767 = vld [vmem:[%s29 + $0x78] sm:$0xff]
  %v768 = vld [vmem:[%s31] sm:$0x1]
  %v770 = vperm.slane %v768, 0
  %772 = vmatpush.msra.mxu0 %v767
  %773 = vmatpush.msra.mxu0 %v766
  %774 = vmatpush.msra.mxu0 %v765
  %775 = vmatpush.msra.mxu0 %v764
  %776 = vmatpush.msra.mxu0 %v763
  %777 = vmatpush.msra.mxu0 %v762
  %778 = vmatpush.msra.mxu0 %v761
  %779 = vmatpush.msra.mxu0 %v760
  %780 = vmatpush.msra.mxu0 %v759
  %781 = vmatpush.msra.mxu0 %v758
  %782 = vmatpush.msra.mxu0 %v757
  %783 = vmatpush.msra.mxu0 %v756
  %784 = vmatpush.msra.mxu0 %v755
  %785 = vmatpush.msra.mxu0 %v754
  %786 = vmatpush.msra.mxu0 %v753
  %787 = vmatpush.msra.mxu0 %v752
  %788 = vmatmul.f32.gmra.mxu0 %v750
  %v789 = vpop.f32.mrf.mxu0
  %v790 = vadd.f32 %v770, %v789
  %791 = vmatmul.f32.gmra.mxu0 %v751
  %v792 = vpop.f32.mrf.mxu0
  %v793 = vadd.f32 %v770, %v792
  %794 = vdwg.mxu0
  %v795 = vld [vmem:[%s23 + $0x2] sm:$0x1]
  %v796 = vld [vmem:[%s23 + $0x3] sm:$0x1]
  %v797 = vadd.f32 %v707, %v790
  %v798 = vadd.f32 %v708, %v793
  %v799 = vsel %vm162, %v797, 0.0
  %800 = vadd.xlane.f32.xlu0 %v799
  %v801 = vpop.xlane.xlu0 %800
  %v802 = vsel %vm162, %v798, 0.0
  %803 = vadd.xlane.f32.xlu0 %v802
  %v804 = vpop.xlane.xlu0 %803
  %v805 = vmul.f32 %v801, %v664
  %v806 = vmul.f32 %v804, %v664
  %v807 = vsub.f32 %v797, %v805
  %v808 = vsub.f32 %v798, %v806
  %v809 = vmul.f32 %v807, %v807
  %v810 = vmul.f32 %v808, %v808
  %v811 = vsel %vm162, %v809, 0.0
  %812 = vadd.xlane.f32.xlu0 %v811
  %v813 = vpop.xlane.xlu0 %812
  %v814 = vsel %vm162, %v810, 0.0
  %815 = vadd.xlane.f32.xlu0 %v814
  %v816 = vpop.xlane.xlu0 %815
  %v817 = vmul.f32 %v813, %v664
  %v818 = vmul.f32 %v816, %v664
  %v819 = vadd.f32 %v817, 1e-05
  %v820 = vadd.f32 %v818, 1e-05
  %v821 = vrsqrt.pop %v819
  %v822 = vmul.f32 %v821, %v819
  %v823 = vmul.f32 %v822, %v821
  %v824 = vmul.f32 0.5, %v823
  %v825 = vsub.f32 1.5, %v824
  %v826 = vmul.f32 %v821, %v825
  %vm827 = vweird.f32 %v819
  %vm828 = vweird.f32 %v821
  %vm829 = vmor %vm827, %vm828
  %v830 = vsel %vm829, %v821, %v826
  %v831 = vrsqrt.pop %v820
  %v832 = vmul.f32 %v831, %v820
  %v833 = vmul.f32 %v832, %v831
  %v834 = vmul.f32 0.5, %v833
  %v835 = vsub.f32 1.5, %v834
  %v836 = vmul.f32 %v831, %v835
  %vm837 = vweird.f32 %v820
  %vm838 = vweird.f32 %v831
  %vm839 = vmor %vm837, %vm838
  %v840 = vsel %vm839, %v831, %v836
  %v841 = vmul.f32 %v807, %v830
  %v842 = vmul.f32 %v808, %v840
  %v843 = vperm.slane %v795, 0
  %v844 = vmul.f32 %v841, %v843
  %v845 = vmul.f32 %v842, %v843
  %v846 = vperm.slane %v796, 0
  %v847 = vadd.f32 %v844, %v846
  %v848 = vadd.f32 %v845, %v846
  %v850 = vsel %vm162, %v847, 0
  %v853 = vsel %vm162, %v848, 0
  %855 = vmatpush.msra.mxu0 0.0
  %856 = vmatpush.msra.mxu0 0.0
  %857 = vmatpush.msra.mxu0 0.0
  %858 = vmatpush.msra.mxu0 0.0
  %859 = vmatpush.msra.mxu0 0.0
  %860 = vmatpush.msra.mxu0 0.0
  %861 = vmatpush.msra.mxu0 0.0
  %862 = vmatpush.msra.mxu0 0.0
  %863 = vmatpush.msra.mxu0 %v154
  %864 = vmatpush.msra.mxu0 %v152
  %865 = vmatpush.msra.mxu0 %v150
  %866 = vmatpush.msra.mxu0 %v148
  %867 = vmatpush.msra.mxu0 %v146
  %868 = vmatpush.msra.mxu0 %v144
  %869 = vmatpush.msra.mxu0 %v142
  %870 = vmatpush.msra.mxu0 %v140
  %871 = vmatmul.f32.gmra.mxu0 %v850
  %v872 = vpop.f32.mrf.mxu0
  %v873 = vadd.f32 %v158, %v872
  %874 = vmatmul.f32.gmra.mxu0 %v853
  %v875 = vpop.f32.mrf.mxu0
  %v876 = vadd.f32 %v158, %v875
  %877 = vdwg.mxu0
  %878 = vmatpush.msra.mxu0 0.0
  %879 = vmatpush.msra.mxu0 0.0
  %880 = vmatpush.msra.mxu0 0.0
  %881 = vmatpush.msra.mxu0 0.0
  %882 = vmatpush.msra.mxu0 0.0
  %883 = vmatpush.msra.mxu0 0.0
  %884 = vmatpush.msra.mxu0 0.0
  %885 = vmatpush.msra.mxu0 0.0
  %886 = vmatpush.msra.mxu0 %v155
  %887 = vmatpush.msra.mxu0 %v153
  %888 = vmatpush.msra.mxu0 %v151
  %889 = vmatpush.msra.mxu0 %v149
  %890 = vmatpush.msra.mxu0 %v147
  %891 = vmatpush.msra.mxu0 %v145
  %892 = vmatpush.msra.mxu0 %v143
  %893 = vmatpush.msra.mxu0 %v141
  %894 = vmatmul.f32.gmra.mxu0 %v850
  %v895 = vpop.f32.mrf.mxu0
  %v896 = vadd.f32 %v159, %v895
  %897 = vmatmul.f32.gmra.mxu0 %v853
  %v898 = vpop.f32.mrf.mxu0
  %v899 = vadd.f32 %v159, %v898
  %900 = vdwg.mxu0
  %903 = vrot.lane.b32.xlu0 %v873, 64
  %v904 = vpop.permute.xlu0 %903
  %905 = vrot.lane.b32.xlu0 %v876, 64
  %v906 = vpop.permute.xlu0 %905
  %909 = vmatpush.msra.mxu0 0.0
  %910 = vmatpush.msra.mxu0 0.0
  %911 = vmatpush.msra.mxu0 0.0
  %912 = vmatpush.msra.mxu0 0.0
  %913 = vmatpush.msra.mxu0 0.0
  %914 = vmatpush.msra.mxu0 0.0
  %915 = vmatpush.msra.mxu0 0.0
  %916 = vmatpush.msra.mxu0 0.0
  %917 = vmatpush.msra.mxu0 0.0
  %918 = vmatpush.msra.mxu0 0.0
  %919 = vmatpush.msra.mxu0 0.0
  %920 = vmatpush.msra.mxu0 0.0
  %921 = vmatpush.msra.mxu0 0.0
  %922 = vmatpush.msra.mxu0 0.0
  %923 = vmatpush.msra.mxu0 %v906
  %924 = vmatpush.msra.mxu0 %v904
  %925 = vmatmul.f32.gmra.mxu0 %v257
  %v926 = vpop.f32.mrf.mxu0
  %v927 = vadd.f32 0.0, %v926
  %928 = vmatmul.f32.gmra.mxu0 %v260
  %v929 = vpop.f32.mrf.mxu0
  %v930 = vadd.f32 0.0, %v929
  %931 = vmatmul.f32.gmra.mxu0 %v263
  %v932 = vpop.f32.mrf.mxu0
  %v933 = vadd.f32 0.0, %v932
  %934 = vmatmul.f32.gmra.mxu0 %v266
  %v935 = vpop.f32.mrf.mxu0
  %v936 = vadd.f32 0.0, %v935
  %937 = vmatmul.f32.gmra.mxu0 %v269
  %v938 = vpop.f32.mrf.mxu0
  %v939 = vadd.f32 0.0, %v938
  %940 = vmatmul.f32.gmra.mxu0 %v272
  %v941 = vpop.f32.mrf.mxu0
  %v942 = vadd.f32 0.0, %v941
  %943 = vmatmul.f32.gmra.mxu0 %v275
  %v944 = vpop.f32.mrf.mxu0
  %v945 = vadd.f32 0.0, %v944
  %946 = vmatmul.f32.gmra.mxu0 %v278
  %v947 = vpop.f32.mrf.mxu0
  %v948 = vadd.f32 0.0, %v947
  %949 = vmatmul.f32.gmra.mxu0 %v281
  %v950 = vpop.f32.mrf.mxu0
  %v951 = vadd.f32 0.0, %v950
  %952 = vmatmul.f32.gmra.mxu0 %v284
  %v953 = vpop.f32.mrf.mxu0
  %v954 = vadd.f32 0.0, %v953
  %955 = vmatmul.f32.gmra.mxu0 %v287
  %v956 = vpop.f32.mrf.mxu0
  %v957 = vadd.f32 0.0, %v956
  %958 = vmatmul.f32.gmra.mxu0 %v290
  %v959 = vpop.f32.mrf.mxu0
  %v960 = vadd.f32 0.0, %v959
  %961 = vmatmul.f32.gmra.mxu0 %v293
  %v962 = vpop.f32.mrf.mxu0
  %v963 = vadd.f32 0.0, %v962
  %964 = vmatmul.f32.gmra.mxu0 %v296
  %v965 = vpop.f32.mrf.mxu0
  %v966 = vadd.f32 0.0, %v965
  %967 = vmatmul.f32.gmra.mxu0 %v299
  %v968 = vpop.f32.mrf.mxu0
  %v969 = vadd.f32 0.0, %v968
  %970 = vmatmul.f32.gmra.mxu0 %v302
  %v971 = vpop.f32.mrf.mxu0
  %v972 = vadd.f32 0.0, %v971
  %973 = vdwg.mxu0
  %v974 = vmul.f32 %v927, %v231
  %v975 = vmul.f32 %v930, %v232
  %v976 = vmul.f32 %v933, %v233
  %v977 = vmul.f32 %v936, %v234
  %v978 = vmul.f32 %v939, %v235
  %v979 = vmul.f32 %v942, %v236
  %v980 = vmul.f32 %v945, %v237
  %v981 = vmul.f32 %v948, %v238
  %v982 = vmul.f32 %v951, %v239
  %v983 = vmul.f32 %v954, %v240
  %v984 = vmul.f32 %v957, %v241
  %v985 = vmul.f32 %v960, %v242
  %v986 = vmul.f32 %v963, %v243
  %v987 = vmul.f32 %v966, %v244
  %v988 = vmul.f32 %v969, %v245
  %v989 = vmul.f32 %v972, %v246
  %990 = vmatpush.msra.mxu0 0.0
  %991 = vmatpush.msra.mxu0 0.0
  %992 = vmatpush.msra.mxu0 0.0
  %993 = vmatpush.msra.mxu0 0.0
  %994 = vmatpush.msra.mxu0 0.0
  %995 = vmatpush.msra.mxu0 0.0
  %996 = vmatpush.msra.mxu0 0.0
  %997 = vmatpush.msra.mxu0 0.0
  %998 = vmatpush.msra.mxu0 0.0
  %999 = vmatpush.msra.mxu0 0.0
  %1000 = vmatpush.msra.mxu0 0.0
  %1001 = vmatpush.msra.mxu0 0.0
  %1002 = vmatpush.msra.mxu0 0.0
  %1003 = vmatpush.msra.mxu0 0.0
  %1004 = vmatpush.msra.mxu0 %v899
  %1005 = vmatpush.msra.mxu0 %v896
  %1006 = vmatmul.f32.gmra.mxu0 %v257
  %v1007 = vpop.f32.mrf.mxu0
  %v1008 = vadd.f32 0.0, %v1007
  %1009 = vmatmul.f32.gmra.mxu0 %v260
  %v1010 = vpop.f32.mrf.mxu0
  %v1011 = vadd.f32 0.0, %v1010
  %1012 = vmatmul.f32.gmra.mxu0 %v263
  %v1013 = vpop.f32.mrf.mxu0
  %v1014 = vadd.f32 0.0, %v1013
  %1015 = vmatmul.f32.gmra.mxu0 %v266
  %v1016 = vpop.f32.mrf.mxu0
  %v1017 = vadd.f32 0.0, %v1016
  %1018 = vmatmul.f32.gmra.mxu0 %v269
  %v1019 = vpop.f32.mrf.mxu0
  %v1020 = vadd.f32 0.0, %v1019
  %1021 = vmatmul.f32.gmra.mxu0 %v272
  %v1022 = vpop.f32.mrf.mxu0
  %v1023 = vadd.f32 0.0, %v1022
  %1024 = vmatmul.f32.gmra.mxu0 %v275
  %v1025 = vpop.f32.mrf.mxu0
  %v1026 = vadd.f32 0.0, %v1025
  %1027 = vmatmul.f32.gmra.mxu0 %v278
  %v1028 = vpop.f32.mrf.mxu0
  %v1029 = vadd.f32 0.0, %v1028
  %1030 = vmatmul.f32.gmra.mxu0 %v281
  %v1031 = vpop.f32.mrf.mxu0
  %v1032 = vadd.f32 0.0, %v1031
  %1033 = vmatmul.f32.gmra.mxu0 %v284
  %v1034 = vpop.f32.mrf.mxu0
  %v1035 = vadd.f32 0.0, %v1034
  %1036 = vmatmul.f32.gmra.mxu0 %v287
  %v1037 = vpop.f32.mrf.mxu0
  %v1038 = vadd.f32 0.0, %v1037
  %1039 = vmatmul.f32.gmra.mxu0 %v290
  %v1040 = vpop.f32.mrf.mxu0
  %v1041 = vadd.f32 0.0, %v1040
  %1042 = vmatmul.f32.gmra.mxu0 %v293
  %v1043 = vpop.f32.mrf.mxu0
  %v1044 = vadd.f32 0.0, %v1043
  %1045 = vmatmul.f32.gmra.mxu0 %v296
  %v1046 = vpop.f32.mrf.mxu0
  %v1047 = vadd.f32 0.0, %v1046
  %1048 = vmatmul.f32.gmra.mxu0 %v299
  %v1049 = vpop.f32.mrf.mxu0
  %v1050 = vadd.f32 0.0, %v1049
  %1051 = vmatmul.f32.gmra.mxu0 %v302
  %v1052 = vpop.f32.mrf.mxu0
  %v1053 = vadd.f32 0.0, %v1052
  %1054 = vdwg.mxu0
  %v1055 = vmul.f32 %v1008, %v231
  %v1056 = vmul.f32 %v1011, %v232
  %v1057 = vmul.f32 %v1014, %v233
  %v1058 = vmul.f32 %v1017, %v234
  %v1059 = vmul.f32 %v1020, %v235
  %v1060 = vmul.f32 %v1023, %v236
  %v1061 = vmul.f32 %v1026, %v237
  %v1062 = vmul.f32 %v1029, %v238
  %v1063 = vmul.f32 %v1032, %v239
  %v1064 = vmul.f32 %v1035, %v240
  %v1065 = vmul.f32 %v1038, %v241
  %v1066 = vmul.f32 %v1041, %v242
  %v1067 = vmul.f32 %v1044, %v243
  %v1068 = vmul.f32 %v1047, %v244
  %v1069 = vmul.f32 %v1050, %v245
  %v1070 = vmul.f32 %v1053, %v246
  %v1071 = vsel %vm162, %v873, 0
  %v1073 = vsel %vm162, %v876, 0
  %v1076 = vsel %vm162, %v974, 0
  %v1079 = vsel %vm162, %v975, 0
  %v1082 = vsel %vm162, %v976, 0
  %v1085 = vsel %vm162, %v977, 0
  %v1088 = vsel %vm162, %v978, 0
  %v1091 = vsel %vm162, %v979, 0
  %v1094 = vsel %vm162, %v980, 0
  %v1097 = vsel %vm162, %v981, 0
  %v1100 = vsel %vm162, %v982, 0
  %v1103 = vsel %vm162, %v983, 0
  %v1106 = vsel %vm162, %v984, 0
  %v1109 = vsel %vm162, %v985, 0
  %v1112 = vsel %vm162, %v986, 0
  %v1115 = vsel %vm162, %v987, 0
  %v1118 = vsel %vm162, %v988, 0
  %v1121 = vsel %vm162, %v989, 0
  %1123 = vmatpush.xpose.msra.mxu0 %v1121
  %1124 = vmatpush.xpose.msra.mxu0 %v1118
  %1125 = vmatpush.xpose.msra.mxu0 %v1115
  %1126 = vmatpush.xpose.msra.mxu0 %v1112
  %1127 = vmatpush.xpose.msra.mxu0 %v1109
  %1128 = vmatpush.xpose.msra.mxu0 %v1106
  %1129 = vmatpush.xpose.msra.mxu0 %v1103
  %1130 = vmatpush.xpose.msra.mxu0 %v1100
  %1131 = vmatpush.xpose.msra.mxu0 %v1097
  %1132 = vmatpush.xpose.msra.mxu0 %v1094
  %1133 = vmatpush.xpose.msra.mxu0 %v1091
  %1134 = vmatpush.xpose.msra.mxu0 %v1088
  %1135 = vmatpush.xpose.msra.mxu0 %v1085
  %1136 = vmatpush.xpose.msra.mxu0 %v1082
  %1137 = vmatpush.xpose.msra.mxu0 %v1079
  %1138 = vmatpush.xpose.msra.mxu0 %v1076
  %1139 = vmatmul.f32.gmra.mxu0 %v1071
  %v1140 = vpop.f32.mrf.mxu0
  %v1141 = vadd.f32 0.0, %v1140
  %1142 = vmatmul.f32.gmra.mxu0 %v1073
  %v1143 = vpop.f32.mrf.mxu0
  %v1144 = vadd.f32 0.0, %v1143
  %1145 = vdwg.mxu0
  %v1146 = vmul.f32 %v1141, 0.35355338
  %v1147 = vmul.f32 %v1144, 0.35355338
  %v1148 = vadd.f32 %v1146, %v466
  %v1149 = vadd.f32 %v1147, %v467
  %1150 = vmax.xlane.f32.xlu0 %v1148
  %v1151 = vpop.xlane.xlu0 %1150
  %1152 = vmax.xlane.f32.xlu0 %v1149
  %v1153 = vpop.xlane.xlu0 %1152
  %v1154 = vsub.f32 %v1148, %v1151
  %v1155 = vsub.f32 %v1149, %v1153
  %v1156 = vmul.f32 %v1154, 1.442695
  %v1157 = vpow.pop %v1156
  %v1158 = vmul.f32 %v1155, 1.442695
  %v1159 = vpow.pop %v1158
  %1160 = vmatpush.msra.mxu0 %v1070
  %1161 = vmatpush.msra.mxu0 %v1069
  %1162 = vmatpush.msra.mxu0 %v1068
  %1163 = vmatpush.msra.mxu0 %v1067
  %1164 = vmatpush.msra.mxu0 %v1066
  %1165 = vmatpush.msra.mxu0 %v1065
  %1166 = vmatpush.msra.mxu0 %v1064
  %1167 = vmatpush.msra.mxu0 %v1063
  %1168 = vmatpush.msra.mxu0 %v1062
  %1169 = vmatpush.msra.mxu0 %v1061
  %1170 = vmatpush.msra.mxu0 %v1060
  %1171 = vmatpush.msra.mxu0 %v1059
  %1172 = vmatpush.msra.mxu0 %v1058
  %1173 = vmatpush.msra.mxu0 %v1057
  %1174 = vmatpush.msra.mxu0 %v1056
  %1175 = vmatpush.msra.mxu0 %v1055
  %1176 = vmatmul.f32.gmra.mxu0 %v1157
  %v1177 = vpop.f32.mrf.mxu0
  %v1178 = vadd.f32 0.0, %v1177
  %1179 = vmatmul.f32.gmra.mxu0 %v1159
  %v1180 = vpop.f32.mrf.mxu0
  %v1181 = vadd.f32 0.0, %v1180
  %1182 = vdwg.mxu0
  %1183 = vmatpush.msra.mxu0 %v246
  %1184 = vmatpush.msra.mxu0 %v245
  %1185 = vmatpush.msra.mxu0 %v244
  %1186 = vmatpush.msra.mxu0 %v243
  %1187 = vmatpush.msra.mxu0 %v242
  %1188 = vmatpush.msra.mxu0 %v241
  %1189 = vmatpush.msra.mxu0 %v240
  %1190 = vmatpush.msra.mxu0 %v239
  %1191 = vmatpush.msra.mxu0 %v238
  %1192 = vmatpush.msra.mxu0 %v237
  %1193 = vmatpush.msra.mxu0 %v236
  %1194 = vmatpush.msra.mxu0 %v235
  %1195 = vmatpush.msra.mxu0 %v234
  %1196 = vmatpush.msra.mxu0 %v233
  %1197 = vmatpush.msra.mxu0 %v232
  %1198 = vmatpush.msra.mxu0 %v231
  %1199 = vmatmul.f32.gmra.mxu0 %v1157
  %v1200 = vpop.f32.mrf.mxu0
  %v1201 = vadd.f32 0.0, %v1200
  %1202 = vmatmul.f32.gmra.mxu0 %v1159
  %v1203 = vpop.f32.mrf.mxu0
  %v1204 = vadd.f32 0.0, %v1203
  %1205 = vdwg.mxu0
  %v1206 = vrcp.pop %v1201
  %v1207 = vrcp.pop %v1204
  %v1208 = vmul.f32 %v1178, %v1206
  %v1209 = vmul.f32 %v1181, %v1207
  %v1211 = vsel %vm162, %v1208, 0
  %v1214 = vsel %vm162, %v1209, 0
  %1216 = vmatpush.msra.mxu0 0.0
  %1217 = vmatpush.msra.mxu0 0.0
  %1218 = vmatpush.msra.mxu0 0.0
  %1219 = vmatpush.msra.mxu0 0.0
  %1220 = vmatpush.msra.mxu0 0.0
  %1221 = vmatpush.msra.mxu0 0.0
  %1222 = vmatpush.msra.mxu0 0.0
  %1223 = vmatpush.msra.mxu0 0.0
  %1224 = vmatpush.msra.mxu0 %v614
  %1225 = vmatpush.msra.mxu0 %v613
  %1226 = vmatpush.msra.mxu0 %v612
  %1227 = vmatpush.msra.mxu0 %v611
  %1228 = vmatpush.msra.mxu0 %v610
  %1229 = vmatpush.msra.mxu0 %v609
  %1230 = vmatpush.msra.mxu0 %v608
  %1231 = vmatpush.msra.mxu0 %v607
  %1232 = vmatmul.f32.gmra.mxu0 %v1211
  %v1233 = vpop.f32.mrf.mxu0
  %v1234 = vadd.f32 %v617, %v1233
  %1235 = vmatmul.f32.gmra.mxu0 %v1214
  %v1236 = vpop.f32.mrf.mxu0
  %v1237 = vadd.f32 %v617, %v1236
  %1238 = vdwg.mxu0
  %v1239 = vadd.f32 %v847, %v1234
  %v1240 = vadd.f32 %v848, %v1237
  %v1241 = vsel %vm162, %v1239, 0.0
  %1242 = vadd.xlane.f32.xlu0 %v1241
  %v1243 = vpop.xlane.xlu0 %1242
  %v1244 = vsel %vm162, %v1240, 0.0
  %1245 = vadd.xlane.f32.xlu0 %v1244
  %v1246 = vpop.xlane.xlu0 %1245
  %v1247 = vmul.f32 %v1243, %v664
  %v1248 = vmul.f32 %v1246, %v664
  %v1249 = vsub.f32 %v1239, %v1247
  %v1250 = vsub.f32 %v1240, %v1248
  %v1251 = vmul.f32 %v1249, %v1249
  %v1252 = vmul.f32 %v1250, %v1250
  %v1253 = vsel %vm162, %v1251, 0.0
  %1254 = vadd.xlane.f32.xlu0 %v1253
  %v1255 = vpop.xlane.xlu0 %1254
  %v1256 = vsel %vm162, %v1252, 0.0
  %1257 = vadd.xlane.f32.xlu0 %v1256
  %v1258 = vpop.xlane.xlu0 %1257
  %v1259 = vmul.f32 %v1255, %v664
  %v1260 = vmul.f32 %v1258, %v664
  %v1261 = vadd.f32 %v1259, 1e-05
  %v1262 = vadd.f32 %v1260, 1e-05
  %v1263 = vrsqrt.pop %v1261
  %v1264 = vmul.f32 %v1263, %v1261
  %v1265 = vmul.f32 %v1264, %v1263
  %v1266 = vmul.f32 0.5, %v1265
  %v1267 = vsub.f32 1.5, %v1266
  %v1268 = vmul.f32 %v1263, %v1267
  %vm1269 = vweird.f32 %v1261
  %vm1270 = vweird.f32 %v1263
  %vm1271 = vmor %vm1269, %vm1270
  %v1272 = vsel %vm1271, %v1263, %v1268
  %v1273 = vrsqrt.pop %v1262
  %v1274 = vmul.f32 %v1273, %v1262
  %v1275 = vmul.f32 %v1274, %v1273
  %v1276 = vmul.f32 0.5, %v1275
  %v1277 = vsub.f32 1.5, %v1276
  %v1278 = vmul.f32 %v1273, %v1277
  %vm1279 = vweird.f32 %v1262
  %vm1280 = vweird.f32 %v1273
  %vm1281 = vmor %vm1279, %vm1280
  %v1282 = vsel %vm1281, %v1273, %v1278
  %v1283 = vmul.f32 %v1249, %v1272
  %v1284 = vmul.f32 %v1250, %v1282
  %v1285 = vmul.f32 %v1283, %v703
  %v1286 = vmul.f32 %v1284, %v703
  %v1287 = vadd.f32 %v1285, %v706
  %v1288 = vadd.f32 %v1286, %v706
  %v1290 = vsel %vm162, %v1287, 0
  %v1293 = vsel %vm162, %v1288, 0
  %1295 = vmatpush.msra.mxu0 0.0
  %1296 = vmatpush.msra.mxu0 0.0
  %1297 = vmatpush.msra.mxu0 0.0
  %1298 = vmatpush.msra.mxu0 0.0
  %1299 = vmatpush.msra.mxu0 0.0
  %1300 = vmatpush.msra.mxu0 0.0
  %1301 = vmatpush.msra.mxu0 0.0
  %1302 = vmatpush.msra.mxu0 0.0
  %1303 = vmatpush.msra.mxu0 %v716
  %1304 = vmatpush.msra.mxu0 %v715
  %1305 = vmatpush.msra.mxu0 %v714
  %1306 = vmatpush.msra.mxu0 %v713
  %1307 = vmatpush.msra.mxu0 %v712
  %1308 = vmatpush.msra.mxu0 %v711
  %1309 = vmatpush.msra.mxu0 %v710
  %1310 = vmatpush.msra.mxu0 %v709
  %1311 = vmatmul.f32.gmra.mxu0 %v1290
  %v1312 = vpop.f32.mrf.mxu0
  %v1313 = vadd.f32 %v719, %v1312
  %1314 = vmatmul.f32.gmra.mxu0 %v1293
  %v1315 = vpop.f32.mrf.mxu0
  %v1316 = vadd.f32 %v719, %v1315
  %1317 = vdwg.mxu0
  %v1318 = vmax.f32 %v1313, 0.0
  %v1319 = vmax.f32 %v1316, 0.0
  %1320 = vmatpush.msra.mxu0 %v767
  %1321 = vmatpush.msra.mxu0 %v766
  %1322 = vmatpush.msra.mxu0 %v765
  %1323 = vmatpush.msra.mxu0 %v764
  %1324 = vmatpush.msra.mxu0 %v763
  %1325 = vmatpush.msra.mxu0 %v762
  %1326 = vmatpush.msra.mxu0 %v761
  %1327 = vmatpush.msra.mxu0 %v760
  %1328 = vmatpush.msra.mxu0 %v759
  %1329 = vmatpush.msra.mxu0 %v758
  %1330 = vmatpush.msra.mxu0 %v757
  %1331 = vmatpush.msra.mxu0 %v756
  %1332 = vmatpush.msra.mxu0 %v755
  %1333 = vmatpush.msra.mxu0 %v754
  %1334 = vmatpush.msra.mxu0 %v753
  %1335 = vmatpush.msra.mxu0 %v752
  %1336 = vmatmul.f32.gmra.mxu0 %v1318
  %v1337 = vpop.f32.mrf.mxu0
  %v1338 = vadd.f32 %v770, %v1337
  %1339 = vmatmul.f32.gmra.mxu0 %v1319
  %v1340 = vpop.f32.mrf.mxu0
  %v1341 = vadd.f32 %v770, %v1340
  %1342 = vdwg.mxu0
  %v1343 = vadd.f32 %v1287, %v1338
  %v1344 = vadd.f32 %v1288, %v1341
  %v1345 = vsel %vm162, %v1343, 0.0
  %1346 = vadd.xlane.f32.xlu0 %v1345
  %v1347 = vpop.xlane.xlu0 %1346
  %v1348 = vsel %vm162, %v1344, 0.0
  %1349 = vadd.xlane.f32.xlu0 %v1348
  %v1350 = vpop.xlane.xlu0 %1349
  %v1351 = vmul.f32 %v1347, %v664
  %v1352 = vmul.f32 %v1350, %v664
  %v1353 = vsub.f32 %v1343, %v1351
  %v1354 = vsub.f32 %v1344, %v1352
  %v1355 = vmul.f32 %v1353, %v1353
  %v1356 = vmul.f32 %v1354, %v1354
  %v1357 = vsel %vm162, %v1355, 0.0
  %1358 = vadd.xlane.f32.xlu0 %v1357
  %v1359 = vpop.xlane.xlu0 %1358
  %v1360 = vsel %vm162, %v1356, 0.0
  %1361 = vadd.xlane.f32.xlu0 %v1360
  %v1362 = vpop.xlane.xlu0 %1361
  %v1363 = vmul.f32 %v1359, %v664
  %v1364 = vmul.f32 %v1362, %v664
  %v1365 = vadd.f32 %v1363, 1e-05
  %v1366 = vadd.f32 %v1364, 1e-05
  %v1367 = vrsqrt.pop %v1365
  %v1368 = vmul.f32 %v1367, %v1365
  %v1369 = vmul.f32 %v1368, %v1367
  %v1370 = vmul.f32 0.5, %v1369
  %v1371 = vsub.f32 1.5, %v1370
  %v1372 = vmul.f32 %v1367, %v1371
  %vm1373 = vweird.f32 %v1365
  %vm1374 = vweird.f32 %v1367
  %vm1375 = vmor %vm1373, %vm1374
  %v1376 = vsel %vm1375, %v1367, %v1372
  %v1377 = vrsqrt.pop %v1366
  %v1378 = vmul.f32 %v1377, %v1366
  %v1379 = vmul.f32 %v1378, %v1377
  %v1380 = vmul.f32 0.5, %v1379
  %v1381 = vsub.f32 1.5, %v1380
  %v1382 = vmul.f32 %v1377, %v1381
  %vm1383 = vweird.f32 %v1366
  %vm1384 = vweird.f32 %v1377
  %vm1385 = vmor %vm1383, %vm1384
  %v1386 = vsel %vm1385, %v1377, %v1382
  %v1387 = vmul.f32 %v1353, %v1376
  %v1388 = vmul.f32 %v1354, %v1386
  %v1389 = vmul.f32 %v1387, %v843
  %v1390 = vmul.f32 %v1388, %v843
  %v1391 = vadd.f32 %v1389, %v846
  %v1392 = vadd.f32 %v1390, %v846
  %v1394 = vsel %vm162, %v1391, 0
  %v1397 = vsel %vm162, %v1392, 0
  %1399 = vmatpush.msra.mxu0 0.0
  %1400 = vmatpush.msra.mxu0 0.0
  %1401 = vmatpush.msra.mxu0 0.0
  %1402 = vmatpush.msra.mxu0 0.0
  %1403 = vmatpush.msra.mxu0 0.0
  %1404 = vmatpush.msra.mxu0 0.0
  %1405 = vmatpush.msra.mxu0 0.0
  %1406 = vmatpush.msra.mxu0 0.0
  %1407 = vmatpush.msra.mxu0 %v154
  %1408 = vmatpush.msra.mxu0 %v152
  %1409 = vmatpush.msra.mxu0 %v150
  %1410 = vmatpush.msra.mxu0 %v148
  %1411 = vmatpush.msra.mxu0 %v146
  %1412 = vmatpush.msra.mxu0 %v144
  %1413 = vmatpush.msra.mxu0 %v142
  %1414 = vmatpush.msra.mxu0 %v140
  %1415 = vmatmul.f32.gmra.mxu0 %v1394
  %v1416 = vpop.f32.mrf.mxu0
  %v1417 = vadd.f32 %v158, %v1416
  %1418 = vmatmul.f32.gmra.mxu0 %v1397
  %v1419 = vpop.f32.mrf.mxu0
  %v1420 = vadd.f32 %v158, %v1419
  %1421 = vdwg.mxu0
  %1422 = vmatpush.msra.mxu0 0.0
  %1423 = vmatpush.msra.mxu0 0.0
  %1424 = vmatpush.msra.mxu0 0.0
  %1425 = vmatpush.msra.mxu0 0.0
  %1426 = vmatpush.msra.mxu0 0.0
  %1427 = vmatpush.msra.mxu0 0.0
  %1428 = vmatpush.msra.mxu0 0.0
  %1429 = vmatpush.msra.mxu0 0.0
  %1430 = vmatpush.msra.mxu0 %v155
  %1431 = vmatpush.msra.mxu0 %v153
  %1432 = vmatpush.msra.mxu0 %v151
  %1433 = vmatpush.msra.mxu0 %v149
  %1434 = vmatpush.msra.mxu0 %v147
  %1435 = vmatpush.msra.mxu0 %v145
  %1436 = vmatpush.msra.mxu0 %v143
  %1437 = vmatpush.msra.mxu0 %v141
  %1438 = vmatmul.f32.gmra.mxu0 %v1394
  %v1439 = vpop.f32.mrf.mxu0
  %v1440 = vadd.f32 %v159, %v1439
  %1441 = vmatmul.f32.gmra.mxu0 %v1397
  %v1442 = vpop.f32.mrf.mxu0
  %v1443 = vadd.f32 %v159, %v1442
  %1444 = vdwg.mxu0
  %1447 = vrot.lane.b32.xlu0 %v1417, 64
  %v1448 = vpop.permute.xlu0 %1447
  %1449 = vrot.lane.b32.xlu0 %v1420, 64
  %v1450 = vpop.permute.xlu0 %1449
  %1453 = vmatpush.msra.mxu0 0.0
  %1454 = vmatpush.msra.mxu0 0.0
  %1455 = vmatpush.msra.mxu0 0.0
  %1456 = vmatpush.msra.mxu0 0.0
  %1457 = vmatpush.msra.mxu0 0.0
  %1458 = vmatpush.msra.mxu0 0.0
  %1459 = vmatpush.msra.mxu0 0.0
  %1460 = vmatpush.msra.mxu0 0.0
  %1461 = vmatpush.msra.mxu0 0.0
  %1462 = vmatpush.msra.mxu0 0.0
  %1463 = vmatpush.msra.mxu0 0.0
  %1464 = vmatpush.msra.mxu0 0.0
  %1465 = vmatpush.msra.mxu0 0.0
  %1466 = vmatpush.msra.mxu0 0.0
  %1467 = vmatpush.msra.mxu0 %v1450
  %1468 = vmatpush.msra.mxu0 %v1448
  %1469 = vmatmul.f32.gmra.mxu0 %v257
  %v1470 = vpop.f32.mrf.mxu0
  %v1471 = vadd.f32 0.0, %v1470
  %1472 = vmatmul.f32.gmra.mxu0 %v260
  %v1473 = vpop.f32.mrf.mxu0
  %v1474 = vadd.f32 0.0, %v1473
  %1475 = vmatmul.f32.gmra.mxu0 %v263
  %v1476 = vpop.f32.mrf.mxu0
  %v1477 = vadd.f32 0.0, %v1476
  %1478 = vmatmul.f32.gmra.mxu0 %v266
  %v1479 = vpop.f32.mrf.mxu0
  %v1480 = vadd.f32 0.0, %v1479
  %1481 = vmatmul.f32.gmra.mxu0 %v269
  %v1482 = vpop.f32.mrf.mxu0
  %v1483 = vadd.f32 0.0, %v1482
  %1484 = vmatmul.f32.gmra.mxu0 %v272
  %v1485 = vpop.f32.mrf.mxu0
  %v1486 = vadd.f32 0.0, %v1485
  %1487 = vmatmul.f32.gmra.mxu0 %v275
  %v1488 = vpop.f32.mrf.mxu0
  %v1489 = vadd.f32 0.0, %v1488
  %1490 = vmatmul.f32.gmra.mxu0 %v278
  %v1491 = vpop.f32.mrf.mxu0
  %v1492 = vadd.f32 0.0, %v1491
  %1493 = vmatmul.f32.gmra.mxu0 %v281
  %v1494 = vpop.f32.mrf.mxu0
  %v1495 = vadd.f32 0.0, %v1494
  %1496 = vmatmul.f32.gmra.mxu0 %v284
  %v1497 = vpop.f32.mrf.mxu0
  %v1498 = vadd.f32 0.0, %v1497
  %1499 = vmatmul.f32.gmra.mxu0 %v287
  %v1500 = vpop.f32.mrf.mxu0
  %v1501 = vadd.f32 0.0, %v1500
  %1502 = vmatmul.f32.gmra.mxu0 %v290
  %v1503 = vpop.f32.mrf.mxu0
  %v1504 = vadd.f32 0.0, %v1503
  %1505 = vmatmul.f32.gmra.mxu0 %v293
  %v1506 = vpop.f32.mrf.mxu0
  %v1507 = vadd.f32 0.0, %v1506
  %1508 = vmatmul.f32.gmra.mxu0 %v296
  %v1509 = vpop.f32.mrf.mxu0
  %v1510 = vadd.f32 0.0, %v1509
  %1511 = vmatmul.f32.gmra.mxu0 %v299
  %v1512 = vpop.f32.mrf.mxu0
  %v1513 = vadd.f32 0.0, %v1512
  %1514 = vmatmul.f32.gmra.mxu0 %v302
  %v1515 = vpop.f32.mrf.mxu0
  %v1516 = vadd.f32 0.0, %v1515
  %1517 = vdwg.mxu0
  %v1518 = vmul.f32 %v1471, %v231
  %v1519 = vmul.f32 %v1474, %v232
  %v1520 = vmul.f32 %v1477, %v233
  %v1521 = vmul.f32 %v1480, %v234
  %v1522 = vmul.f32 %v1483, %v235
  %v1523 = vmul.f32 %v1486, %v236
  %v1524 = vmul.f32 %v1489, %v237
  %v1525 = vmul.f32 %v1492, %v238
  %v1526 = vmul.f32 %v1495, %v239
  %v1527 = vmul.f32 %v1498, %v240
  %v1528 = vmul.f32 %v1501, %v241
  %v1529 = vmul.f32 %v1504, %v242
  %v1530 = vmul.f32 %v1507, %v243
  %v1531 = vmul.f32 %v1510, %v244
  %v1532 = vmul.f32 %v1513, %v245
  %v1533 = vmul.f32 %v1516, %v246
  %1534 = vmatpush.msra.mxu0 0.0
  %1535 = vmatpush.msra.mxu0 0.0
  %1536 = vmatpush.msra.mxu0 0.0
  %1537 = vmatpush.msra.mxu0 0.0
  %1538 = vmatpush.msra.mxu0 0.0
  %1539 = vmatpush.msra.mxu0 0.0
  %1540 = vmatpush.msra.mxu0 0.0
  %1541 = vmatpush.msra.mxu0 0.0
  %1542 = vmatpush.msra.mxu0 0.0
  %1543 = vmatpush.msra.mxu0 0.0
  %1544 = vmatpush.msra.mxu0 0.0
  %1545 = vmatpush.msra.mxu0 0.0
  %1546 = vmatpush.msra.mxu0 0.0
  %1547 = vmatpush.msra.mxu0 0.0
  %1548 = vmatpush.msra.mxu0 %v1443
  %1549 = vmatpush.msra.mxu0 %v1440
  %1550 = vmatmul.f32.gmra.mxu0 %v257
  %v1551 = vpop.f32.mrf.mxu0
  %v1552 = vadd.f32 0.0, %v1551
  %1553 = vmatmul.f32.gmra.mxu0 %v260
  %v1554 = vpop.f32.mrf.mxu0
  %v1555 = vadd.f32 0.0, %v1554
  %1556 = vmatmul.f32.gmra.mxu0 %v263
  %v1557 = vpop.f32.mrf.mxu0
  %v1558 = vadd.f32 0.0, %v1557
  %1559 = vmatmul.f32.gmra.mxu0 %v266
  %v1560 = vpop.f32.mrf.mxu0
  %v1561 = vadd.f32 0.0, %v1560
  %1562 = vmatmul.f32.gmra.mxu0 %v269
  %v1563 = vpop.f32.mrf.mxu0
  %v1564 = vadd.f32 0.0, %v1563
  %1565 = vmatmul.f32.gmra.mxu0 %v272
  %v1566 = vpop.f32.mrf.mxu0
  %v1567 = vadd.f32 0.0, %v1566
  %1568 = vmatmul.f32.gmra.mxu0 %v275
  %v1569 = vpop.f32.mrf.mxu0
  %v1570 = vadd.f32 0.0, %v1569
  %1571 = vmatmul.f32.gmra.mxu0 %v278
  %v1572 = vpop.f32.mrf.mxu0
  %v1573 = vadd.f32 0.0, %v1572
  %1574 = vmatmul.f32.gmra.mxu0 %v281
  %v1575 = vpop.f32.mrf.mxu0
  %v1576 = vadd.f32 0.0, %v1575
  %1577 = vmatmul.f32.gmra.mxu0 %v284
  %v1578 = vpop.f32.mrf.mxu0
  %v1579 = vadd.f32 0.0, %v1578
  %1580 = vmatmul.f32.gmra.mxu0 %v287
  %v1581 = vpop.f32.mrf.mxu0
  %v1582 = vadd.f32 0.0, %v1581
  %1583 = vmatmul.f32.gmra.mxu0 %v290
  %v1584 = vpop.f32.mrf.mxu0
  %v1585 = vadd.f32 0.0, %v1584
  %1586 = vmatmul.f32.gmra.mxu0 %v293
  %v1587 = vpop.f32.mrf.mxu0
  %v1588 = vadd.f32 0.0, %v1587
  %1589 = vmatmul.f32.gmra.mxu0 %v296
  %v1590 = vpop.f32.mrf.mxu0
  %v1591 = vadd.f32 0.0, %v1590
  %1592 = vmatmul.f32.gmra.mxu0 %v299
  %v1593 = vpop.f32.mrf.mxu0
  %v1594 = vadd.f32 0.0, %v1593
  %1595 = vmatmul.f32.gmra.mxu0 %v302
  %v1596 = vpop.f32.mrf.mxu0
  %v1597 = vadd.f32 0.0, %v1596
  %1598 = vdwg.mxu0
  %v1599 = vmul.f32 %v1552, %v231
  %v1600 = vmul.f32 %v1555, %v232
  %v1601 = vmul.f32 %v1558, %v233
  %v1602 = vmul.f32 %v1561, %v234
  %v1603 = vmul.f32 %v1564, %v235
  %v1604 = vmul.f32 %v1567, %v236
  %v1605 = vmul.f32 %v1570, %v237
  %v1606 = vmul.f32 %v1573, %v238
  %v1607 = vmul.f32 %v1576, %v239
  %v1608 = vmul.f32 %v1579, %v240
  %v1609 = vmul.f32 %v1582, %v241
  %v1610 = vmul.f32 %v1585, %v242
  %v1611 = vmul.f32 %v1588, %v243
  %v1612 = vmul.f32 %v1591, %v244
  %v1613 = vmul.f32 %v1594, %v245
  %v1614 = vmul.f32 %v1597, %v246
  %v1615 = vsel %vm162, %v1417, 0
  %v1617 = vsel %vm162, %v1420, 0
  %v1620 = vsel %vm162, %v1518, 0
  %v1623 = vsel %vm162, %v1519, 0
  %v1626 = vsel %vm162, %v1520, 0
  %v1629 = vsel %vm162, %v1521, 0
  %v1632 = vsel %vm162, %v1522, 0
  %v1635 = vsel %vm162, %v1523, 0
  %v1638 = vsel %vm162, %v1524, 0
  %v1641 = vsel %vm162, %v1525, 0
  %v1644 = vsel %vm162, %v1526, 0
  %v1647 = vsel %vm162, %v1527, 0
  %v1650 = vsel %vm162, %v1528, 0
  %v1653 = vsel %vm162, %v1529, 0
  %v1656 = vsel %vm162, %v1530, 0
  %v1659 = vsel %vm162, %v1531, 0
  %v1662 = vsel %vm162, %v1532, 0
  %v1665 = vsel %vm162, %v1533, 0
  %1667 = vmatpush.xpose.msra.mxu0 %v1665
  %1668 = vmatpush.xpose.msra.mxu0 %v1662
  %1669 = vmatpush.xpose.msra.mxu0 %v1659
  %1670 = vmatpush.xpose.msra.mxu0 %v1656
  %1671 = vmatpush.xpose.msra.mxu0 %v1653
  %1672 = vmatpush.xpose.msra.mxu0 %v1650
  %1673 = vmatpush.xpose.msra.mxu0 %v1647
  %1674 = vmatpush.xpose.msra.mxu0 %v1644
  %1675 = vmatpush.xpose.msra.mxu0 %v1641
  %1676 = vmatpush.xpose.msra.mxu0 %v1638
  %1677 = vmatpush.xpose.msra.mxu0 %v1635
  %1678 = vmatpush.xpose.msra.mxu0 %v1632
  %1679 = vmatpush.xpose.msra.mxu0 %v1629
  %1680 = vmatpush.xpose.msra.mxu0 %v1626
  %1681 = vmatpush.xpose.msra.mxu0 %v1623
  %1682 = vmatpush.xpose.msra.mxu0 %v1620
  %1683 = vmatmul.f32.gmra.mxu0 %v1615
  %v1684 = vpop.f32.mrf.mxu0
  %v1685 = vadd.f32 0.0, %v1684
  %1686 = vmatmul.f32.gmra.mxu0 %v1617
  %v1687 = vpop.f32.mrf.mxu0
  %v1688 = vadd.f32 0.0, %v1687
  %1689 = vdwg.mxu0
  %v1690 = vmul.f32 %v1685, 0.35355338
  %v1691 = vmul.f32 %v1688, 0.35355338
  %v1692 = vadd.f32 %v1690, %v466
  %v1693 = vadd.f32 %v1691, %v467
  %1694 = vmax.xlane.f32.xlu0 %v1692
  %v1695 = vpop.xlane.xlu0 %1694
  %1696 = vmax.xlane.f32.xlu0 %v1693
  %v1697 = vpop.xlane.xlu0 %1696
  %v1698 = vsub.f32 %v1692, %v1695
  %v1699 = vsub.f32 %v1693, %v1697
  %v1700 = vmul.f32 %v1698, 1.442695
  %v1701 = vpow.pop %v1700
  %v1702 = vmul.f32 %v1699, 1.442695
  %v1703 = vpow.pop %v1702
  %1704 = vmatpush.msra.mxu0 %v1614
  %1705 = vmatpush.msra.mxu0 %v1613
  %1706 = vmatpush.msra.mxu0 %v1612
  %1707 = vmatpush.msra.mxu0 %v1611
  %1708 = vmatpush.msra.mxu0 %v1610
  %1709 = vmatpush.msra.mxu0 %v1609
  %1710 = vmatpush.msra.mxu0 %v1608
  %1711 = vmatpush.msra.mxu0 %v1607
  %1712 = vmatpush.msra.mxu0 %v1606
  %1713 = vmatpush.msra.mxu0 %v1605
  %1714 = vmatpush.msra.mxu0 %v1604
  %1715 = vmatpush.msra.mxu0 %v1603
  %1716 = vmatpush.msra.mxu0 %v1602
  %1717 = vmatpush.msra.mxu0 %v1601
  %1718 = vmatpush.msra.mxu0 %v1600
  %1719 = vmatpush.msra.mxu0 %v1599
  %1720 = vmatmul.f32.gmra.mxu0 %v1701
  %v1721 = vpop.f32.mrf.mxu0
  %v1722 = vadd.f32 0.0, %v1721
  %1723 = vmatmul.f32.gmra.mxu0 %v1703
  %v1724 = vpop.f32.mrf.mxu0
  %v1725 = vadd.f32 0.0, %v1724
  %1726 = vdwg.mxu0
  %1727 = vmatpush.msra.mxu0 %v246
  %1728 = vmatpush.msra.mxu0 %v245
  %1729 = vmatpush.msra.mxu0 %v244
  %1730 = vmatpush.msra.mxu0 %v243
  %1731 = vmatpush.msra.mxu0 %v242
  %1732 = vmatpush.msra.mxu0 %v241
  %1733 = vmatpush.msra.mxu0 %v240
  %1734 = vmatpush.msra.mxu0 %v239
  %1735 = vmatpush.msra.mxu0 %v238
  %1736 = vmatpush.msra.mxu0 %v237
  %1737 = vmatpush.msra.mxu0 %v236
  %1738 = vmatpush.msra.mxu0 %v235
  %1739 = vmatpush.msra.mxu0 %v234
  %1740 = vmatpush.msra.mxu0 %v233
  %1741 = vmatpush.msra.mxu0 %v232
  %1742 = vmatpush.msra.mxu0 %v231
  %1743 = vmatmul.f32.gmra.mxu0 %v1701
  %v1744 = vpop.f32.mrf.mxu0
  %v1745 = vadd.f32 0.0, %v1744
  %1746 = vmatmul.f32.gmra.mxu0 %v1703
  %v1747 = vpop.f32.mrf.mxu0
  %v1748 = vadd.f32 0.0, %v1747
  %1749 = vdwg.mxu0
  %v1750 = vrcp.pop %v1745
  %v1751 = vrcp.pop %v1748
  %v1752 = vmul.f32 %v1722, %v1750
  %v1753 = vmul.f32 %v1725, %v1751
  %v1755 = vsel %vm162, %v1752, 0
  %v1758 = vsel %vm162, %v1753, 0
  %1760 = vmatpush.msra.mxu0 0.0
  %1761 = vmatpush.msra.mxu0 0.0
  %1762 = vmatpush.msra.mxu0 0.0
  %1763 = vmatpush.msra.mxu0 0.0
  %1764 = vmatpush.msra.mxu0 0.0
  %1765 = vmatpush.msra.mxu0 0.0
  %1766 = vmatpush.msra.mxu0 0.0
  %1767 = vmatpush.msra.mxu0 0.0
  %1768 = vmatpush.msra.mxu0 %v614
  %1769 = vmatpush.msra.mxu0 %v613
  %1770 = vmatpush.msra.mxu0 %v612
  %1771 = vmatpush.msra.mxu0 %v611
  %1772 = vmatpush.msra.mxu0 %v610
  %1773 = vmatpush.msra.mxu0 %v609
  %1774 = vmatpush.msra.mxu0 %v608
  %1775 = vmatpush.msra.mxu0 %v607
  %1776 = vmatmul.f32.gmra.mxu0 %v1755
  %v1777 = vpop.f32.mrf.mxu0
  %v1778 = vadd.f32 %v617, %v1777
  %1779 = vmatmul.f32.gmra.mxu0 %v1758
  %v1780 = vpop.f32.mrf.mxu0
  %v1781 = vadd.f32 %v617, %v1780
  %1782 = vdwg.mxu0
  %v1783 = vadd.f32 %v1391, %v1778
  %v1784 = vadd.f32 %v1392, %v1781
  %v1785 = vsel %vm162, %v1783, 0.0
  %1786 = vadd.xlane.f32.xlu0 %v1785
  %v1787 = vpop.xlane.xlu0 %1786
  %v1788 = vsel %vm162, %v1784, 0.0
  %1789 = vadd.xlane.f32.xlu0 %v1788
  %v1790 = vpop.xlane.xlu0 %1789
  %v1791 = vmul.f32 %v1787, %v664
  %v1792 = vmul.f32 %v1790, %v664
  %v1793 = vsub.f32 %v1783, %v1791
  %v1794 = vsub.f32 %v1784, %v1792
  %v1795 = vmul.f32 %v1793, %v1793
  %v1796 = vmul.f32 %v1794, %v1794
  %v1797 = vsel %vm162, %v1795, 0.0
  %1798 = vadd.xlane.f32.xlu0 %v1797
  %v1799 = vpop.xlane.xlu0 %1798
  %v1800 = vsel %vm162, %v1796, 0.0
  %1801 = vadd.xlane.f32.xlu0 %v1800
  %v1802 = vpop.xlane.xlu0 %1801
  %v1803 = vmul.f32 %v1799, %v664
  %v1804 = vmul.f32 %v1802, %v664
  %v1805 = vadd.f32 %v1803, 1e-05
  %v1806 = vadd.f32 %v1804, 1e-05
  %v1807 = vrsqrt.pop %v1805
  %v1808 = vmul.f32 %v1807, %v1805
  %v1809 = vmul.f32 %v1808, %v1807
  %v1810 = vmul.f32 0.5, %v1809
  %v1811 = vsub.f32 1.5, %v1810
  %v1812 = vmul.f32 %v1807, %v1811
  %vm1813 = vweird.f32 %v1805
  %vm1814 = vweird.f32 %v1807
  %vm1815 = vmor %vm1813, %vm1814
  %v1816 = vsel %vm1815, %v1807, %v1812
  %v1817 = vrsqrt.pop %v1806
  %v1818 = vmul.f32 %v1817, %v1806
  %v1819 = vmul.f32 %v1818, %v1817
  %v1820 = vmul.f32 0.5, %v1819
  %v1821 = vsub.f32 1.5, %v1820
  %v1822 = vmul.f32 %v1817, %v1821
  %vm1823 = vweird.f32 %v1806
  %vm1824 = vweird.f32 %v1817
  %vm1825 = vmor %vm1823, %vm1824
  %v1826 = vsel %vm1825, %v1817, %v1822
  %v1827 = vmul.f32 %v1793, %v1816
  %v1828 = vmul.f32 %v1794, %v1826
  %v1829 = vmul.f32 %v1827, %v703
  %v1830 = vmul.f32 %v1828, %v703
  %v1831 = vadd.f32 %v1829, %v706
  %v1832 = vadd.f32 %v1830, %v706
  %v1834 = vsel %vm162, %v1831, 0
  %v1837 = vsel %vm162, %v1832, 0
  %1839 = vmatpush.msra.mxu0 0.0
  %1840 = vmatpush.msra.mxu0 0.0
  %1841 = vmatpush.msra.mxu0 0.0
  %1842 = vmatpush.msra.mxu0 0.0
  %1843 = vmatpush.msra.mxu0 0.0
  %1844 = vmatpush.msra.mxu0 0.0
  %1845 = vmatpush.msra.mxu0 0.0
  %1846 = vmatpush.msra.mxu0 0.0
  %1847 = vmatpush.msra.mxu0 %v716
  %1848 = vmatpush.msra.mxu0 %v715
  %1849 = vmatpush.msra.mxu0 %v714
  %1850 = vmatpush.msra.mxu0 %v713
  %1851 = vmatpush.msra.mxu0 %v712
  %1852 = vmatpush.msra.mxu0 %v711
  %1853 = vmatpush.msra.mxu0 %v710
  %1854 = vmatpush.msra.mxu0 %v709
  %1855 = vmatmul.f32.gmra.mxu0 %v1834
  %v1856 = vpop.f32.mrf.mxu0
  %v1857 = vadd.f32 %v719, %v1856
  %1858 = vmatmul.f32.gmra.mxu0 %v1837
  %v1859 = vpop.f32.mrf.mxu0
  %v1860 = vadd.f32 %v719, %v1859
  %1861 = vdwg.mxu0
  %v1862 = vmax.f32 %v1857, 0.0
  %v1863 = vmax.f32 %v1860, 0.0
  %1864 = vmatpush.msra.mxu0 %v767
  %1865 = vmatpush.msra.mxu0 %v766
  %1866 = vmatpush.msra.mxu0 %v765
  %1867 = vmatpush.msra.mxu0 %v764
  %1868 = vmatpush.msra.mxu0 %v763
  %1869 = vmatpush.msra.mxu0 %v762
  %1870 = vmatpush.msra.mxu0 %v761
  %1871 = vmatpush.msra.mxu0 %v760
  %1872 = vmatpush.msra.mxu0 %v759
  %1873 = vmatpush.msra.mxu0 %v758
  %1874 = vmatpush.msra.mxu0 %v757
  %1875 = vmatpush.msra.mxu0 %v756
  %1876 = vmatpush.msra.mxu0 %v755
  %1877 = vmatpush.msra.mxu0 %v754
  %1878 = vmatpush.msra.mxu0 %v753
  %1879 = vmatpush.msra.mxu0 %v752
  %1880 = vmatmul.f32.gmra.mxu0 %v1862
  %v1881 = vpop.f32.mrf.mxu0
  %v1882 = vadd.f32 %v770, %v1881
  %1883 = vmatmul.f32.gmra.mxu0 %v1863
  %v1884 = vpop.f32.mrf.mxu0
  %v1885 = vadd.f32 %v770, %v1884
  %1886 = vdwg.mxu0
  %v1887 = vadd.f32 %v1831, %v1882
  %v1888 = vadd.f32 %v1832, %v1885
  %v1889 = vsel %vm162, %v1887, 0.0
  %1890 = vadd.xlane.f32.xlu0 %v1889
  %v1891 = vpop.xlane.xlu0 %1890
  %v1892 = vsel %vm162, %v1888, 0.0
  %1893 = vadd.xlane.f32.xlu0 %v1892
  %v1894 = vpop.xlane.xlu0 %1893
  %v1895 = vmul.f32 %v1891, %v664
  %v1896 = vmul.f32 %v1894, %v664
  %v1897 = vsub.f32 %v1887, %v1895
  %v1898 = vsub.f32 %v1888, %v1896
  %v1899 = vmul.f32 %v1897, %v1897
  %v1900 = vmul.f32 %v1898, %v1898
  %v1901 = vsel %vm162, %v1899, 0.0
  %1902 = vadd.xlane.f32.xlu0 %v1901
  %v1903 = vpop.xlane.xlu0 %1902
  %v1904 = vsel %vm162, %v1900, 0.0
  %1905 = vadd.xlane.f32.xlu0 %v1904
  %v1906 = vpop.xlane.xlu0 %1905
  %v1907 = vmul.f32 %v1903, %v664
  %v1908 = vmul.f32 %v1906, %v664
  %v1909 = vadd.f32 %v1907, 1e-05
  %v1910 = vadd.f32 %v1908, 1e-05
  %v1911 = vrsqrt.pop %v1909
  %v1912 = vmul.f32 %v1911, %v1909
  %v1913 = vmul.f32 %v1912, %v1911
  %v1914 = vmul.f32 0.5, %v1913
  %v1915 = vsub.f32 1.5, %v1914
  %v1916 = vmul.f32 %v1911, %v1915
  %vm1917 = vweird.f32 %v1909
  %vm1918 = vweird.f32 %v1911
  %vm1919 = vmor %vm1917, %vm1918
  %v1920 = vsel %vm1919, %v1911, %v1916
  %v1921 = vrsqrt.pop %v1910
  %v1922 = vmul.f32 %v1921, %v1910
  %v1923 = vmul.f32 %v1922, %v1921
  %v1924 = vmul.f32 0.5, %v1923
  %v1925 = vsub.f32 1.5, %v1924
  %v1926 = vmul.f32 %v1921, %v1925
  %vm1927 = vweird.f32 %v1910
  %vm1928 = vweird.f32 %v1921
  %vm1929 = vmor %vm1927, %vm1928
  %v1930 = vsel %vm1929, %v1921, %v1926
  %v1931 = vmul.f32 %v1897, %v1920
  %v1932 = vmul.f32 %v1898, %v1930
  %v1933 = vmul.f32 %v1931, %v843
  %v1934 = vmul.f32 %v1932, %v843
  %v1935 = vadd.f32 %v1933, %v846
  %v1936 = vadd.f32 %v1934, %v846
  %v1937 = vld [vmem:[%s45] sm:$0xff]
  %v1938 = vld [vmem:[%s45 + $0x8] sm:$0xff]
  %v1939 = vld [vmem:[%s45 + $0x10] sm:$0xff]
  %v1940 = vld [vmem:[%s45 + $0x18] sm:$0xff]
  %v1941 = vld [vmem:[%s45 + $0x20] sm:$0xff]
  %v1942 = vld [vmem:[%s45 + $0x28] sm:$0xff]
  %v1943 = vld [vmem:[%s45 + $0x30] sm:$0xff]
  %v1944 = vld [vmem:[%s45 + $0x38] sm:$0xff]
  %v1945 = vld [vmem:[%s47] sm:$0x1]
  %v1947 = vperm.slane %v1945, 0
  %v1950 = vsel %vm162, %v1935, 0
  %v1953 = vsel %vm162, %v1936, 0
  %1955 = vmatpush.msra.mxu0 0.0
  %1956 = vmatpush.msra.mxu0 0.0
  %1957 = vmatpush.msra.mxu0 0.0
  %1958 = vmatpush.msra.mxu0 0.0
  %1959 = vmatpush.msra.mxu0 0.0
  %1960 = vmatpush.msra.mxu0 0.0
  %1961 = vmatpush.msra.mxu0 0.0
  %1962 = vmatpush.msra.mxu0 0.0
  %1963 = vmatpush.msra.mxu0 %v1944
  %1964 = vmatpush.msra.mxu0 %v1943
  %1965 = vmatpush.msra.mxu0 %v1942
  %1966 = vmatpush.msra.mxu0 %v1941
  %1967 = vmatpush.msra.mxu0 %v1940
  %1968 = vmatpush.msra.mxu0 %v1939
  %1969 = vmatpush.msra.mxu0 %v1938
  %1970 = vmatpush.msra.mxu0 %v1937
  %1971 = vmatmul.f32.gmra.mxu0 %v1950
  %v1972 = vpop.f32.mrf.mxu0
  %v1973 = vadd.f32 %v1947, %v1972
  %1974 = vmatmul.f32.gmra.mxu0 %v1953
  %v1975 = vpop.f32.mrf.mxu0
  %v1976 = vadd.f32 %v1947, %v1975
  %1977 = vdwg.mxu0
  %1978 = vmatpush.msra.mxu0 0.0
  %1979 = vmatpush.msra.mxu0 0.0
  %1980 = vmatpush.msra.mxu0 0.0
  %1981 = vmatpush.msra.mxu0 0.0
  %1982 = vmatpush.msra.mxu0 0.0
  %1983 = vmatpush.msra.mxu0 0.0
  %1984 = vmatpush.msra.mxu0 0.0
  %1985 = vmatpush.msra.mxu0 0.0
  %1986 = vmatpush.msra.mxu0 0.0
  %1987 = vmatpush.msra.mxu0 0.0
  %1988 = vmatpush.msra.mxu0 0.0
  %1989 = vmatpush.msra.mxu0 0.0
  %1990 = vmatpush.msra.mxu0 0.0
  %1991 = vmatpush.msra.mxu0 0.0
  %1992 = vmatpush.msra.mxu0 %v1976
  %1993 = vmatpush.msra.mxu0 %v1973
  %1994 = vmatmul.f32.gmra.mxu0 %v257
  %v1995 = vpop.f32.mrf.mxu0
  %v1996 = vadd.f32 0.0, %v1995
  %1997 = vmatmul.f32.gmra.mxu0 %v260
  %v1998 = vpop.f32.mrf.mxu0
  %v1999 = vadd.f32 0.0, %v1998
  %2000 = vmatmul.f32.gmra.mxu0 %v263
  %v2001 = vpop.f32.mrf.mxu0
  %v2002 = vadd.f32 0.0, %v2001
  %2003 = vmatmul.f32.gmra.mxu0 %v266
  %v2004 = vpop.f32.mrf.mxu0
  %v2005 = vadd.f32 0.0, %v2004
  %2006 = vmatmul.f32.gmra.mxu0 %v269
  %v2007 = vpop.f32.mrf.mxu0
  %v2008 = vadd.f32 0.0, %v2007
  %2009 = vmatmul.f32.gmra.mxu0 %v272
  %v2010 = vpop.f32.mrf.mxu0
  %v2011 = vadd.f32 0.0, %v2010
  %2012 = vmatmul.f32.gmra.mxu0 %v275
  %v2013 = vpop.f32.mrf.mxu0
  %v2014 = vadd.f32 0.0, %v2013
  %2015 = vmatmul.f32.gmra.mxu0 %v278
  %v2016 = vpop.f32.mrf.mxu0
  %v2017 = vadd.f32 0.0, %v2016
  %2018 = vmatmul.f32.gmra.mxu0 %v281
  %v2019 = vpop.f32.mrf.mxu0
  %v2020 = vadd.f32 0.0, %v2019
  %2021 = vmatmul.f32.gmra.mxu0 %v284
  %v2022 = vpop.f32.mrf.mxu0
  %v2023 = vadd.f32 0.0, %v2022
  %2024 = vmatmul.f32.gmra.mxu0 %v287
  %v2025 = vpop.f32.mrf.mxu0
  %v2026 = vadd.f32 0.0, %v2025
  %2027 = vmatmul.f32.gmra.mxu0 %v290
  %v2028 = vpop.f32.mrf.mxu0
  %v2029 = vadd.f32 0.0, %v2028
  %2030 = vmatmul.f32.gmra.mxu0 %v293
  %v2031 = vpop.f32.mrf.mxu0
  %v2032 = vadd.f32 0.0, %v2031
  %2033 = vmatmul.f32.gmra.mxu0 %v296
  %v2034 = vpop.f32.mrf.mxu0
  %v2035 = vadd.f32 0.0, %v2034
  %2036 = vmatmul.f32.gmra.mxu0 %v299
  %v2037 = vpop.f32.mrf.mxu0
  %v2038 = vadd.f32 0.0, %v2037
  %2039 = vmatmul.f32.gmra.mxu0 %v302
  %v2040 = vpop.f32.mrf.mxu0
  %v2041 = vadd.f32 0.0, %v2040
  %2042 = vdwg.mxu0
  %v2043 = vmul.f32 %v1996, %v231
  %v2044 = vmul.f32 %v1999, %v232
  %v2045 = vmul.f32 %v2002, %v233
  %v2046 = vmul.f32 %v2005, %v234
  %v2047 = vmul.f32 %v2008, %v235
  %v2048 = vmul.f32 %v2011, %v236
  %v2049 = vmul.f32 %v2014, %v237
  %v2050 = vmul.f32 %v2017, %v238
  %v2051 = vmul.f32 %v2020, %v239
  %v2052 = vmul.f32 %v2023, %v240
  %v2053 = vmul.f32 %v2026, %v241
  %v2054 = vmul.f32 %v2029, %v242
  %v2055 = vmul.f32 %v2032, %v243
  %v2056 = vmul.f32 %v2035, %v244
  %v2057 = vmul.f32 %v2038, %v245
  %v2058 = vmul.f32 %v2041, %v246
  %2061 = vrot.lane.b32.xlu0 %v1973, 64
  %v2062 = vpop.permute.xlu0 %2061
  %2063 = vrot.lane.b32.xlu0 %v1976, 64
  %v2064 = vpop.permute.xlu0 %2063
  %2067 = vmatpush.msra.mxu0 0.0
  %2068 = vmatpush.msra.mxu0 0.0
  %2069 = vmatpush.msra.mxu0 0.0
  %2070 = vmatpush.msra.mxu0 0.0
  %2071 = vmatpush.msra.mxu0 0.0
  %2072 = vmatpush.msra.mxu0 0.0
  %2073 = vmatpush.msra.mxu0 0.0
  %2074 = vmatpush.msra.mxu0 0.0
  %2075 = vmatpush.msra.mxu0 0.0
  %2076 = vmatpush.msra.mxu0 0.0
  %2077 = vmatpush.msra.mxu0 0.0
  %2078 = vmatpush.msra.mxu0 0.0
  %2079 = vmatpush.msra.mxu0 0.0
  %2080 = vmatpush.msra.mxu0 0.0
  %2081 = vmatpush.msra.mxu0 %v2064
  %2082 = vmatpush.msra.mxu0 %v2062
  %2083 = vmatmul.f32.gmra.mxu0 %v257
  %v2084 = vpop.f32.mrf.mxu0
  %v2085 = vadd.f32 0.0, %v2084
  %2086 = vmatmul.f32.gmra.mxu0 %v260
  %v2087 = vpop.f32.mrf.mxu0
  %v2088 = vadd.f32 0.0, %v2087
  %2089 = vmatmul.f32.gmra.mxu0 %v263
  %v2090 = vpop.f32.mrf.mxu0
  %v2091 = vadd.f32 0.0, %v2090
  %2092 = vmatmul.f32.gmra.mxu0 %v266
  %v2093 = vpop.f32.mrf.mxu0
  %v2094 = vadd.f32 0.0, %v2093
  %2095 = vmatmul.f32.gmra.mxu0 %v269
  %v2096 = vpop.f32.mrf.mxu0
  %v2097 = vadd.f32 0.0, %v2096
  %2098 = vmatmul.f32.gmra.mxu0 %v272
  %v2099 = vpop.f32.mrf.mxu0
  %v2100 = vadd.f32 0.0, %v2099
  %2101 = vmatmul.f32.gmra.mxu0 %v275
  %v2102 = vpop.f32.mrf.mxu0
  %v2103 = vadd.f32 0.0, %v2102
  %2104 = vmatmul.f32.gmra.mxu0 %v278
  %v2105 = vpop.f32.mrf.mxu0
  %v2106 = vadd.f32 0.0, %v2105
  %2107 = vmatmul.f32.gmra.mxu0 %v281
  %v2108 = vpop.f32.mrf.mxu0
  %v2109 = vadd.f32 0.0, %v2108
  %2110 = vmatmul.f32.gmra.mxu0 %v284
  %v2111 = vpop.f32.mrf.mxu0
  %v2112 = vadd.f32 0.0, %v2111
  %2113 = vmatmul.f32.gmra.mxu0 %v287
  %v2114 = vpop.f32.mrf.mxu0
  %v2115 = vadd.f32 0.0, %v2114
  %2116 = vmatmul.f32.gmra.mxu0 %v290
  %v2117 = vpop.f32.mrf.mxu0
  %v2118 = vadd.f32 0.0, %v2117
  %2119 = vmatmul.f32.gmra.mxu0 %v293
  %v2120 = vpop.f32.mrf.mxu0
  %v2121 = vadd.f32 0.0, %v2120
  %2122 = vmatmul.f32.gmra.mxu0 %v296
  %v2123 = vpop.f32.mrf.mxu0
  %v2124 = vadd.f32 0.0, %v2123
  %2125 = vmatmul.f32.gmra.mxu0 %v299
  %v2126 = vpop.f32.mrf.mxu0
  %v2127 = vadd.f32 0.0, %v2126
  %2128 = vmatmul.f32.gmra.mxu0 %v302
  %v2129 = vpop.f32.mrf.mxu0
  %v2130 = vadd.f32 0.0, %v2129
  %2131 = vdwg.mxu0
  %v2132 = vmul.f32 %v2085, %v231
  %v2133 = vmul.f32 %v2088, %v232
  %v2134 = vmul.f32 %v2091, %v233
  %v2135 = vmul.f32 %v2094, %v234
  %v2136 = vmul.f32 %v2097, %v235
  %v2137 = vmul.f32 %v2100, %v236
  %v2138 = vmul.f32 %v2103, %v237
  %v2139 = vmul.f32 %v2106, %v238
  %v2140 = vmul.f32 %v2109, %v239
  %v2141 = vmul.f32 %v2112, %v240
  %v2142 = vmul.f32 %v2115, %v241
  %v2143 = vmul.f32 %v2118, %v242
  %v2144 = vmul.f32 %v2121, %v243
  %v2145 = vmul.f32 %v2124, %v244
  %v2146 = vmul.f32 %v2127, %v245
  %v2147 = vmul.f32 %v2130, %v246
  %v2148 = vld [vmem:[%s3] sm:$0xff]
  %v2149 = vld [vmem:[%s3 + $0x8] sm:$0xff]
  %v2150 = vld [vmem:[%s33] sm:$0xff]
  %v2151 = vld [vmem:[%s33 + $0x8] sm:$0xff]
  %v2152 = vld [vmem:[%s33 + $0x10] sm:$0xff]
  %v2153 = vld [vmem:[%s33 + $0x18] sm:$0xff]
  %v2154 = vld [vmem:[%s33 + $0x20] sm:$0xff]
  %v2155 = vld [vmem:[%s33 + $0x28] sm:$0xff]
  %v2156 = vld [vmem:[%s33 + $0x30] sm:$0xff]
  %v2157 = vld [vmem:[%s33 + $0x38] sm:$0xff]
  %v2158 = vld [vmem:[%s33 + $0x40] sm:$0xff]
  %v2159 = vld [vmem:[%s33 + $0x48] sm:$0xff]
  %v2160 = vld [vmem:[%s33 + $0x50] sm:$0xff]
  %v2161 = vld [vmem:[%s33 + $0x58] sm:$0xff]
  %v2162 = vld [vmem:[%s33 + $0x60] sm:$0xff]
  %v2163 = vld [vmem:[%s33 + $0x68] sm:$0xff]
  %v2164 = vld [vmem:[%s33 + $0x70] sm:$0xff]
  %v2165 = vld [vmem:[%s33 + $0x78] sm:$0xff]
  %v2166 = vld [vmem:[%s35] sm:$0x3]
  %v2168 = vperm.slane %v2166, 0
  %v2169 = vperm.slane %v2166, 1
  %v2173 = vsel %vm162, %v2148, 0
  %v2176 = vsel %vm162, %v2149, 0
  %2178 = vmatpush.msra.mxu0 0.0
  %2179 = vmatpush.msra.mxu0 0.0
  %2180 = vmatpush.msra.mxu0 0.0
  %2181 = vmatpush.msra.mxu0 0.0
  %2182 = vmatpush.msra.mxu0 0.0
  %2183 = vmatpush.msra.mxu0 0.0
  %2184 = vmatpush.msra.mxu0 0.0
  %2185 = vmatpush.msra.mxu0 0.0
  %2186 = vmatpush.msra.mxu0 %v2164
  %2187 = vmatpush.msra.mxu0 %v2162
  %2188 = vmatpush.msra.mxu0 %v2160
  %2189 = vmatpush.msra.mxu0 %v2158
  %2190 = vmatpush.msra.mxu0 %v2156
  %2191 = vmatpush.msra.mxu0 %v2154
  %2192 = vmatpush.msra.mxu0 %v2152
  %2193 = vmatpush.msra.mxu0 %v2150
  %2194 = vmatmul.f32.gmra.mxu0 %v2173
  %v2195 = vpop.f32.mrf.mxu0
  %v2196 = vadd.f32 %v2168, %v2195
  %2197 = vmatmul.f32.gmra.mxu0 %v2176
  %v2198 = vpop.f32.mrf.mxu0
  %v2199 = vadd.f32 %v2168, %v2198
  %2200 = vdwg.mxu0
  %2201 = vmatpush.msra.mxu0 0.0
  %2202 = vmatpush.msra.mxu0 0.0
  %2203 = vmatpush.msra.mxu0 0.0
  %2204 = vmatpush.msra.mxu0 0.0
  %2205 = vmatpush.msra.mxu0 0.0
  %2206 = vmatpush.msra.mxu0 0.0
  %2207 = vmatpush.msra.mxu0 0.0
  %2208 = vmatpush.msra.mxu0 0.0
  %2209 = vmatpush.msra.mxu0 %v2165
  %2210 = vmatpush.msra.mxu0 %v2163
  %2211 = vmatpush.msra.mxu0 %v2161
  %2212 = vmatpush.msra.mxu0 %v2159
  %2213 = vmatpush.msra.mxu0 %v2157
  %2214 = vmatpush.msra.mxu0 %v2155
  %2215 = vmatpush.msra.mxu0 %v2153
  %2216 = vmatpush.msra.mxu0 %v2151
  %2217 = vmatmul.f32.gmra.mxu0 %v2173
  %v2218 = vpop.f32.mrf.mxu0
  %v2219 = vadd.f32 %v2169, %v2218
  %2220 = vmatmul.f32.gmra.mxu0 %v2176
  %v2221 = vpop.f32.mrf.mxu0
  %v2222 = vadd.f32 %v2169, %v2221
  %2223 = vdwg.mxu0
  %2226 = vrot.lane.b32.xlu0 %v2196, 64
  %v2227 = vpop.permute.xlu0 %2226
  %2228 = vrot.lane.b32.xlu0 %v2199, 64
  %v2229 = vpop.permute.xlu0 %2228
  %2232 = vmatpush.msra.mxu0 0.0
  %2233 = vmatpush.msra.mxu0 0.0
  %2234 = vmatpush.msra.mxu0 0.0
  %2235 = vmatpush.msra.mxu0 0.0
  %2236 = vmatpush.msra.mxu0 0.0
  %2237 = vmatpush.msra.mxu0 0.0
  %2238 = vmatpush.msra.mxu0 0.0
  %2239 = vmatpush.msra.mxu0 0.0
  %2240 = vmatpush.msra.mxu0 0.0
  %2241 = vmatpush.msra.mxu0 0.0
  %2242 = vmatpush.msra.mxu0 0.0
  %2243 = vmatpush.msra.mxu0 0.0
  %2244 = vmatpush.msra.mxu0 0.0
  %2245 = vmatpush.msra.mxu0 0.0
  %2246 = vmatpush.msra.mxu0 %v2229
  %2247 = vmatpush.msra.mxu0 %v2227
  %2248 = vmatmul.f32.gmra.mxu0 %v257
  %v2249 = vpop.f32.mrf.mxu0
  %v2250 = vadd.f32 0.0, %v2249
  %2251 = vmatmul.f32.gmra.mxu0 %v260
  %v2252 = vpop.f32.mrf.mxu0
  %v2253 = vadd.f32 0.0, %v2252
  %2254 = vmatmul.f32.gmra.mxu0 %v263
  %v2255 = vpop.f32.mrf.mxu0
  %v2256 = vadd.f32 0.0, %v2255
  %2257 = vmatmul.f32.gmra.mxu0 %v266
  %v2258 = vpop.f32.mrf.mxu0
  %v2259 = vadd.f32 0.0, %v2258
  %2260 = vmatmul.f32.gmra.mxu0 %v269
  %v2261 = vpop.f32.mrf.mxu0
  %v2262 = vadd.f32 0.0, %v2261
  %2263 = vmatmul.f32.gmra.mxu0 %v272
  %v2264 = vpop.f32.mrf.mxu0
  %v2265 = vadd.f32 0.0, %v2264
  %2266 = vmatmul.f32.gmra.mxu0 %v275
  %v2267 = vpop.f32.mrf.mxu0
  %v2268 = vadd.f32 0.0, %v2267
  %2269 = vmatmul.f32.gmra.mxu0 %v278
  %v2270 = vpop.f32.mrf.mxu0
  %v2271 = vadd.f32 0.0, %v2270
  %2272 = vmatmul.f32.gmra.mxu0 %v281
  %v2273 = vpop.f32.mrf.mxu0
  %v2274 = vadd.f32 0.0, %v2273
  %2275 = vmatmul.f32.gmra.mxu0 %v284
  %v2276 = vpop.f32.mrf.mxu0
  %v2277 = vadd.f32 0.0, %v2276
  %2278 = vmatmul.f32.gmra.mxu0 %v287
  %v2279 = vpop.f32.mrf.mxu0
  %v2280 = vadd.f32 0.0, %v2279
  %2281 = vmatmul.f32.gmra.mxu0 %v290
  %v2282 = vpop.f32.mrf.mxu0
  %v2283 = vadd.f32 0.0, %v2282
  %2284 = vmatmul.f32.gmra.mxu0 %v293
  %v2285 = vpop.f32.mrf.mxu0
  %v2286 = vadd.f32 0.0, %v2285
  %2287 = vmatmul.f32.gmra.mxu0 %v296
  %v2288 = vpop.f32.mrf.mxu0
  %v2289 = vadd.f32 0.0, %v2288
  %2290 = vmatmul.f32.gmra.mxu0 %v299
  %v2291 = vpop.f32.mrf.mxu0
  %v2292 = vadd.f32 0.0, %v2291
  %2293 = vmatmul.f32.gmra.mxu0 %v302
  %v2294 = vpop.f32.mrf.mxu0
  %v2295 = vadd.f32 0.0, %v2294
  %2296 = vdwg.mxu0
  %v2297 = vmul.f32 %v2250, %v231
  %v2298 = vmul.f32 %v2253, %v232
  %v2299 = vmul.f32 %v2256, %v233
  %v2300 = vmul.f32 %v2259, %v234
  %v2301 = vmul.f32 %v2262, %v235
  %v2302 = vmul.f32 %v2265, %v236
  %v2303 = vmul.f32 %v2268, %v237
  %v2304 = vmul.f32 %v2271, %v238
  %v2305 = vmul.f32 %v2274, %v239
  %v2306 = vmul.f32 %v2277, %v240
  %v2307 = vmul.f32 %v2280, %v241
  %v2308 = vmul.f32 %v2283, %v242
  %v2309 = vmul.f32 %v2286, %v243
  %v2310 = vmul.f32 %v2289, %v244
  %v2311 = vmul.f32 %v2292, %v245
  %v2312 = vmul.f32 %v2295, %v246
  %2313 = vmatpush.msra.mxu0 0.0
  %2314 = vmatpush.msra.mxu0 0.0
  %2315 = vmatpush.msra.mxu0 0.0
  %2316 = vmatpush.msra.mxu0 0.0
  %2317 = vmatpush.msra.mxu0 0.0
  %2318 = vmatpush.msra.mxu0 0.0
  %2319 = vmatpush.msra.mxu0 0.0
  %2320 = vmatpush.msra.mxu0 0.0
  %2321 = vmatpush.msra.mxu0 0.0
  %2322 = vmatpush.msra.mxu0 0.0
  %2323 = vmatpush.msra.mxu0 0.0
  %2324 = vmatpush.msra.mxu0 0.0
  %2325 = vmatpush.msra.mxu0 0.0
  %2326 = vmatpush.msra.mxu0 0.0
  %2327 = vmatpush.msra.mxu0 %v2222
  %2328 = vmatpush.msra.mxu0 %v2219
  %2329 = vmatmul.f32.gmra.mxu0 %v257
  %v2330 = vpop.f32.mrf.mxu0
  %v2331 = vadd.f32 0.0, %v2330
  %2332 = vmatmul.f32.gmra.mxu0 %v260
  %v2333 = vpop.f32.mrf.mxu0
  %v2334 = vadd.f32 0.0, %v2333
  %2335 = vmatmul.f32.gmra.mxu0 %v263
  %v2336 = vpop.f32.mrf.mxu0
  %v2337 = vadd.f32 0.0, %v2336
  %2338 = vmatmul.f32.gmra.mxu0 %v266
  %v2339 = vpop.f32.mrf.mxu0
  %v2340 = vadd.f32 0.0, %v2339
  %2341 = vmatmul.f32.gmra.mxu0 %v269
  %v2342 = vpop.f32.mrf.mxu0
  %v2343 = vadd.f32 0.0, %v2342
  %2344 = vmatmul.f32.gmra.mxu0 %v272
  %v2345 = vpop.f32.mrf.mxu0
  %v2346 = vadd.f32 0.0, %v2345
  %2347 = vmatmul.f32.gmra.mxu0 %v275
  %v2348 = vpop.f32.mrf.mxu0
  %v2349 = vadd.f32 0.0, %v2348
  %2350 = vmatmul.f32.gmra.mxu0 %v278
  %v2351 = vpop.f32.mrf.mxu0
  %v2352 = vadd.f32 0.0, %v2351
  %2353 = vmatmul.f32.gmra.mxu0 %v281
  %v2354 = vpop.f32.mrf.mxu0
  %v2355 = vadd.f32 0.0, %v2354
  %2356 = vmatmul.f32.gmra.mxu0 %v284
  %v2357 = vpop.f32.mrf.mxu0
  %v2358 = vadd.f32 0.0, %v2357
  %2359 = vmatmul.f32.gmra.mxu0 %v287
  %v2360 = vpop.f32.mrf.mxu0
  %v2361 = vadd.f32 0.0, %v2360
  %2362 = vmatmul.f32.gmra.mxu0 %v290
  %v2363 = vpop.f32.mrf.mxu0
  %v2364 = vadd.f32 0.0, %v2363
  %2365 = vmatmul.f32.gmra.mxu0 %v293
  %v2366 = vpop.f32.mrf.mxu0
  %v2367 = vadd.f32 0.0, %v2366
  %2368 = vmatmul.f32.gmra.mxu0 %v296
  %v2369 = vpop.f32.mrf.mxu0
  %v2370 = vadd.f32 0.0, %v2369
  %2371 = vmatmul.f32.gmra.mxu0 %v299
  %v2372 = vpop.f32.mrf.mxu0
  %v2373 = vadd.f32 0.0, %v2372
  %2374 = vmatmul.f32.gmra.mxu0 %v302
  %v2375 = vpop.f32.mrf.mxu0
  %v2376 = vadd.f32 0.0, %v2375
  %2377 = vdwg.mxu0
  %v2378 = vmul.f32 %v2331, %v231
  %v2379 = vmul.f32 %v2334, %v232
  %v2380 = vmul.f32 %v2337, %v233
  %v2381 = vmul.f32 %v2340, %v234
  %v2382 = vmul.f32 %v2343, %v235
  %v2383 = vmul.f32 %v2346, %v236
  %v2384 = vmul.f32 %v2349, %v237
  %v2385 = vmul.f32 %v2352, %v238
  %v2386 = vmul.f32 %v2355, %v239
  %v2387 = vmul.f32 %v2358, %v240
  %v2388 = vmul.f32 %v2361, %v241
  %v2389 = vmul.f32 %v2364, %v242
  %v2390 = vmul.f32 %v2367, %v243
  %v2391 = vmul.f32 %v2370, %v244
  %v2392 = vmul.f32 %v2373, %v245
  %v2393 = vmul.f32 %v2376, %v246
  %v2394 = vld [vmem:[%s7] sm:$0xff]
  %v2395 = vld [vmem:[%s7 + $0x8] sm:$0xff]
  %v2396 = vsel %vm162, %v2196, 0
  %v2398 = vsel %vm162, %v2199, 0
  %v2401 = vsel %vm162, %v2297, 0
  %v2404 = vsel %vm162, %v2298, 0
  %v2407 = vsel %vm162, %v2299, 0
  %v2410 = vsel %vm162, %v2300, 0
  %v2413 = vsel %vm162, %v2301, 0
  %v2416 = vsel %vm162, %v2302, 0
  %v2419 = vsel %vm162, %v2303, 0
  %v2422 = vsel %vm162, %v2304, 0
  %v2425 = vsel %vm162, %v2305, 0
  %v2428 = vsel %vm162, %v2306, 0
  %v2431 = vsel %vm162, %v2307, 0
  %v2434 = vsel %vm162, %v2308, 0
  %v2437 = vsel %vm162, %v2309, 0
  %v2440 = vsel %vm162, %v2310, 0
  %v2443 = vsel %vm162, %v2311, 0
  %v2446 = vsel %vm162, %v2312, 0
  %2448 = vmatpush.xpose.msra.mxu0 %v2446
  %2449 = vmatpush.xpose.msra.mxu0 %v2443
  %2450 = vmatpush.xpose.msra.mxu0 %v2440
  %2451 = vmatpush.xpose.msra.mxu0 %v2437
  %2452 = vmatpush.xpose.msra.mxu0 %v2434
  %2453 = vmatpush.xpose.msra.mxu0 %v2431
  %2454 = vmatpush.xpose.msra.mxu0 %v2428
  %2455 = vmatpush.xpose.msra.mxu0 %v2425
  %2456 = vmatpush.xpose.msra.mxu0 %v2422
  %2457 = vmatpush.xpose.msra.mxu0 %v2419
  %2458 = vmatpush.xpose.msra.mxu0 %v2416
  %2459 = vmatpush.xpose.msra.mxu0 %v2413
  %2460 = vmatpush.xpose.msra.mxu0 %v2410
  %2461 = vmatpush.xpose.msra.mxu0 %v2407
  %2462 = vmatpush.xpose.msra.mxu0 %v2404
  %2463 = vmatpush.xpose.msra.mxu0 %v2401
  %2464 = vmatmul.f32.gmra.mxu0 %v2396
  %v2465 = vpop.f32.mrf.mxu0
  %v2466 = vadd.f32 0.0, %v2465
  %2467 = vmatmul.f32.gmra.mxu0 %v2398
  %v2468 = vpop.f32.mrf.mxu0
  %v2469 = vadd.f32 0.0, %v2468
  %2470 = vdwg.mxu0
  %v2471 = vmul.f32 %v2466, 0.35355338
  %v2472 = vmul.f32 %v2469, 0.35355338
  %v2473 = vadd.f32 %v2471, %v2394
  %v2474 = vadd.f32 %v2472, %v2395
  %2475 = vmax.xlane.f32.xlu0 %v2473
  %v2476 = vpop.xlane.xlu0 %2475
  %2477 = vmax.xlane.f32.xlu0 %v2474
  %v2478 = vpop.xlane.xlu0 %2477
  %v2479 = vsub.f32 %v2473, %v2476
  %v2480 = vsub.f32 %v2474, %v2478
  %v2481 = vmul.f32 %v2479, 1.442695
  %v2482 = vpow.pop %v2481
  %v2483 = vmul.f32 %v2480, 1.442695
  %v2484 = vpow.pop %v2483
  %2485 = vmatpush.msra.mxu0 %v2393
  %2486 = vmatpush.msra.mxu0 %v2392
  %2487 = vmatpush.msra.mxu0 %v2391
  %2488 = vmatpush.msra.mxu0 %v2390
  %2489 = vmatpush.msra.mxu0 %v2389
  %2490 = vmatpush.msra.mxu0 %v2388
  %2491 = vmatpush.msra.mxu0 %v2387
  %2492 = vmatpush.msra.mxu0 %v2386
  %2493 = vmatpush.msra.mxu0 %v2385
  %2494 = vmatpush.msra.mxu0 %v2384
  %2495 = vmatpush.msra.mxu0 %v2383
  %2496 = vmatpush.msra.mxu0 %v2382
  %2497 = vmatpush.msra.mxu0 %v2381
  %2498 = vmatpush.msra.mxu0 %v2380
  %2499 = vmatpush.msra.mxu0 %v2379
  %2500 = vmatpush.msra.mxu0 %v2378
  %2501 = vmatmul.f32.gmra.mxu0 %v2482
  %v2502 = vpop.f32.mrf.mxu0
  %v2503 = vadd.f32 0.0, %v2502
  %2504 = vmatmul.f32.gmra.mxu0 %v2484
  %v2505 = vpop.f32.mrf.mxu0
  %v2506 = vadd.f32 0.0, %v2505
  %2507 = vdwg.mxu0
  %2508 = vmatpush.msra.mxu0 %v246
  %2509 = vmatpush.msra.mxu0 %v245
  %2510 = vmatpush.msra.mxu0 %v244
  %2511 = vmatpush.msra.mxu0 %v243
  %2512 = vmatpush.msra.mxu0 %v242
  %2513 = vmatpush.msra.mxu0 %v241
  %2514 = vmatpush.msra.mxu0 %v240
  %2515 = vmatpush.msra.mxu0 %v239
  %2516 = vmatpush.msra.mxu0 %v238
  %2517 = vmatpush.msra.mxu0 %v237
  %2518 = vmatpush.msra.mxu0 %v236
  %2519 = vmatpush.msra.mxu0 %v235
  %2520 = vmatpush.msra.mxu0 %v234
  %2521 = vmatpush.msra.mxu0 %v233
  %2522 = vmatpush.msra.mxu0 %v232
  %2523 = vmatpush.msra.mxu0 %v231
  %2524 = vmatmul.f32.gmra.mxu0 %v2482
  %v2525 = vpop.f32.mrf.mxu0
  %v2526 = vadd.f32 0.0, %v2525
  %2527 = vmatmul.f32.gmra.mxu0 %v2484
  %v2528 = vpop.f32.mrf.mxu0
  %v2529 = vadd.f32 0.0, %v2528
  %2530 = vdwg.mxu0
  %v2531 = vrcp.pop %v2526
  %v2532 = vrcp.pop %v2529
  %v2533 = vmul.f32 %v2503, %v2531
  %v2534 = vmul.f32 %v2506, %v2532
  %v2535 = vld [vmem:[%s37] sm:$0xff]
  %v2536 = vld [vmem:[%s37 + $0x8] sm:$0xff]
  %v2537 = vld [vmem:[%s37 + $0x10] sm:$0xff]
  %v2538 = vld [vmem:[%s37 + $0x18] sm:$0xff]
  %v2539 = vld [vmem:[%s37 + $0x20] sm:$0xff]
  %v2540 = vld [vmem:[%s37 + $0x28] sm:$0xff]
  %v2541 = vld [vmem:[%s37 + $0x30] sm:$0xff]
  %v2542 = vld [vmem:[%s37 + $0x38] sm:$0xff]
  %v2543 = vld [vmem:[%s39] sm:$0x1]
  %v2545 = vperm.slane %v2543, 0
  %v2548 = vsel %vm162, %v2533, 0
  %v2551 = vsel %vm162, %v2534, 0
  %2553 = vmatpush.msra.mxu0 0.0
  %2554 = vmatpush.msra.mxu0 0.0
  %2555 = vmatpush.msra.mxu0 0.0
  %2556 = vmatpush.msra.mxu0 0.0
  %2557 = vmatpush.msra.mxu0 0.0
  %2558 = vmatpush.msra.mxu0 0.0
  %2559 = vmatpush.msra.mxu0 0.0
  %2560 = vmatpush.msra.mxu0 0.0
  %2561 = vmatpush.msra.mxu0 %v2542
  %2562 = vmatpush.msra.mxu0 %v2541
  %2563 = vmatpush.msra.mxu0 %v2540
  %2564 = vmatpush.msra.mxu0 %v2539
  %2565 = vmatpush.msra.mxu0 %v2538
  %2566 = vmatpush.msra.mxu0 %v2537
  %2567 = vmatpush.msra.mxu0 %v2536
  %2568 = vmatpush.msra.mxu0 %v2535
  %2569 = vmatmul.f32.gmra.mxu0 %v2548
  %v2570 = vpop.f32.mrf.mxu0
  %v2571 = vadd.f32 %v2545, %v2570
  %2572 = vmatmul.f32.gmra.mxu0 %v2551
  %v2573 = vpop.f32.mrf.mxu0
  %v2574 = vadd.f32 %v2545, %v2573
  %2575 = vdwg.mxu0
  %v2576 = vld [vmem:[%s53] sm:$0x1]
  %v2577 = vld [vmem:[%s53 + $0x1] sm:$0x1]
  %v2578 = vadd.f32 %v2148, %v2571
  %v2579 = vadd.f32 %v2149, %v2574
  %v2580 = vsel %vm162, %v2578, 0.0
  %2581 = vadd.xlane.f32.xlu0 %v2580
  %v2582 = vpop.xlane.xlu0 %2581
  %v2583 = vsel %vm162, %v2579, 0.0
  %2584 = vadd.xlane.f32.xlu0 %v2583
  %v2585 = vpop.xlane.xlu0 %2584
  %v2586 = vmul.f32 %v2582, %v664
  %v2587 = vmul.f32 %v2585, %v664
  %v2588 = vsub.f32 %v2578, %v2586
  %v2589 = vsub.f32 %v2579, %v2587
  %v2590 = vmul.f32 %v2588, %v2588
  %v2591 = vmul.f32 %v2589, %v2589
  %v2592 = vsel %vm162, %v2590, 0.0
  %2593 = vadd.xlane.f32.xlu0 %v2592
  %v2594 = vpop.xlane.xlu0 %2593
  %v2595 = vsel %vm162, %v2591, 0.0
  %2596 = vadd.xlane.f32.xlu0 %v2595
  %v2597 = vpop.xlane.xlu0 %2596
  %v2598 = vmul.f32 %v2594, %v664
  %v2599 = vmul.f32 %v2597, %v664
  %v2600 = vadd.f32 %v2598, 1e-05
  %v2601 = vadd.f32 %v2599, 1e-05
  %v2602 = vrsqrt.pop %v2600
  %v2603 = vmul.f32 %v2602, %v2600
  %v2604 = vmul.f32 %v2603, %v2602
  %v2605 = vmul.f32 0.5, %v2604
  %v2606 = vsub.f32 1.5, %v2605
  %v2607 = vmul.f32 %v2602, %v2606
  %vm2608 = vweird.f32 %v2600
  %vm2609 = vweird.f32 %v2602
  %vm2610 = vmor %vm2608, %vm2609
  %v2611 = vsel %vm2610, %v2602, %v2607
  %v2612 = vrsqrt.pop %v2601
  %v2613 = vmul.f32 %v2612, %v2601
  %v2614 = vmul.f32 %v2613, %v2612
  %v2615 = vmul.f32 0.5, %v2614
  %v2616 = vsub.f32 1.5, %v2615
  %v2617 = vmul.f32 %v2612, %v2616
  %vm2618 = vweird.f32 %v2601
  %vm2619 = vweird.f32 %v2612
  %vm2620 = vmor %vm2618, %vm2619
  %v2621 = vsel %vm2620, %v2612, %v2617
  %v2622 = vmul.f32 %v2588, %v2611
  %v2623 = vmul.f32 %v2589, %v2621
  %v2624 = vperm.slane %v2576, 0
  %v2625 = vmul.f32 %v2622, %v2624
  %v2626 = vmul.f32 %v2623, %v2624
  %v2627 = vperm.slane %v2577, 0
  %v2628 = vadd.f32 %v2625, %v2627
  %v2629 = vadd.f32 %v2626, %v2627
  %v2630 = vld [vmem:[%s41] sm:$0xff]
  %v2631 = vld [vmem:[%s41 + $0x8] sm:$0xff]
  %v2632 = vld [vmem:[%s41 + $0x10] sm:$0xff]
  %v2633 = vld [vmem:[%s41 + $0x18] sm:$0xff]
  %v2634 = vld [vmem:[%s41 + $0x20] sm:$0xff]
  %v2635 = vld [vmem:[%s41 + $0x28] sm:$0xff]
  %v2636 = vld [vmem:[%s41 + $0x30] sm:$0xff]
  %v2637 = vld [vmem:[%s41 + $0x38] sm:$0xff]
  %v2638 = vld [vmem:[%s43] sm:$0x1]
  %v2640 = vperm.slane %v2638, 0
  %v2643 = vsel %vm162, %v2628, 0
  %v2646 = vsel %vm162, %v2629, 0
  %2648 = vmatpush.msra.mxu0 0.0
  %2649 = vmatpush.msra.mxu0 0.0
  %2650 = vmatpush.msra.mxu0 0.0
  %2651 = vmatpush.msra.mxu0 0.0
  %2652 = vmatpush.msra.mxu0 0.0
  %2653 = vmatpush.msra.mxu0 0.0
  %2654 = vmatpush.msra.mxu0 0.0
  %2655 = vmatpush.msra.mxu0 0.0
  %2656 = vmatpush.msra.mxu0 %v2637
  %2657 = vmatpush.msra.mxu0 %v2636
  %2658 = vmatpush.msra.mxu0 %v2635
  %2659 = vmatpush.msra.mxu0 %v2634
  %2660 = vmatpush.msra.mxu0 %v2633
  %2661 = vmatpush.msra.mxu0 %v2632
  %2662 = vmatpush.msra.mxu0 %v2631
  %2663 = vmatpush.msra.mxu0 %v2630
  %2664 = vmatmul.f32.gmra.mxu0 %v2643
  %v2665 = vpop.f32.mrf.mxu0
  %v2666 = vadd.f32 %v2640, %v2665
  %2667 = vmatmul.f32.gmra.mxu0 %v2646
  %v2668 = vpop.f32.mrf.mxu0
  %v2669 = vadd.f32 %v2640, %v2668
  %2670 = vdwg.mxu0
  %v2671 = vld [vmem:[%s9] sm:$0xff]
  %v2672 = vld [vmem:[%s9 + $0x8] sm:$0xff]
  %v2674 = vsel %vm162, %v2666, 0
  %v2677 = vsel %vm162, %v2669, 0
  %v2680 = vsel %vm162, %v2043, 0
  %v2683 = vsel %vm162, %v2044, 0
  %v2686 = vsel %vm162, %v2045, 0
  %v2689 = vsel %vm162, %v2046, 0
  %v2692 = vsel %vm162, %v2047, 0
  %v2695 = vsel %vm162, %v2048, 0
  %v2698 = vsel %vm162, %v2049, 0
  %v2701 = vsel %vm162, %v2050, 0
  %v2704 = vsel %vm162, %v2051, 0
  %v2707 = vsel %vm162, %v2052, 0
  %v2710 = vsel %vm162, %v2053, 0
  %v2713 = vsel %vm162, %v2054, 0
  %v2716 = vsel %vm162, %v2055, 0
  %v2719 = vsel %vm162, %v2056, 0
  %v2722 = vsel %vm162, %v2057, 0
  %v2725 = vsel %vm162, %v2058, 0
  %2727 = vmatpush.xpose.msra.mxu0 %v2725
  %2728 = vmatpush.xpose.msra.mxu0 %v2722
  %2729 = vmatpush.xpose.msra.mxu0 %v2719
  %2730 = vmatpush.xpose.msra.mxu0 %v2716
  %2731 = vmatpush.xpose.msra.mxu0 %v2713
  %2732 = vmatpush.xpose.msra.mxu0 %v2710
  %2733 = vmatpush.xpose.msra.mxu0 %v2707
  %2734 = vmatpush.xpose.msra.mxu0 %v2704
  %2735 = vmatpush.xpose.msra.mxu0 %v2701
  %2736 = vmatpush.xpose.msra.mxu0 %v2698
  %2737 = vmatpush.xpose.msra.mxu0 %v2695
  %2738 = vmatpush.xpose.msra.mxu0 %v2692
  %2739 = vmatpush.xpose.msra.mxu0 %v2689
  %2740 = vmatpush.xpose.msra.mxu0 %v2686
  %2741 = vmatpush.xpose.msra.mxu0 %v2683
  %2742 = vmatpush.xpose.msra.mxu0 %v2680
  %2743 = vmatmul.f32.gmra.mxu0 %v2674
  %v2744 = vpop.f32.mrf.mxu0
  %v2745 = vadd.f32 0.0, %v2744
  %2746 = vmatmul.f32.gmra.mxu0 %v2677
  %v2747 = vpop.f32.mrf.mxu0
  %v2748 = vadd.f32 0.0, %v2747
  %2749 = vdwg.mxu0
  %v2750 = vmul.f32 %v2745, 0.35355338
  %v2751 = vmul.f32 %v2748, 0.35355338
  %v2752 = vadd.f32 %v2750, %v2671
  %v2753 = vadd.f32 %v2751, %v2672
  %2754 = vmax.xlane.f32.xlu0 %v2752
  %v2755 = vpop.xlane.xlu0 %2754
  %2756 = vmax.xlane.f32.xlu0 %v2753
  %v2757 = vpop.xlane.xlu0 %2756
  %v2758 = vsub.f32 %v2752, %v2755
  %v2759 = vsub.f32 %v2753, %v2757
  %v2760 = vmul.f32 %v2758, 1.442695
  %v2761 = vpow.pop %v2760
  %v2762 = vmul.f32 %v2759, 1.442695
  %v2763 = vpow.pop %v2762
  %2764 = vmatpush.msra.mxu0 %v2147
  %2765 = vmatpush.msra.mxu0 %v2146
  %2766 = vmatpush.msra.mxu0 %v2145
  %2767 = vmatpush.msra.mxu0 %v2144
  %2768 = vmatpush.msra.mxu0 %v2143
  %2769 = vmatpush.msra.mxu0 %v2142
  %2770 = vmatpush.msra.mxu0 %v2141
  %2771 = vmatpush.msra.mxu0 %v2140
  %2772 = vmatpush.msra.mxu0 %v2139
  %2773 = vmatpush.msra.mxu0 %v2138
  %2774 = vmatpush.msra.mxu0 %v2137
  %2775 = vmatpush.msra.mxu0 %v2136
  %2776 = vmatpush.msra.mxu0 %v2135
  %2777 = vmatpush.msra.mxu0 %v2134
  %2778 = vmatpush.msra.mxu0 %v2133
  %2779 = vmatpush.msra.mxu0 %v2132
  %2780 = vmatmul.f32.gmra.mxu0 %v2761
  %v2781 = vpop.f32.mrf.mxu0
  %v2782 = vadd.f32 0.0, %v2781
  %2783 = vmatmul.f32.gmra.mxu0 %v2763
  %v2784 = vpop.f32.mrf.mxu0
  %v2785 = vadd.f32 0.0, %v2784
  %2786 = vdwg.mxu0
  %2787 = vmatpush.msra.mxu0 %v246
  %2788 = vmatpush.msra.mxu0 %v245
  %2789 = vmatpush.msra.mxu0 %v244
  %2790 = vmatpush.msra.mxu0 %v243
  %2791 = vmatpush.msra.mxu0 %v242
  %2792 = vmatpush.msra.mxu0 %v241
  %2793 = vmatpush.msra.mxu0 %v240
  %2794 = vmatpush.msra.mxu0 %v239
  %2795 = vmatpush.msra.mxu0 %v238
  %2796 = vmatpush.msra.mxu0 %v237
  %2797 = vmatpush.msra.mxu0 %v236
  %2798 = vmatpush.msra.mxu0 %v235
  %2799 = vmatpush.msra.mxu0 %v234
  %2800 = vmatpush.msra.mxu0 %v233
  %2801 = vmatpush.msra.mxu0 %v232
  %2802 = vmatpush.msra.mxu0 %v231
  %2803 = vmatmul.f32.gmra.mxu0 %v2761
  %v2804 = vpop.f32.mrf.mxu0
  %v2805 = vadd.f32 0.0, %v2804
  %2806 = vmatmul.f32.gmra.mxu0 %v2763
  %v2807 = vpop.f32.mrf.mxu0
  %v2808 = vadd.f32 0.0, %v2807
  %2809 = vdwg.mxu0
  %v2810 = vrcp.pop %v2805
  %v2811 = vrcp.pop %v2808
  %v2812 = vmul.f32 %v2782, %v2810
  %v2813 = vmul.f32 %v2785, %v2811
  %v2814 = vld [vmem:[%s49] sm:$0xff]
  %v2815 = vld [vmem:[%s49 + $0x8] sm:$0xff]
  %v2816 = vld [vmem:[%s49 + $0x10] sm:$0xff]
  %v2817 = vld [vmem:[%s49 + $0x18] sm:$0xff]
  %v2818 = vld [vmem:[%s49 + $0x20] sm:$0xff]
  %v2819 = vld [vmem:[%s49 + $0x28] sm:$0xff]
  %v2820 = vld [vmem:[%s49 + $0x30] sm:$0xff]
  %v2821 = vld [vmem:[%s49 + $0x38] sm:$0xff]
  %v2822 = vld [vmem:[%s51] sm:$0x1]
  %v2824 = vperm.slane %v2822, 0
  %v2827 = vsel %vm162, %v2812, 0
  %v2830 = vsel %vm162, %v2813, 0
  %2832 = vmatpush.msra.mxu0 0.0
  %2833 = vmatpush.msra.mxu0 0.0
  %2834 = vmatpush.msra.mxu0 0.0
  %2835 = vmatpush.msra.mxu0 0.0
  %2836 = vmatpush.msra.mxu0 0.0
  %2837 = vmatpush.msra.mxu0 0.0
  %2838 = vmatpush.msra.mxu0 0.0
  %2839 = vmatpush.msra.mxu0 0.0
  %2840 = vmatpush.msra.mxu0 %v2821
  %2841 = vmatpush.msra.mxu0 %v2820
  %2842 = vmatpush.msra.mxu0 %v2819
  %2843 = vmatpush.msra.mxu0 %v2818
  %2844 = vmatpush.msra.mxu0 %v2817
  %2845 = vmatpush.msra.mxu0 %v2816
  %2846 = vmatpush.msra.mxu0 %v2815
  %2847 = vmatpush.msra.mxu0 %v2814
  %2848 = vmatmul.f32.gmra.mxu0 %v2827
  %v2849 = vpop.f32.mrf.mxu0
  %v2850 = vadd.f32 %v2824, %v2849
  %2851 = vmatmul.f32.gmra.mxu0 %v2830
  %v2852 = vpop.f32.mrf.mxu0
  %v2853 = vadd.f32 %v2824, %v2852
  %2854 = vdwg.mxu0
  %v2855 = vld [vmem:[%s53 + $0x2] sm:$0x1]
  %v2856 = vld [vmem:[%s53 + $0x3] sm:$0x1]
  %v2857 = vadd.f32 %v2628, %v2850
  %v2858 = vadd.f32 %v2629, %v2853
  %v2859 = vsel %vm162, %v2857, 0.0
  %2860 = vadd.xlane.f32.xlu0 %v2859
  %v2861 = vpop.xlane.xlu0 %2860
  %v2862 = vsel %vm162, %v2858, 0.0
  %2863 = vadd.xlane.f32.xlu0 %v2862
  %v2864 = vpop.xlane.xlu0 %2863
  %v2865 = vmul.f32 %v2861, %v664
  %v2866 = vmul.f32 %v2864, %v664
  %v2867 = vsub.f32 %v2857, %v2865
  %v2868 = vsub.f32 %v2858, %v2866
  %v2869 = vmul.f32 %v2867, %v2867
  %v2870 = vmul.f32 %v2868, %v2868
  %v2871 = vsel %vm162, %v2869, 0.0
  %2872 = vadd.xlane.f32.xlu0 %v2871
  %v2873 = vpop.xlane.xlu0 %2872
  %v2874 = vsel %vm162, %v2870, 0.0
  %2875 = vadd.xlane.f32.xlu0 %v2874
  %v2876 = vpop.xlane.xlu0 %2875
  %v2877 = vmul.f32 %v2873, %v664
  %v2878 = vmul.f32 %v2876, %v664
  %v2879 = vadd.f32 %v2877, 1e-05
  %v2880 = vadd.f32 %v2878, 1e-05
  %v2881 = vrsqrt.pop %v2879
  %v2882 = vmul.f32 %v2881, %v2879
  %v2883 = vmul.f32 %v2882, %v2881
  %v2884 = vmul.f32 0.5, %v2883
  %v2885 = vsub.f32 1.5, %v2884
  %v2886 = vmul.f32 %v2881, %v2885
  %vm2887 = vweird.f32 %v2879
  %vm2888 = vweird.f32 %v2881
  %vm2889 = vmor %vm2887, %vm2888
  %v2890 = vsel %vm2889, %v2881, %v2886
  %v2891 = vrsqrt.pop %v2880
  %v2892 = vmul.f32 %v2891, %v2880
  %v2893 = vmul.f32 %v2892, %v2891
  %v2894 = vmul.f32 0.5, %v2893
  %v2895 = vsub.f32 1.5, %v2894
  %v2896 = vmul.f32 %v2891, %v2895
  %vm2897 = vweird.f32 %v2880
  %vm2898 = vweird.f32 %v2891
  %vm2899 = vmor %vm2897, %vm2898
  %v2900 = vsel %vm2899, %v2891, %v2896
  %v2901 = vmul.f32 %v2867, %v2890
  %v2902 = vmul.f32 %v2868, %v2900
  %v2903 = vperm.slane %v2855, 0
  %v2904 = vmul.f32 %v2901, %v2903
  %v2905 = vmul.f32 %v2902, %v2903
  %v2906 = vperm.slane %v2856, 0
  %v2907 = vadd.f32 %v2904, %v2906
  %v2908 = vadd.f32 %v2905, %v2906
  %v2909 = vld [vmem:[%s55] sm:$0xff]
  %v2910 = vld [vmem:[%s55 + $0x8] sm:$0xff]
  %v2911 = vld [vmem:[%s55 + $0x10] sm:$0xff]
  %v2912 = vld [vmem:[%s55 + $0x18] sm:$0xff]
  %v2913 = vld [vmem:[%s55 + $0x20] sm:$0xff]
  %v2914 = vld [vmem:[%s55 + $0x28] sm:$0xff]
  %v2915 = vld [vmem:[%s55 + $0x30] sm:$0xff]
  %v2916 = vld [vmem:[%s55 + $0x38] sm:$0xff]
  %v2917 = vld [vmem:[%s57] sm:$0x1]
  %v2919 = vperm.slane %v2917, 0
  %v2922 = vsel %vm162, %v2907, 0
  %v2925 = vsel %vm162, %v2908, 0
  %2927 = vmatpush.msra.mxu0 0.0
  %2928 = vmatpush.msra.mxu0 0.0
  %2929 = vmatpush.msra.mxu0 0.0
  %2930 = vmatpush.msra.mxu0 0.0
  %2931 = vmatpush.msra.mxu0 0.0
  %2932 = vmatpush.msra.mxu0 0.0
  %2933 = vmatpush.msra.mxu0 0.0
  %2934 = vmatpush.msra.mxu0 0.0
  %2935 = vmatpush.msra.mxu0 %v2916
  %2936 = vmatpush.msra.mxu0 %v2915
  %2937 = vmatpush.msra.mxu0 %v2914
  %2938 = vmatpush.msra.mxu0 %v2913
  %2939 = vmatpush.msra.mxu0 %v2912
  %2940 = vmatpush.msra.mxu0 %v2911
  %2941 = vmatpush.msra.mxu0 %v2910
  %2942 = vmatpush.msra.mxu0 %v2909
  %2943 = vmatmul.f32.gmra.mxu0 %v2922
  %v2944 = vpop.f32.mrf.mxu0
  %v2945 = vadd.f32 %v2919, %v2944
  %2946 = vmatmul.f32.gmra.mxu0 %v2925
  %v2947 = vpop.f32.mrf.mxu0
  %v2948 = vadd.f32 %v2919, %v2947
  %2949 = vdwg.mxu0
  %v2950 = vmax.f32 %v2945, 0.0
  %v2951 = vmax.f32 %v2948, 0.0
  %v2952 = vld [vmem:[%s59] sm:$0xff]
  %v2953 = vld [vmem:[%s59 + $0x8] sm:$0xff]
  %v2954 = vld [vmem:[%s59 + $0x10] sm:$0xff]
  %v2955 = vld [vmem:[%s59 + $0x18] sm:$0xff]
  %v2956 = vld [vmem:[%s59 + $0x20] sm:$0xff]
  %v2957 = vld [vmem:[%s59 + $0x28] sm:$0xff]
  %v2958 = vld [vmem:[%s59 + $0x30] sm:$0xff]
  %v2959 = vld [vmem:[%s59 + $0x38] sm:$0xff]
  %v2960 = vld [vmem:[%s59 + $0x40] sm:$0xff]
  %v2961 = vld [vmem:[%s59 + $0x48] sm:$0xff]
  %v2962 = vld [vmem:[%s59 + $0x50] sm:$0xff]
  %v2963 = vld [vmem:[%s59 + $0x58] sm:$0xff]
  %v2964 = vld [vmem:[%s59 + $0x60] sm:$0xff]
  %v2965 = vld [vmem:[%s59 + $0x68] sm:$0xff]
  %v2966 = vld [vmem:[%s59 + $0x70] sm:$0xff]
  %v2967 = vld [vmem:[%s59 + $0x78] sm:$0xff]
  %v2968 = vld [vmem:[%s61] sm:$0x1]
  %v2970 = vperm.slane %v2968, 0
  %2972 = vmatpush.msra.mxu0 %v2967
  %2973 = vmatpush.msra.mxu0 %v2966
  %2974 = vmatpush.msra.mxu0 %v2965
  %2975 = vmatpush.msra.mxu0 %v2964
  %2976 = vmatpush.msra.mxu0 %v2963
  %2977 = vmatpush.msra.mxu0 %v2962
  %2978 = vmatpush.msra.mxu0 %v2961
  %2979 = vmatpush.msra.mxu0 %v2960
  %2980 = vmatpush.msra.mxu0 %v2959
  %2981 = vmatpush.msra.mxu0 %v2958
  %2982 = vmatpush.msra.mxu0 %v2957
  %2983 = vmatpush.msra.mxu0 %v2956
  %2984 = vmatpush.msra.mxu0 %v2955
  %2985 = vmatpush.msra.mxu0 %v2954
  %2986 = vmatpush.msra.mxu0 %v2953
  %2987 = vmatpush.msra.mxu0 %v2952
  %2988 = vmatmul.f32.gmra.mxu0 %v2950
  %v2989 = vpop.f32.mrf.mxu0
  %v2990 = vadd.f32 %v2970, %v2989
  %2991 = vmatmul.f32.gmra.mxu0 %v2951
  %v2992 = vpop.f32.mrf.mxu0
  %v2993 = vadd.f32 %v2970, %v2992
  %2994 = vdwg.mxu0
  %v2995 = vld [vmem:[%s53 + $0x4] sm:$0x1]
  %v2996 = vld [vmem:[%s53 + $0x5] sm:$0x1]
  %v2997 = vadd.f32 %v2907, %v2990
  %v2998 = vadd.f32 %v2908, %v2993
  %v2999 = vsel %vm162, %v2997, 0.0
  %3000 = vadd.xlane.f32.xlu0 %v2999
  %v3001 = vpop.xlane.xlu0 %3000
  %v3002 = vsel %vm162, %v2998, 0.0
  %3003 = vadd.xlane.f32.xlu0 %v3002
  %v3004 = vpop.xlane.xlu0 %3003
  %v3005 = vmul.f32 %v3001, %v664
  %v3006 = vmul.f32 %v3004, %v664
  %v3007 = vsub.f32 %v2997, %v3005
  %v3008 = vsub.f32 %v2998, %v3006
  %v3009 = vmul.f32 %v3007, %v3007
  %v3010 = vmul.f32 %v3008, %v3008
  %v3011 = vsel %vm162, %v3009, 0.0
  %3012 = vadd.xlane.f32.xlu0 %v3011
  %v3013 = vpop.xlane.xlu0 %3012
  %v3014 = vsel %vm162, %v3010, 0.0
  %3015 = vadd.xlane.f32.xlu0 %v3014
  %v3016 = vpop.xlane.xlu0 %3015
  %v3017 = vmul.f32 %v3013, %v664
  %v3018 = vmul.f32 %v3016, %v664
  %v3019 = vadd.f32 %v3017, 1e-05
  %v3020 = vadd.f32 %v3018, 1e-05
  %v3021 = vrsqrt.pop %v3019
  %v3022 = vmul.f32 %v3021, %v3019
  %v3023 = vmul.f32 %v3022, %v3021
  %v3024 = vmul.f32 0.5, %v3023
  %v3025 = vsub.f32 1.5, %v3024
  %v3026 = vmul.f32 %v3021, %v3025
  %vm3027 = vweird.f32 %v3019
  %vm3028 = vweird.f32 %v3021
  %vm3029 = vmor %vm3027, %vm3028
  %v3030 = vsel %vm3029, %v3021, %v3026
  %v3031 = vrsqrt.pop %v3020
  %v3032 = vmul.f32 %v3031, %v3020
  %v3033 = vmul.f32 %v3032, %v3031
  %v3034 = vmul.f32 0.5, %v3033
  %v3035 = vsub.f32 1.5, %v3034
  %v3036 = vmul.f32 %v3031, %v3035
  %vm3037 = vweird.f32 %v3020
  %vm3038 = vweird.f32 %v3031
  %vm3039 = vmor %vm3037, %vm3038
  %v3040 = vsel %vm3039, %v3031, %v3036
  %v3041 = vmul.f32 %v3007, %v3030
  %v3042 = vmul.f32 %v3008, %v3040
  %v3043 = vperm.slane %v2995, 0
  %v3044 = vmul.f32 %v3041, %v3043
  %v3045 = vmul.f32 %v3042, %v3043
  %v3046 = vperm.slane %v2996, 0
  %v3047 = vadd.f32 %v3044, %v3046
  %v3048 = vadd.f32 %v3045, %v3046
  %v3050 = vsel %vm162, %v3047, 0
  %v3053 = vsel %vm162, %v3048, 0
  %3055 = vmatpush.msra.mxu0 0.0
  %3056 = vmatpush.msra.mxu0 0.0
  %3057 = vmatpush.msra.mxu0 0.0
  %3058 = vmatpush.msra.mxu0 0.0
  %3059 = vmatpush.msra.mxu0 0.0
  %3060 = vmatpush.msra.mxu0 0.0
  %3061 = vmatpush.msra.mxu0 0.0
  %3062 = vmatpush.msra.mxu0 0.0
  %3063 = vmatpush.msra.mxu0 %v2164
  %3064 = vmatpush.msra.mxu0 %v2162
  %3065 = vmatpush.msra.mxu0 %v2160
  %3066 = vmatpush.msra.mxu0 %v2158
  %3067 = vmatpush.msra.mxu0 %v2156
  %3068 = vmatpush.msra.mxu0 %v2154
  %3069 = vmatpush.msra.mxu0 %v2152
  %3070 = vmatpush.msra.mxu0 %v2150
  %3071 = vmatmul.f32.gmra.mxu0 %v3050
  %v3072 = vpop.f32.mrf.mxu0
  %v3073 = vadd.f32 %v2168, %v3072
  %3074 = vmatmul.f32.gmra.mxu0 %v3053
  %v3075 = vpop.f32.mrf.mxu0
  %v3076 = vadd.f32 %v2168, %v3075
  %3077 = vdwg.mxu0
  %3078 = vmatpush.msra.mxu0 0.0
  %3079 = vmatpush.msra.mxu0 0.0
  %3080 = vmatpush.msra.mxu0 0.0
  %3081 = vmatpush.msra.mxu0 0.0
  %3082 = vmatpush.msra.mxu0 0.0
  %3083 = vmatpush.msra.mxu0 0.0
  %3084 = vmatpush.msra.mxu0 0.0
  %3085 = vmatpush.msra.mxu0 0.0
  %3086 = vmatpush.msra.mxu0 %v2165
  %3087 = vmatpush.msra.mxu0 %v2163
  %3088 = vmatpush.msra.mxu0 %v2161
  %3089 = vmatpush.msra.mxu0 %v2159
  %3090 = vmatpush.msra.mxu0 %v2157
  %3091 = vmatpush.msra.mxu0 %v2155
  %3092 = vmatpush.msra.mxu0 %v2153
  %3093 = vmatpush.msra.mxu0 %v2151
  %3094 = vmatmul.f32.gmra.mxu0 %v3050
  %v3095 = vpop.f32.mrf.mxu0
  %v3096 = vadd.f32 %v2169, %v3095
  %3097 = vmatmul.f32.gmra.mxu0 %v3053
  %v3098 = vpop.f32.mrf.mxu0
  %v3099 = vadd.f32 %v2169, %v3098
  %3100 = vdwg.mxu0
  %3103 = vrot.lane.b32.xlu0 %v3073, 64
  %v3104 = vpop.permute.xlu0 %3103
  %3105 = vrot.lane.b32.xlu0 %v3076, 64
  %v3106 = vpop.permute.xlu0 %3105
  %3109 = vmatpush.msra.mxu0 0.0
  %3110 = vmatpush.msra.mxu0 0.0
  %3111 = vmatpush.msra.mxu0 0.0
  %3112 = vmatpush.msra.mxu0 0.0
  %3113 = vmatpush.msra.mxu0 0.0
  %3114 = vmatpush.msra.mxu0 0.0
  %3115 = vmatpush.msra.mxu0 0.0
  %3116 = vmatpush.msra.mxu0 0.0
  %3117 = vmatpush.msra.mxu0 0.0
  %3118 = vmatpush.msra.mxu0 0.0
  %3119 = vmatpush.msra.mxu0 0.0
  %3120 = vmatpush.msra.mxu0 0.0
  %3121 = vmatpush.msra.mxu0 0.0
  %3122 = vmatpush.msra.mxu0 0.0
  %3123 = vmatpush.msra.mxu0 %v3106
  %3124 = vmatpush.msra.mxu0 %v3104
  %3125 = vmatmul.f32.gmra.mxu0 %v257
  %v3126 = vpop.f32.mrf.mxu0
  %v3127 = vadd.f32 0.0, %v3126
  %3128 = vmatmul.f32.gmra.mxu0 %v260
  %v3129 = vpop.f32.mrf.mxu0
  %v3130 = vadd.f32 0.0, %v3129
  %3131 = vmatmul.f32.gmra.mxu0 %v263
  %v3132 = vpop.f32.mrf.mxu0
  %v3133 = vadd.f32 0.0, %v3132
  %3134 = vmatmul.f32.gmra.mxu0 %v266
  %v3135 = vpop.f32.mrf.mxu0
  %v3136 = vadd.f32 0.0, %v3135
  %3137 = vmatmul.f32.gmra.mxu0 %v269
  %v3138 = vpop.f32.mrf.mxu0
  %v3139 = vadd.f32 0.0, %v3138
  %3140 = vmatmul.f32.gmra.mxu0 %v272
  %v3141 = vpop.f32.mrf.mxu0
  %v3142 = vadd.f32 0.0, %v3141
  %3143 = vmatmul.f32.gmra.mxu0 %v275
  %v3144 = vpop.f32.mrf.mxu0
  %v3145 = vadd.f32 0.0, %v3144
  %3146 = vmatmul.f32.gmra.mxu0 %v278
  %v3147 = vpop.f32.mrf.mxu0
  %v3148 = vadd.f32 0.0, %v3147
  %3149 = vmatmul.f32.gmra.mxu0 %v281
  %v3150 = vpop.f32.mrf.mxu0
  %v3151 = vadd.f32 0.0, %v3150
  %3152 = vmatmul.f32.gmra.mxu0 %v284
  %v3153 = vpop.f32.mrf.mxu0
  %v3154 = vadd.f32 0.0, %v3153
  %3155 = vmatmul.f32.gmra.mxu0 %v287
  %v3156 = vpop.f32.mrf.mxu0
  %v3157 = vadd.f32 0.0, %v3156
  %3158 = vmatmul.f32.gmra.mxu0 %v290
  %v3159 = vpop.f32.mrf.mxu0
  %v3160 = vadd.f32 0.0, %v3159
  %3161 = vmatmul.f32.gmra.mxu0 %v293
  %v3162 = vpop.f32.mrf.mxu0
  %v3163 = vadd.f32 0.0, %v3162
  %3164 = vmatmul.f32.gmra.mxu0 %v296
  %v3165 = vpop.f32.mrf.mxu0
  %v3166 = vadd.f32 0.0, %v3165
  %3167 = vmatmul.f32.gmra.mxu0 %v299
  %v3168 = vpop.f32.mrf.mxu0
  %v3169 = vadd.f32 0.0, %v3168
  %3170 = vmatmul.f32.gmra.mxu0 %v302
  %v3171 = vpop.f32.mrf.mxu0
  %v3172 = vadd.f32 0.0, %v3171
  %3173 = vdwg.mxu0
  %v3174 = vmul.f32 %v3127, %v231
  %v3175 = vmul.f32 %v3130, %v232
  %v3176 = vmul.f32 %v3133, %v233
  %v3177 = vmul.f32 %v3136, %v234
  %v3178 = vmul.f32 %v3139, %v235
  %v3179 = vmul.f32 %v3142, %v236
  %v3180 = vmul.f32 %v3145, %v237
  %v3181 = vmul.f32 %v3148, %v238
  %v3182 = vmul.f32 %v3151, %v239
  %v3183 = vmul.f32 %v3154, %v240
  %v3184 = vmul.f32 %v3157, %v241
  %v3185 = vmul.f32 %v3160, %v242
  %v3186 = vmul.f32 %v3163, %v243
  %v3187 = vmul.f32 %v3166, %v244
  %v3188 = vmul.f32 %v3169, %v245
  %v3189 = vmul.f32 %v3172, %v246
  %3190 = vmatpush.msra.mxu0 0.0
  %3191 = vmatpush.msra.mxu0 0.0
  %3192 = vmatpush.msra.mxu0 0.0
  %3193 = vmatpush.msra.mxu0 0.0
  %3194 = vmatpush.msra.mxu0 0.0
  %3195 = vmatpush.msra.mxu0 0.0
  %3196 = vmatpush.msra.mxu0 0.0
  %3197 = vmatpush.msra.mxu0 0.0
  %3198 = vmatpush.msra.mxu0 0.0
  %3199 = vmatpush.msra.mxu0 0.0
  %3200 = vmatpush.msra.mxu0 0.0
  %3201 = vmatpush.msra.mxu0 0.0
  %3202 = vmatpush.msra.mxu0 0.0
  %3203 = vmatpush.msra.mxu0 0.0
  %3204 = vmatpush.msra.mxu0 %v3099
  %3205 = vmatpush.msra.mxu0 %v3096
  %3206 = vmatmul.f32.gmra.mxu0 %v257
  %v3207 = vpop.f32.mrf.mxu0
  %v3208 = vadd.f32 0.0, %v3207
  %3209 = vmatmul.f32.gmra.mxu0 %v260
  %v3210 = vpop.f32.mrf.mxu0
  %v3211 = vadd.f32 0.0, %v3210
  %3212 = vmatmul.f32.gmra.mxu0 %v263
  %v3213 = vpop.f32.mrf.mxu0
  %v3214 = vadd.f32 0.0, %v3213
  %3215 = vmatmul.f32.gmra.mxu0 %v266
  %v3216 = vpop.f32.mrf.mxu0
  %v3217 = vadd.f32 0.0, %v3216
  %3218 = vmatmul.f32.gmra.mxu0 %v269
  %v3219 = vpop.f32.mrf.mxu0
  %v3220 = vadd.f32 0.0, %v3219
  %3221 = vmatmul.f32.gmra.mxu0 %v272
  %v3222 = vpop.f32.mrf.mxu0
  %v3223 = vadd.f32 0.0, %v3222
  %3224 = vmatmul.f32.gmra.mxu0 %v275
  %v3225 = vpop.f32.mrf.mxu0
  %v3226 = vadd.f32 0.0, %v3225
  %3227 = vmatmul.f32.gmra.mxu0 %v278
  %v3228 = vpop.f32.mrf.mxu0
  %v3229 = vadd.f32 0.0, %v3228
  %3230 = vmatmul.f32.gmra.mxu0 %v281
  %v3231 = vpop.f32.mrf.mxu0
  %v3232 = vadd.f32 0.0, %v3231
  %3233 = vmatmul.f32.gmra.mxu0 %v284
  %v3234 = vpop.f32.mrf.mxu0
  %v3235 = vadd.f32 0.0, %v3234
  %3236 = vmatmul.f32.gmra.mxu0 %v287
  %v3237 = vpop.f32.mrf.mxu0
  %v3238 = vadd.f32 0.0, %v3237
  %3239 = vmatmul.f32.gmra.mxu0 %v290
  %v3240 = vpop.f32.mrf.mxu0
  %v3241 = vadd.f32 0.0, %v3240
  %3242 = vmatmul.f32.gmra.mxu0 %v293
  %v3243 = vpop.f32.mrf.mxu0
  %v3244 = vadd.f32 0.0, %v3243
  %3245 = vmatmul.f32.gmra.mxu0 %v296
  %v3246 = vpop.f32.mrf.mxu0
  %v3247 = vadd.f32 0.0, %v3246
  %3248 = vmatmul.f32.gmra.mxu0 %v299
  %v3249 = vpop.f32.mrf.mxu0
  %v3250 = vadd.f32 0.0, %v3249
  %3251 = vmatmul.f32.gmra.mxu0 %v302
  %v3252 = vpop.f32.mrf.mxu0
  %v3253 = vadd.f32 0.0, %v3252
  %3254 = vdwg.mxu0
  %v3255 = vmul.f32 %v3208, %v231
  %v3256 = vmul.f32 %v3211, %v232
  %v3257 = vmul.f32 %v3214, %v233
  %v3258 = vmul.f32 %v3217, %v234
  %v3259 = vmul.f32 %v3220, %v235
  %v3260 = vmul.f32 %v3223, %v236
  %v3261 = vmul.f32 %v3226, %v237
  %v3262 = vmul.f32 %v3229, %v238
  %v3263 = vmul.f32 %v3232, %v239
  %v3264 = vmul.f32 %v3235, %v240
  %v3265 = vmul.f32 %v3238, %v241
  %v3266 = vmul.f32 %v3241, %v242
  %v3267 = vmul.f32 %v3244, %v243
  %v3268 = vmul.f32 %v3247, %v244
  %v3269 = vmul.f32 %v3250, %v245
  %v3270 = vmul.f32 %v3253, %v246
  %v3271 = vsel %vm162, %v3073, 0
  %v3273 = vsel %vm162, %v3076, 0
  %v3276 = vsel %vm162, %v3174, 0
  %v3279 = vsel %vm162, %v3175, 0
  %v3282 = vsel %vm162, %v3176, 0
  %v3285 = vsel %vm162, %v3177, 0
  %v3288 = vsel %vm162, %v3178, 0
  %v3291 = vsel %vm162, %v3179, 0
  %v3294 = vsel %vm162, %v3180, 0
  %v3297 = vsel %vm162, %v3181, 0
  %v3300 = vsel %vm162, %v3182, 0
  %v3303 = vsel %vm162, %v3183, 0
  %v3306 = vsel %vm162, %v3184, 0
  %v3309 = vsel %vm162, %v3185, 0
  %v3312 = vsel %vm162, %v3186, 0
  %v3315 = vsel %vm162, %v3187, 0
  %v3318 = vsel %vm162, %v3188, 0
  %v3321 = vsel %vm162, %v3189, 0
  %3323 = vmatpush.xpose.msra.mxu0 %v3321
  %3324 = vmatpush.xpose.msra.mxu0 %v3318
  %3325 = vmatpush.xpose.msra.mxu0 %v3315
  %3326 = vmatpush.xpose.msra.mxu0 %v3312
  %3327 = vmatpush.xpose.msra.mxu0 %v3309
  %3328 = vmatpush.xpose.msra.mxu0 %v3306
  %3329 = vmatpush.xpose.msra.mxu0 %v3303
  %3330 = vmatpush.xpose.msra.mxu0 %v3300
  %3331 = vmatpush.xpose.msra.mxu0 %v3297
  %3332 = vmatpush.xpose.msra.mxu0 %v3294
  %3333 = vmatpush.xpose.msra.mxu0 %v3291
  %3334 = vmatpush.xpose.msra.mxu0 %v3288
  %3335 = vmatpush.xpose.msra.mxu0 %v3285
  %3336 = vmatpush.xpose.msra.mxu0 %v3282
  %3337 = vmatpush.xpose.msra.mxu0 %v3279
  %3338 = vmatpush.xpose.msra.mxu0 %v3276
  %3339 = vmatmul.f32.gmra.mxu0 %v3271
  %v3340 = vpop.f32.mrf.mxu0
  %v3341 = vadd.f32 0.0, %v3340
  %3342 = vmatmul.f32.gmra.mxu0 %v3273
  %v3343 = vpop.f32.mrf.mxu0
  %v3344 = vadd.f32 0.0, %v3343
  %3345 = vdwg.mxu0
  %v3346 = vmul.f32 %v3341, 0.35355338
  %v3347 = vmul.f32 %v3344, 0.35355338
  %v3348 = vadd.f32 %v3346, %v2394
  %v3349 = vadd.f32 %v3347, %v2395
  %3350 = vmax.xlane.f32.xlu0 %v3348
  %v3351 = vpop.xlane.xlu0 %3350
  %3352 = vmax.xlane.f32.xlu0 %v3349
  %v3353 = vpop.xlane.xlu0 %3352
  %v3354 = vsub.f32 %v3348, %v3351
  %v3355 = vsub.f32 %v3349, %v3353
  %v3356 = vmul.f32 %v3354, 1.442695
  %v3357 = vpow.pop %v3356
  %v3358 = vmul.f32 %v3355, 1.442695
  %v3359 = vpow.pop %v3358
  %3360 = vmatpush.msra.mxu0 %v3270
  %3361 = vmatpush.msra.mxu0 %v3269
  %3362 = vmatpush.msra.mxu0 %v3268
  %3363 = vmatpush.msra.mxu0 %v3267
  %3364 = vmatpush.msra.mxu0 %v3266
  %3365 = vmatpush.msra.mxu0 %v3265
  %3366 = vmatpush.msra.mxu0 %v3264
  %3367 = vmatpush.msra.mxu0 %v3263
  %3368 = vmatpush.msra.mxu0 %v3262
  %3369 = vmatpush.msra.mxu0 %v3261
  %3370 = vmatpush.msra.mxu0 %v3260
  %3371 = vmatpush.msra.mxu0 %v3259
  %3372 = vmatpush.msra.mxu0 %v3258
  %3373 = vmatpush.msra.mxu0 %v3257
  %3374 = vmatpush.msra.mxu0 %v3256
  %3375 = vmatpush.msra.mxu0 %v3255
  %3376 = vmatmul.f32.gmra.mxu0 %v3357
  %v3377 = vpop.f32.mrf.mxu0
  %v3378 = vadd.f32 0.0, %v3377
  %3379 = vmatmul.f32.gmra.mxu0 %v3359
  %v3380 = vpop.f32.mrf.mxu0
  %v3381 = vadd.f32 0.0, %v3380
  %3382 = vdwg.mxu0
  %3383 = vmatpush.msra.mxu0 %v246
  %3384 = vmatpush.msra.mxu0 %v245
  %3385 = vmatpush.msra.mxu0 %v244
  %3386 = vmatpush.msra.mxu0 %v243
  %3387 = vmatpush.msra.mxu0 %v242
  %3388 = vmatpush.msra.mxu0 %v241
  %3389 = vmatpush.msra.mxu0 %v240
  %3390 = vmatpush.msra.mxu0 %v239
  %3391 = vmatpush.msra.mxu0 %v238
  %3392 = vmatpush.msra.mxu0 %v237
  %3393 = vmatpush.msra.mxu0 %v236
  %3394 = vmatpush.msra.mxu0 %v235
  %3395 = vmatpush.msra.mxu0 %v234
  %3396 = vmatpush.msra.mxu0 %v233
  %3397 = vmatpush.msra.mxu0 %v232
  %3398 = vmatpush.msra.mxu0 %v231
  %3399 = vmatmul.f32.gmra.mxu0 %v3357
  %v3400 = vpop.f32.mrf.mxu0
  %v3401 = vadd.f32 0.0, %v3400
  %3402 = vmatmul.f32.gmra.mxu0 %v3359
  %v3403 = vpop.f32.mrf.mxu0
  %v3404 = vadd.f32 0.0, %v3403
  %3405 = vdwg.mxu0
  %v3406 = vrcp.pop %v3401
  %v3407 = vrcp.pop %v3404
  %v3408 = vmul.f32 %v3378, %v3406
  %v3409 = vmul.f32 %v3381, %v3407
  %v3411 = vsel %vm162, %v3408, 0
  %v3414 = vsel %vm162, %v3409, 0
  %3416 = vmatpush.msra.mxu0 0.0
  %3417 = vmatpush.msra.mxu0 0.0
  %3418 = vmatpush.msra.mxu0 0.0
  %3419 = vmatpush.msra.mxu0 0.0
  %3420 = vmatpush.msra.mxu0 0.0
  %3421 = vmatpush.msra.mxu0 0.0
  %3422 = vmatpush.msra.mxu0 0.0
  %3423 = vmatpush.msra.mxu0 0.0
  %3424 = vmatpush.msra.mxu0 %v2542
  %3425 = vmatpush.msra.mxu0 %v2541
  %3426 = vmatpush.msra.mxu0 %v2540
  %3427 = vmatpush.msra.mxu0 %v2539
  %3428 = vmatpush.msra.mxu0 %v2538
  %3429 = vmatpush.msra.mxu0 %v2537
  %3430 = vmatpush.msra.mxu0 %v2536
  %3431 = vmatpush.msra.mxu0 %v2535
  %3432 = vmatmul.f32.gmra.mxu0 %v3411
  %v3433 = vpop.f32.mrf.mxu0
  %v3434 = vadd.f32 %v2545, %v3433
  %3435 = vmatmul.f32.gmra.mxu0 %v3414
  %v3436 = vpop.f32.mrf.mxu0
  %v3437 = vadd.f32 %v2545, %v3436
  %3438 = vdwg.mxu0
  %v3439 = vadd.f32 %v3047, %v3434
  %v3440 = vadd.f32 %v3048, %v3437
  %v3441 = vsel %vm162, %v3439, 0.0
  %3442 = vadd.xlane.f32.xlu0 %v3441
  %v3443 = vpop.xlane.xlu0 %3442
  %v3444 = vsel %vm162, %v3440, 0.0
  %3445 = vadd.xlane.f32.xlu0 %v3444
  %v3446 = vpop.xlane.xlu0 %3445
  %v3447 = vmul.f32 %v3443, %v664
  %v3448 = vmul.f32 %v3446, %v664
  %v3449 = vsub.f32 %v3439, %v3447
  %v3450 = vsub.f32 %v3440, %v3448
  %v3451 = vmul.f32 %v3449, %v3449
  %v3452 = vmul.f32 %v3450, %v3450
  %v3453 = vsel %vm162, %v3451, 0.0
  %3454 = vadd.xlane.f32.xlu0 %v3453
  %v3455 = vpop.xlane.xlu0 %3454
  %v3456 = vsel %vm162, %v3452, 0.0
  %3457 = vadd.xlane.f32.xlu0 %v3456
  %v3458 = vpop.xlane.xlu0 %3457
  %v3459 = vmul.f32 %v3455, %v664
  %v3460 = vmul.f32 %v3458, %v664
  %v3461 = vadd.f32 %v3459, 1e-05
  %v3462 = vadd.f32 %v3460, 1e-05
  %v3463 = vrsqrt.pop %v3461
  %v3464 = vmul.f32 %v3463, %v3461
  %v3465 = vmul.f32 %v3464, %v3463
  %v3466 = vmul.f32 0.5, %v3465
  %v3467 = vsub.f32 1.5, %v3466
  %v3468 = vmul.f32 %v3463, %v3467
  %vm3469 = vweird.f32 %v3461
  %vm3470 = vweird.f32 %v3463
  %vm3471 = vmor %vm3469, %vm3470
  %v3472 = vsel %vm3471, %v3463, %v3468
  %v3473 = vrsqrt.pop %v3462
  %v3474 = vmul.f32 %v3473, %v3462
  %v3475 = vmul.f32 %v3474, %v3473
  %v3476 = vmul.f32 0.5, %v3475
  %v3477 = vsub.f32 1.5, %v3476
  %v3478 = vmul.f32 %v3473, %v3477
  %vm3479 = vweird.f32 %v3462
  %vm3480 = vweird.f32 %v3473
  %vm3481 = vmor %vm3479, %vm3480
  %v3482 = vsel %vm3481, %v3473, %v3478
  %v3483 = vmul.f32 %v3449, %v3472
  %v3484 = vmul.f32 %v3450, %v3482
  %v3485 = vmul.f32 %v3483, %v2624
  %v3486 = vmul.f32 %v3484, %v2624
  %v3487 = vadd.f32 %v3485, %v2627
  %v3488 = vadd.f32 %v3486, %v2627
  %v3490 = vsel %vm162, %v3487, 0
  %v3493 = vsel %vm162, %v3488, 0
  %3495 = vmatpush.msra.mxu0 0.0
  %3496 = vmatpush.msra.mxu0 0.0
  %3497 = vmatpush.msra.mxu0 0.0
  %3498 = vmatpush.msra.mxu0 0.0
  %3499 = vmatpush.msra.mxu0 0.0
  %3500 = vmatpush.msra.mxu0 0.0
  %3501 = vmatpush.msra.mxu0 0.0
  %3502 = vmatpush.msra.mxu0 0.0
  %3503 = vmatpush.msra.mxu0 %v2637
  %3504 = vmatpush.msra.mxu0 %v2636
  %3505 = vmatpush.msra.mxu0 %v2635
  %3506 = vmatpush.msra.mxu0 %v2634
  %3507 = vmatpush.msra.mxu0 %v2633
  %3508 = vmatpush.msra.mxu0 %v2632
  %3509 = vmatpush.msra.mxu0 %v2631
  %3510 = vmatpush.msra.mxu0 %v2630
  %3511 = vmatmul.f32.gmra.mxu0 %v3490
  %v3512 = vpop.f32.mrf.mxu0
  %v3513 = vadd.f32 %v2640, %v3512
  %3514 = vmatmul.f32.gmra.mxu0 %v3493
  %v3515 = vpop.f32.mrf.mxu0
  %v3516 = vadd.f32 %v2640, %v3515
  %3517 = vdwg.mxu0
  %v3519 = vsel %vm162, %v3513, 0
  %v3522 = vsel %vm162, %v3516, 0
  %3524 = vmatpush.xpose.msra.mxu0 %v2725
  %3525 = vmatpush.xpose.msra.mxu0 %v2722
  %3526 = vmatpush.xpose.msra.mxu0 %v2719
  %3527 = vmatpush.xpose.msra.mxu0 %v2716
  %3528 = vmatpush.xpose.msra.mxu0 %v2713
  %3529 = vmatpush.xpose.msra.mxu0 %v2710
  %3530 = vmatpush.xpose.msra.mxu0 %v2707
  %3531 = vmatpush.xpose.msra.mxu0 %v2704
  %3532 = vmatpush.xpose.msra.mxu0 %v2701
  %3533 = vmatpush.xpose.msra.mxu0 %v2698
  %3534 = vmatpush.xpose.msra.mxu0 %v2695
  %3535 = vmatpush.xpose.msra.mxu0 %v2692
  %3536 = vmatpush.xpose.msra.mxu0 %v2689
  %3537 = vmatpush.xpose.msra.mxu0 %v2686
  %3538 = vmatpush.xpose.msra.mxu0 %v2683
  %3539 = vmatpush.xpose.msra.mxu0 %v2680
  %3540 = vmatmul.f32.gmra.mxu0 %v3519
  %v3541 = vpop.f32.mrf.mxu0
  %v3542 = vadd.f32 0.0, %v3541
  %3543 = vmatmul.f32.gmra.mxu0 %v3522
  %v3544 = vpop.f32.mrf.mxu0
  %v3545 = vadd.f32 0.0, %v3544
  %3546 = vdwg.mxu0
  %v3547 = vmul.f32 %v3542, 0.35355338
  %v3548 = vmul.f32 %v3545, 0.35355338
  %v3549 = vadd.f32 %v3547, %v2671
  %v3550 = vadd.f32 %v3548, %v2672
  %3551 = vmax.xlane.f32.xlu0 %v3549
  %v3552 = vpop.xlane.xlu0 %3551
  %3553 = vmax.xlane.f32.xlu0 %v3550
  %v3554 = vpop.xlane.xlu0 %3553
  %v3555 = vsub.f32 %v3549, %v3552
  %v3556 = vsub.f32 %v3550, %v3554
  %v3557 = vmul.f32 %v3555, 1.442695
  %v3558 = vpow.pop %v3557
  %v3559 = vmul.f32 %v3556, 1.442695
  %v3560 = vpow.pop %v3559
  %3561 = vmatpush.msra.mxu0 %v2147
  %3562 = vmatpush.msra.mxu0 %v2146
  %3563 = vmatpush.msra.mxu0 %v2145
  %3564 = vmatpush.msra.mxu0 %v2144
  %3565 = vmatpush.msra.mxu0 %v2143
  %3566 = vmatpush.msra.mxu0 %v2142
  %3567 = vmatpush.msra.mxu0 %v2141
  %3568 = vmatpush.msra.mxu0 %v2140
  %3569 = vmatpush.msra.mxu0 %v2139
  %3570 = vmatpush.msra.mxu0 %v2138
  %3571 = vmatpush.msra.mxu0 %v2137
  %3572 = vmatpush.msra.mxu0 %v2136
  %3573 = vmatpush.msra.mxu0 %v2135
  %3574 = vmatpush.msra.mxu0 %v2134
  %3575 = vmatpush.msra.mxu0 %v2133
  %3576 = vmatpush.msra.mxu0 %v2132
  %3577 = vmatmul.f32.gmra.mxu0 %v3558
  %v3578 = vpop.f32.mrf.mxu0
  %v3579 = vadd.f32 0.0, %v3578
  %3580 = vmatmul.f32.gmra.mxu0 %v3560
  %v3581 = vpop.f32.mrf.mxu0
  %v3582 = vadd.f32 0.0, %v3581
  %3583 = vdwg.mxu0
  %3584 = vmatpush.msra.mxu0 %v246
  %3585 = vmatpush.msra.mxu0 %v245
  %3586 = vmatpush.msra.mxu0 %v244
  %3587 = vmatpush.msra.mxu0 %v243
  %3588 = vmatpush.msra.mxu0 %v242
  %3589 = vmatpush.msra.mxu0 %v241
  %3590 = vmatpush.msra.mxu0 %v240
  %3591 = vmatpush.msra.mxu0 %v239
  %3592 = vmatpush.msra.mxu0 %v238
  %3593 = vmatpush.msra.mxu0 %v237
  %3594 = vmatpush.msra.mxu0 %v236
  %3595 = vmatpush.msra.mxu0 %v235
  %3596 = vmatpush.msra.mxu0 %v234
  %3597 = vmatpush.msra.mxu0 %v233
  %3598 = vmatpush.msra.mxu0 %v232
  %3599 = vmatpush.msra.mxu0 %v231
  %3600 = vmatmul.f32.gmra.mxu0 %v3558
  %v3601 = vpop.f32.mrf.mxu0
  %v3602 = vadd.f32 0.0, %v3601
  %3603 = vmatmul.f32.gmra.mxu0 %v3560
  %v3604 = vpop.f32.mrf.mxu0
  %v3605 = vadd.f32 0.0, %v3604
  %3606 = vdwg.mxu0
  %v3607 = vrcp.pop %v3602
  %v3608 = vrcp.pop %v3605
  %v3609 = vmul.f32 %v3579, %v3607
  %v3610 = vmul.f32 %v3582, %v3608
  %v3612 = vsel %vm162, %v3609, 0
  %v3615 = vsel %vm162, %v3610, 0
  %3617 = vmatpush.msra.mxu0 0.0
  %3618 = vmatpush.msra.mxu0 0.0
  %3619 = vmatpush.msra.mxu0 0.0
  %3620 = vmatpush.msra.mxu0 0.0
  %3621 = vmatpush.msra.mxu0 0.0
  %3622 = vmatpush.msra.mxu0 0.0
  %3623 = vmatpush.msra.mxu0 0.0
  %3624 = vmatpush.msra.mxu0 0.0
  %3625 = vmatpush.msra.mxu0 %v2821
  %3626 = vmatpush.msra.mxu0 %v2820
  %3627 = vmatpush.msra.mxu0 %v2819
  %3628 = vmatpush.msra.mxu0 %v2818
  %3629 = vmatpush.msra.mxu0 %v2817
  %3630 = vmatpush.msra.mxu0 %v2816
  %3631 = vmatpush.msra.mxu0 %v2815
  %3632 = vmatpush.msra.mxu0 %v2814
  %3633 = vmatmul.f32.gmra.mxu0 %v3612
  %v3634 = vpop.f32.mrf.mxu0
  %v3635 = vadd.f32 %v2824, %v3634
  %3636 = vmatmul.f32.gmra.mxu0 %v3615
  %v3637 = vpop.f32.mrf.mxu0
  %v3638 = vadd.f32 %v2824, %v3637
  %3639 = vdwg.mxu0
  %v3640 = vadd.f32 %v3487, %v3635
  %v3641 = vadd.f32 %v3488, %v3638
  %v3642 = vsel %vm162, %v3640, 0.0
  %3643 = vadd.xlane.f32.xlu0 %v3642
  %v3644 = vpop.xlane.xlu0 %3643
  %v3645 = vsel %vm162, %v3641, 0.0
  %3646 = vadd.xlane.f32.xlu0 %v3645
  %v3647 = vpop.xlane.xlu0 %3646
  %v3648 = vmul.f32 %v3644, %v664
  %v3649 = vmul.f32 %v3647, %v664
  %v3650 = vsub.f32 %v3640, %v3648
  %v3651 = vsub.f32 %v3641, %v3649
  %v3652 = vmul.f32 %v3650, %v3650
  %v3653 = vmul.f32 %v3651, %v3651
  %v3654 = vsel %vm162, %v3652, 0.0
  %3655 = vadd.xlane.f32.xlu0 %v3654
  %v3656 = vpop.xlane.xlu0 %3655
  %v3657 = vsel %vm162, %v3653, 0.0
  %3658 = vadd.xlane.f32.xlu0 %v3657
  %v3659 = vpop.xlane.xlu0 %3658
  %v3660 = vmul.f32 %v3656, %v664
  %v3661 = vmul.f32 %v3659, %v664
  %v3662 = vadd.f32 %v3660, 1e-05
  %v3663 = vadd.f32 %v3661, 1e-05
  %v3664 = vrsqrt.pop %v3662
  %v3665 = vmul.f32 %v3664, %v3662
  %v3666 = vmul.f32 %v3665, %v3664
  %v3667 = vmul.f32 0.5, %v3666
  %v3668 = vsub.f32 1.5, %v3667
  %v3669 = vmul.f32 %v3664, %v3668
  %vm3670 = vweird.f32 %v3662
  %vm3671 = vweird.f32 %v3664
  %vm3672 = vmor %vm3670, %vm3671
  %v3673 = vsel %vm3672, %v3664, %v3669
  %v3674 = vrsqrt.pop %v3663
  %v3675 = vmul.f32 %v3674, %v3663
  %v3676 = vmul.f32 %v3675, %v3674
  %v3677 = vmul.f32 0.5, %v3676
  %v3678 = vsub.f32 1.5, %v3677
  %v3679 = vmul.f32 %v3674, %v3678
  %vm3680 = vweird.f32 %v3663
  %vm3681 = vweird.f32 %v3674
  %vm3682 = vmor %vm3680, %vm3681
  %v3683 = vsel %vm3682, %v3674, %v3679
  %v3684 = vmul.f32 %v3650, %v3673
  %v3685 = vmul.f32 %v3651, %v3683
  %v3686 = vmul.f32 %v3684, %v2903
  %v3687 = vmul.f32 %v3685, %v2903
  %v3688 = vadd.f32 %v3686, %v2906
  %v3689 = vadd.f32 %v3687, %v2906
  %v3691 = vsel %vm162, %v3688, 0
  %v3694 = vsel %vm162, %v3689, 0
  %3696 = vmatpush.msra.mxu0 0.0
  %3697 = vmatpush.msra.mxu0 0.0
  %3698 = vmatpush.msra.mxu0 0.0
  %3699 = vmatpush.msra.mxu0 0.0
  %3700 = vmatpush.msra.mxu0 0.0
  %3701 = vmatpush.msra.mxu0 0.0
  %3702 = vmatpush.msra.mxu0 0.0
  %3703 = vmatpush.msra.mxu0 0.0
  %3704 = vmatpush.msra.mxu0 %v2916
  %3705 = vmatpush.msra.mxu0 %v2915
  %3706 = vmatpush.msra.mxu0 %v2914
  %3707 = vmatpush.msra.mxu0 %v2913
  %3708 = vmatpush.msra.mxu0 %v2912
  %3709 = vmatpush.msra.mxu0 %v2911
  %3710 = vmatpush.msra.mxu0 %v2910
  %3711 = vmatpush.msra.mxu0 %v2909
  %3712 = vmatmul.f32.gmra.mxu0 %v3691
  %v3713 = vpop.f32.mrf.mxu0
  %v3714 = vadd.f32 %v2919, %v3713
  %3715 = vmatmul.f32.gmra.mxu0 %v3694
  %v3716 = vpop.f32.mrf.mxu0
  %v3717 = vadd.f32 %v2919, %v3716
  %3718 = vdwg.mxu0
  %v3719 = vmax.f32 %v3714, 0.0
  %v3720 = vmax.f32 %v3717, 0.0
  %3721 = vmatpush.msra.mxu0 %v2967
  %3722 = vmatpush.msra.mxu0 %v2966
  %3723 = vmatpush.msra.mxu0 %v2965
  %3724 = vmatpush.msra.mxu0 %v2964
  %3725 = vmatpush.msra.mxu0 %v2963
  %3726 = vmatpush.msra.mxu0 %v2962
  %3727 = vmatpush.msra.mxu0 %v2961
  %3728 = vmatpush.msra.mxu0 %v2960
  %3729 = vmatpush.msra.mxu0 %v2959
  %3730 = vmatpush.msra.mxu0 %v2958
  %3731 = vmatpush.msra.mxu0 %v2957
  %3732 = vmatpush.msra.mxu0 %v2956
  %3733 = vmatpush.msra.mxu0 %v2955
  %3734 = vmatpush.msra.mxu0 %v2954
  %3735 = vmatpush.msra.mxu0 %v2953
  %3736 = vmatpush.msra.mxu0 %v2952
  %3737 = vmatmul.f32.gmra.mxu0 %v3719
  %v3738 = vpop.f32.mrf.mxu0
  %v3739 = vadd.f32 %v2970, %v3738
  %3740 = vmatmul.f32.gmra.mxu0 %v3720
  %v3741 = vpop.f32.mrf.mxu0
  %v3742 = vadd.f32 %v2970, %v3741
  %3743 = vdwg.mxu0
  %v3744 = vadd.f32 %v3688, %v3739
  %v3745 = vadd.f32 %v3689, %v3742
  %v3746 = vsel %vm162, %v3744, 0.0
  %3747 = vadd.xlane.f32.xlu0 %v3746
  %v3748 = vpop.xlane.xlu0 %3747
  %v3749 = vsel %vm162, %v3745, 0.0
  %3750 = vadd.xlane.f32.xlu0 %v3749
  %v3751 = vpop.xlane.xlu0 %3750
  %v3752 = vmul.f32 %v3748, %v664
  %v3753 = vmul.f32 %v3751, %v664
  %v3754 = vsub.f32 %v3744, %v3752
  %v3755 = vsub.f32 %v3745, %v3753
  %v3756 = vmul.f32 %v3754, %v3754
  %v3757 = vmul.f32 %v3755, %v3755
  %v3758 = vsel %vm162, %v3756, 0.0
  %3759 = vadd.xlane.f32.xlu0 %v3758
  %v3760 = vpop.xlane.xlu0 %3759
  %v3761 = vsel %vm162, %v3757, 0.0
  %3762 = vadd.xlane.f32.xlu0 %v3761
  %v3763 = vpop.xlane.xlu0 %3762
  %v3764 = vmul.f32 %v3760, %v664
  %v3765 = vmul.f32 %v3763, %v664
  %v3766 = vadd.f32 %v3764, 1e-05
  %v3767 = vadd.f32 %v3765, 1e-05
  %v3768 = vrsqrt.pop %v3766
  %v3769 = vmul.f32 %v3768, %v3766
  %v3770 = vmul.f32 %v3769, %v3768
  %v3771 = vmul.f32 0.5, %v3770
  %v3772 = vsub.f32 1.5, %v3771
  %v3773 = vmul.f32 %v3768, %v3772
  %vm3774 = vweird.f32 %v3766
  %vm3775 = vweird.f32 %v3768
  %vm3776 = vmor %vm3774, %vm3775
  %v3777 = vsel %vm3776, %v3768, %v3773
  %v3778 = vrsqrt.pop %v3767
  %v3779 = vmul.f32 %v3778, %v3767
  %v3780 = vmul.f32 %v3779, %v3778
  %v3781 = vmul.f32 0.5, %v3780
  %v3782 = vsub.f32 1.5, %v3781
  %v3783 = vmul.f32 %v3778, %v3782
  %vm3784 = vweird.f32 %v3767
  %vm3785 = vweird.f32 %v3778
  %vm3786 = vmor %vm3784, %vm3785
  %v3787 = vsel %vm3786, %v3778, %v3783
  %v3788 = vmul.f32 %v3754, %v3777
  %v3789 = vmul.f32 %v3755, %v3787
  %v3790 = vmul.f32 %v3788, %v3043
  %v3791 = vmul.f32 %v3789, %v3043
  %v3792 = vadd.f32 %v3790, %v3046
  %v3793 = vadd.f32 %v3791, %v3046
  %v3795 = vsel %vm162, %v3792, 0
  %v3798 = vsel %vm162, %v3793, 0
  %3800 = vmatpush.msra.mxu0 0.0
  %3801 = vmatpush.msra.mxu0 0.0
  %3802 = vmatpush.msra.mxu0 0.0
  %3803 = vmatpush.msra.mxu0 0.0
  %3804 = vmatpush.msra.mxu0 0.0
  %3805 = vmatpush.msra.mxu0 0.0
  %3806 = vmatpush.msra.mxu0 0.0
  %3807 = vmatpush.msra.mxu0 0.0
  %3808 = vmatpush.msra.mxu0 %v2164
  %3809 = vmatpush.msra.mxu0 %v2162
  %3810 = vmatpush.msra.mxu0 %v2160
  %3811 = vmatpush.msra.mxu0 %v2158
  %3812 = vmatpush.msra.mxu0 %v2156
  %3813 = vmatpush.msra.mxu0 %v2154
  %3814 = vmatpush.msra.mxu0 %v2152
  %3815 = vmatpush.msra.mxu0 %v2150
  %3816 = vmatmul.f32.gmra.mxu0 %v3795
  %v3817 = vpop.f32.mrf.mxu0
  %v3818 = vadd.f32 %v2168, %v3817
  %3819 = vmatmul.f32.gmra.mxu0 %v3798
  %v3820 = vpop.f32.mrf.mxu0
  %v3821 = vadd.f32 %v2168, %v3820
  %3822 = vdwg.mxu0
  %3823 = vmatpush.msra.mxu0 0.0
  %3824 = vmatpush.msra.mxu0 0.0
  %3825 = vmatpush.msra.mxu0 0.0
  %3826 = vmatpush.msra.mxu0 0.0
  %3827 = vmatpush.msra.mxu0 0.0
  %3828 = vmatpush.msra.mxu0 0.0
  %3829 = vmatpush.msra.mxu0 0.0
  %3830 = vmatpush.msra.mxu0 0.0
  %3831 = vmatpush.msra.mxu0 %v2165
  %3832 = vmatpush.msra.mxu0 %v2163
  %3833 = vmatpush.msra.mxu0 %v2161
  %3834 = vmatpush.msra.mxu0 %v2159
  %3835 = vmatpush.msra.mxu0 %v2157
  %3836 = vmatpush.msra.mxu0 %v2155
  %3837 = vmatpush.msra.mxu0 %v2153
  %3838 = vmatpush.msra.mxu0 %v2151
  %3839 = vmatmul.f32.gmra.mxu0 %v3795
  %v3840 = vpop.f32.mrf.mxu0
  %v3841 = vadd.f32 %v2169, %v3840
  %3842 = vmatmul.f32.gmra.mxu0 %v3798
  %v3843 = vpop.f32.mrf.mxu0
  %v3844 = vadd.f32 %v2169, %v3843
  %3845 = vdwg.mxu0
  %3848 = vrot.lane.b32.xlu0 %v3818, 64
  %v3849 = vpop.permute.xlu0 %3848
  %3850 = vrot.lane.b32.xlu0 %v3821, 64
  %v3851 = vpop.permute.xlu0 %3850
  %3854 = vmatpush.msra.mxu0 0.0
  %3855 = vmatpush.msra.mxu0 0.0
  %3856 = vmatpush.msra.mxu0 0.0
  %3857 = vmatpush.msra.mxu0 0.0
  %3858 = vmatpush.msra.mxu0 0.0
  %3859 = vmatpush.msra.mxu0 0.0
  %3860 = vmatpush.msra.mxu0 0.0
  %3861 = vmatpush.msra.mxu0 0.0
  %3862 = vmatpush.msra.mxu0 0.0
  %3863 = vmatpush.msra.mxu0 0.0
  %3864 = vmatpush.msra.mxu0 0.0
  %3865 = vmatpush.msra.mxu0 0.0
  %3866 = vmatpush.msra.mxu0 0.0
  %3867 = vmatpush.msra.mxu0 0.0
  %3868 = vmatpush.msra.mxu0 %v3851
  %3869 = vmatpush.msra.mxu0 %v3849
  %3870 = vmatmul.f32.gmra.mxu0 %v257
  %v3871 = vpop.f32.mrf.mxu0
  %v3872 = vadd.f32 0.0, %v3871
  %3873 = vmatmul.f32.gmra.mxu0 %v260
  %v3874 = vpop.f32.mrf.mxu0
  %v3875 = vadd.f32 0.0, %v3874
  %3876 = vmatmul.f32.gmra.mxu0 %v263
  %v3877 = vpop.f32.mrf.mxu0
  %v3878 = vadd.f32 0.0, %v3877
  %3879 = vmatmul.f32.gmra.mxu0 %v266
  %v3880 = vpop.f32.mrf.mxu0
  %v3881 = vadd.f32 0.0, %v3880
  %3882 = vmatmul.f32.gmra.mxu0 %v269
  %v3883 = vpop.f32.mrf.mxu0
  %v3884 = vadd.f32 0.0, %v3883
  %3885 = vmatmul.f32.gmra.mxu0 %v272
  %v3886 = vpop.f32.mrf.mxu0
  %v3887 = vadd.f32 0.0, %v3886
  %3888 = vmatmul.f32.gmra.mxu0 %v275
  %v3889 = vpop.f32.mrf.mxu0
  %v3890 = vadd.f32 0.0, %v3889
  %3891 = vmatmul.f32.gmra.mxu0 %v278
  %v3892 = vpop.f32.mrf.mxu0
  %v3893 = vadd.f32 0.0, %v3892
  %3894 = vmatmul.f32.gmra.mxu0 %v281
  %v3895 = vpop.f32.mrf.mxu0
  %v3896 = vadd.f32 0.0, %v3895
  %3897 = vmatmul.f32.gmra.mxu0 %v284
  %v3898 = vpop.f32.mrf.mxu0
  %v3899 = vadd.f32 0.0, %v3898
  %3900 = vmatmul.f32.gmra.mxu0 %v287
  %v3901 = vpop.f32.mrf.mxu0
  %v3902 = vadd.f32 0.0, %v3901
  %3903 = vmatmul.f32.gmra.mxu0 %v290
  %v3904 = vpop.f32.mrf.mxu0
  %v3905 = vadd.f32 0.0, %v3904
  %3906 = vmatmul.f32.gmra.mxu0 %v293
  %v3907 = vpop.f32.mrf.mxu0
  %v3908 = vadd.f32 0.0, %v3907
  %3909 = vmatmul.f32.gmra.mxu0 %v296
  %v3910 = vpop.f32.mrf.mxu0
  %v3911 = vadd.f32 0.0, %v3910
  %3912 = vmatmul.f32.gmra.mxu0 %v299
  %v3913 = vpop.f32.mrf.mxu0
  %v3914 = vadd.f32 0.0, %v3913
  %3915 = vmatmul.f32.gmra.mxu0 %v302
  %v3916 = vpop.f32.mrf.mxu0
  %v3917 = vadd.f32 0.0, %v3916
  %3918 = vdwg.mxu0
  %v3919 = vmul.f32 %v3872, %v231
  %v3920 = vmul.f32 %v3875, %v232
  %v3921 = vmul.f32 %v3878, %v233
  %v3922 = vmul.f32 %v3881, %v234
  %v3923 = vmul.f32 %v3884, %v235
  %v3924 = vmul.f32 %v3887, %v236
  %v3925 = vmul.f32 %v3890, %v237
  %v3926 = vmul.f32 %v3893, %v238
  %v3927 = vmul.f32 %v3896, %v239
  %v3928 = vmul.f32 %v3899, %v240
  %v3929 = vmul.f32 %v3902, %v241
  %v3930 = vmul.f32 %v3905, %v242
  %v3931 = vmul.f32 %v3908, %v243
  %v3932 = vmul.f32 %v3911, %v244
  %v3933 = vmul.f32 %v3914, %v245
  %v3934 = vmul.f32 %v3917, %v246
  %3935 = vmatpush.msra.mxu0 0.0
  %3936 = vmatpush.msra.mxu0 0.0
  %3937 = vmatpush.msra.mxu0 0.0
  %3938 = vmatpush.msra.mxu0 0.0
  %3939 = vmatpush.msra.mxu0 0.0
  %3940 = vmatpush.msra.mxu0 0.0
  %3941 = vmatpush.msra.mxu0 0.0
  %3942 = vmatpush.msra.mxu0 0.0
  %3943 = vmatpush.msra.mxu0 0.0
  %3944 = vmatpush.msra.mxu0 0.0
  %3945 = vmatpush.msra.mxu0 0.0
  %3946 = vmatpush.msra.mxu0 0.0
  %3947 = vmatpush.msra.mxu0 0.0
  %3948 = vmatpush.msra.mxu0 0.0
  %3949 = vmatpush.msra.mxu0 %v3844
  %3950 = vmatpush.msra.mxu0 %v3841
  %3951 = vmatmul.f32.gmra.mxu0 %v257
  %v3952 = vpop.f32.mrf.mxu0
  %v3953 = vadd.f32 0.0, %v3952
  %3954 = vmatmul.f32.gmra.mxu0 %v260
  %v3955 = vpop.f32.mrf.mxu0
  %v3956 = vadd.f32 0.0, %v3955
  %3957 = vmatmul.f32.gmra.mxu0 %v263
  %v3958 = vpop.f32.mrf.mxu0
  %v3959 = vadd.f32 0.0, %v3958
  %3960 = vmatmul.f32.gmra.mxu0 %v266
  %v3961 = vpop.f32.mrf.mxu0
  %v3962 = vadd.f32 0.0, %v3961
  %3963 = vmatmul.f32.gmra.mxu0 %v269
  %v3964 = vpop.f32.mrf.mxu0
  %v3965 = vadd.f32 0.0, %v3964
  %3966 = vmatmul.f32.gmra.mxu0 %v272
  %v3967 = vpop.f32.mrf.mxu0
  %v3968 = vadd.f32 0.0, %v3967
  %3969 = vmatmul.f32.gmra.mxu0 %v275
  %v3970 = vpop.f32.mrf.mxu0
  %v3971 = vadd.f32 0.0, %v3970
  %3972 = vmatmul.f32.gmra.mxu0 %v278
  %v3973 = vpop.f32.mrf.mxu0
  %v3974 = vadd.f32 0.0, %v3973
  %3975 = vmatmul.f32.gmra.mxu0 %v281
  %v3976 = vpop.f32.mrf.mxu0
  %v3977 = vadd.f32 0.0, %v3976
  %3978 = vmatmul.f32.gmra.mxu0 %v284
  %v3979 = vpop.f32.mrf.mxu0
  %v3980 = vadd.f32 0.0, %v3979
  %3981 = vmatmul.f32.gmra.mxu0 %v287
  %v3982 = vpop.f32.mrf.mxu0
  %v3983 = vadd.f32 0.0, %v3982
  %3984 = vmatmul.f32.gmra.mxu0 %v290
  %v3985 = vpop.f32.mrf.mxu0
  %v3986 = vadd.f32 0.0, %v3985
  %3987 = vmatmul.f32.gmra.mxu0 %v293
  %v3988 = vpop.f32.mrf.mxu0
  %v3989 = vadd.f32 0.0, %v3988
  %3990 = vmatmul.f32.gmra.mxu0 %v296
  %v3991 = vpop.f32.mrf.mxu0
  %v3992 = vadd.f32 0.0, %v3991
  %3993 = vmatmul.f32.gmra.mxu0 %v299
  %v3994 = vpop.f32.mrf.mxu0
  %v3995 = vadd.f32 0.0, %v3994
  %3996 = vmatmul.f32.gmra.mxu0 %v302
  %v3997 = vpop.f32.mrf.mxu0
  %v3998 = vadd.f32 0.0, %v3997
  %3999 = vdwg.mxu0
  %v4000 = vmul.f32 %v3953, %v231
  %v4001 = vmul.f32 %v3956, %v232
  %v4002 = vmul.f32 %v3959, %v233
  %v4003 = vmul.f32 %v3962, %v234
  %v4004 = vmul.f32 %v3965, %v235
  %v4005 = vmul.f32 %v3968, %v236
  %v4006 = vmul.f32 %v3971, %v237
  %v4007 = vmul.f32 %v3974, %v238
  %v4008 = vmul.f32 %v3977, %v239
  %v4009 = vmul.f32 %v3980, %v240
  %v4010 = vmul.f32 %v3983, %v241
  %v4011 = vmul.f32 %v3986, %v242
  %v4012 = vmul.f32 %v3989, %v243
  %v4013 = vmul.f32 %v3992, %v244
  %v4014 = vmul.f32 %v3995, %v245
  %v4015 = vmul.f32 %v3998, %v246
  %v4016 = vsel %vm162, %v3818, 0
  %v4018 = vsel %vm162, %v3821, 0
  %v4021 = vsel %vm162, %v3919, 0
  %v4024 = vsel %vm162, %v3920, 0
  %v4027 = vsel %vm162, %v3921, 0
  %v4030 = vsel %vm162, %v3922, 0
  %v4033 = vsel %vm162, %v3923, 0
  %v4036 = vsel %vm162, %v3924, 0
  %v4039 = vsel %vm162, %v3925, 0
  %v4042 = vsel %vm162, %v3926, 0
  %v4045 = vsel %vm162, %v3927, 0
  %v4048 = vsel %vm162, %v3928, 0
  %v4051 = vsel %vm162, %v3929, 0
  %v4054 = vsel %vm162, %v3930, 0
  %v4057 = vsel %vm162, %v3931, 0
  %v4060 = vsel %vm162, %v3932, 0
  %v4063 = vsel %vm162, %v3933, 0
  %v4066 = vsel %vm162, %v3934, 0
  %4068 = vmatpush.xpose.msra.mxu0 %v4066
  %4069 = vmatpush.xpose.msra.mxu0 %v4063
  %4070 = vmatpush.xpose.msra.mxu0 %v4060
  %4071 = vmatpush.xpose.msra.mxu0 %v4057
  %4072 = vmatpush.xpose.msra.mxu0 %v4054
  %4073 = vmatpush.xpose.msra.mxu0 %v4051
  %4074 = vmatpush.xpose.msra.mxu0 %v4048
  %4075 = vmatpush.xpose.msra.mxu0 %v4045
  %4076 = vmatpush.xpose.msra.mxu0 %v4042
  %4077 = vmatpush.xpose.msra.mxu0 %v4039
  %4078 = vmatpush.xpose.msra.mxu0 %v4036
  %4079 = vmatpush.xpose.msra.mxu0 %v4033
  %4080 = vmatpush.xpose.msra.mxu0 %v4030
  %4081 = vmatpush.xpose.msra.mxu0 %v4027
  %4082 = vmatpush.xpose.msra.mxu0 %v4024
  %4083 = vmatpush.xpose.msra.mxu0 %v4021
  %4084 = vmatmul.f32.gmra.mxu0 %v4016
  %v4085 = vpop.f32.mrf.mxu0
  %v4086 = vadd.f32 0.0, %v4085
  %4087 = vmatmul.f32.gmra.mxu0 %v4018
  %v4088 = vpop.f32.mrf.mxu0
  %v4089 = vadd.f32 0.0, %v4088
  %4090 = vdwg.mxu0
  %v4091 = vmul.f32 %v4086, 0.35355338
  %v4092 = vmul.f32 %v4089, 0.35355338
  %v4093 = vadd.f32 %v4091, %v2394
  %v4094 = vadd.f32 %v4092, %v2395
  %4095 = vmax.xlane.f32.xlu0 %v4093
  %v4096 = vpop.xlane.xlu0 %4095
  %4097 = vmax.xlane.f32.xlu0 %v4094
  %v4098 = vpop.xlane.xlu0 %4097
  %v4099 = vsub.f32 %v4093, %v4096
  %v4100 = vsub.f32 %v4094, %v4098
  %v4101 = vmul.f32 %v4099, 1.442695
  %v4102 = vpow.pop %v4101
  %v4103 = vmul.f32 %v4100, 1.442695
  %v4104 = vpow.pop %v4103
  %4105 = vmatpush.msra.mxu0 %v4015
  %4106 = vmatpush.msra.mxu0 %v4014
  %4107 = vmatpush.msra.mxu0 %v4013
  %4108 = vmatpush.msra.mxu0 %v4012
  %4109 = vmatpush.msra.mxu0 %v4011
  %4110 = vmatpush.msra.mxu0 %v4010
  %4111 = vmatpush.msra.mxu0 %v4009
  %4112 = vmatpush.msra.mxu0 %v4008
  %4113 = vmatpush.msra.mxu0 %v4007
  %4114 = vmatpush.msra.mxu0 %v4006
  %4115 = vmatpush.msra.mxu0 %v4005
  %4116 = vmatpush.msra.mxu0 %v4004
  %4117 = vmatpush.msra.mxu0 %v4003
  %4118 = vmatpush.msra.mxu0 %v4002
  %4119 = vmatpush.msra.mxu0 %v4001
  %4120 = vmatpush.msra.mxu0 %v4000
  %4121 = vmatmul.f32.gmra.mxu0 %v4102
  %v4122 = vpop.f32.mrf.mxu0
  %v4123 = vadd.f32 0.0, %v4122
  %4124 = vmatmul.f32.gmra.mxu0 %v4104
  %v4125 = vpop.f32.mrf.mxu0
  %v4126 = vadd.f32 0.0, %v4125
  %4127 = vdwg.mxu0
  %4128 = vmatpush.msra.mxu0 %v246
  %4129 = vmatpush.msra.mxu0 %v245
  %4130 = vmatpush.msra.mxu0 %v244
  %4131 = vmatpush.msra.mxu0 %v243
  %4132 = vmatpush.msra.mxu0 %v242
  %4133 = vmatpush.msra.mxu0 %v241
  %4134 = vmatpush.msra.mxu0 %v240
  %4135 = vmatpush.msra.mxu0 %v239
  %4136 = vmatpush.msra.mxu0 %v238
  %4137 = vmatpush.msra.mxu0 %v237
  %4138 = vmatpush.msra.mxu0 %v236
  %4139 = vmatpush.msra.mxu0 %v235
  %4140 = vmatpush.msra.mxu0 %v234
  %4141 = vmatpush.msra.mxu0 %v233
  %4142 = vmatpush.msra.mxu0 %v232
  %4143 = vmatpush.msra.mxu0 %v231
  %4144 = vmatmul.f32.gmra.mxu0 %v4102
  %v4145 = vpop.f32.mrf.mxu0
  %v4146 = vadd.f32 0.0, %v4145
  %4147 = vmatmul.f32.gmra.mxu0 %v4104
  %v4148 = vpop.f32.mrf.mxu0
  %v4149 = vadd.f32 0.0, %v4148
  %4150 = vdwg.mxu0
  %v4151 = vrcp.pop %v4146
  %v4152 = vrcp.pop %v4149
  %v4153 = vmul.f32 %v4123, %v4151
  %v4154 = vmul.f32 %v4126, %v4152
  %v4156 = vsel %vm162, %v4153, 0
  %v4159 = vsel %vm162, %v4154, 0
  %4161 = vmatpush.msra.mxu0 0.0
  %4162 = vmatpush.msra.mxu0 0.0
  %4163 = vmatpush.msra.mxu0 0.0
  %4164 = vmatpush.msra.mxu0 0.0
  %4165 = vmatpush.msra.mxu0 0.0
  %4166 = vmatpush.msra.mxu0 0.0
  %4167 = vmatpush.msra.mxu0 0.0
  %4168 = vmatpush.msra.mxu0 0.0
  %4169 = vmatpush.msra.mxu0 %v2542
  %4170 = vmatpush.msra.mxu0 %v2541
  %4171 = vmatpush.msra.mxu0 %v2540
  %4172 = vmatpush.msra.mxu0 %v2539
  %4173 = vmatpush.msra.mxu0 %v2538
  %4174 = vmatpush.msra.mxu0 %v2537
  %4175 = vmatpush.msra.mxu0 %v2536
  %4176 = vmatpush.msra.mxu0 %v2535
  %4177 = vmatmul.f32.gmra.mxu0 %v4156
  %v4178 = vpop.f32.mrf.mxu0
  %v4179 = vadd.f32 %v2545, %v4178
  %4180 = vmatmul.f32.gmra.mxu0 %v4159
  %v4181 = vpop.f32.mrf.mxu0
  %v4182 = vadd.f32 %v2545, %v4181
  %4183 = vdwg.mxu0
  %v4184 = vadd.f32 %v3792, %v4179
  %v4185 = vadd.f32 %v3793, %v4182
  %v4186 = vsel %vm162, %v4184, 0.0
  %4187 = vadd.xlane.f32.xlu0 %v4186
  %v4188 = vpop.xlane.xlu0 %4187
  %v4189 = vsel %vm162, %v4185, 0.0
  %4190 = vadd.xlane.f32.xlu0 %v4189
  %v4191 = vpop.xlane.xlu0 %4190
  %v4192 = vmul.f32 %v4188, %v664
  %v4193 = vmul.f32 %v4191, %v664
  %v4194 = vsub.f32 %v4184, %v4192
  %v4195 = vsub.f32 %v4185, %v4193
  %v4196 = vmul.f32 %v4194, %v4194
  %v4197 = vmul.f32 %v4195, %v4195
  %v4198 = vsel %vm162, %v4196, 0.0
  %4199 = vadd.xlane.f32.xlu0 %v4198
  %v4200 = vpop.xlane.xlu0 %4199
  %v4201 = vsel %vm162, %v4197, 0.0
  %4202 = vadd.xlane.f32.xlu0 %v4201
  %v4203 = vpop.xlane.xlu0 %4202
  %v4204 = vmul.f32 %v4200, %v664
  %v4205 = vmul.f32 %v4203, %v664
  %v4206 = vadd.f32 %v4204, 1e-05
  %v4207 = vadd.f32 %v4205, 1e-05
  %v4208 = vrsqrt.pop %v4206
  %v4209 = vmul.f32 %v4208, %v4206
  %v4210 = vmul.f32 %v4209, %v4208
  %v4211 = vmul.f32 0.5, %v4210
  %v4212 = vsub.f32 1.5, %v4211
  %v4213 = vmul.f32 %v4208, %v4212
  %vm4214 = vweird.f32 %v4206
  %vm4215 = vweird.f32 %v4208
  %vm4216 = vmor %vm4214, %vm4215
  %v4217 = vsel %vm4216, %v4208, %v4213
  %v4218 = vrsqrt.pop %v4207
  %v4219 = vmul.f32 %v4218, %v4207
  %v4220 = vmul.f32 %v4219, %v4218
  %v4221 = vmul.f32 0.5, %v4220
  %v4222 = vsub.f32 1.5, %v4221
  %v4223 = vmul.f32 %v4218, %v4222
  %vm4224 = vweird.f32 %v4207
  %vm4225 = vweird.f32 %v4218
  %vm4226 = vmor %vm4224, %vm4225
  %v4227 = vsel %vm4226, %v4218, %v4223
  %v4228 = vmul.f32 %v4194, %v4217
  %v4229 = vmul.f32 %v4195, %v4227
  %v4230 = vmul.f32 %v4228, %v2624
  %v4231 = vmul.f32 %v4229, %v2624
  %v4232 = vadd.f32 %v4230, %v2627
  %v4233 = vadd.f32 %v4231, %v2627
  %v4235 = vsel %vm162, %v4232, 0
  %v4238 = vsel %vm162, %v4233, 0
  %4240 = vmatpush.msra.mxu0 0.0
  %4241 = vmatpush.msra.mxu0 0.0
  %4242 = vmatpush.msra.mxu0 0.0
  %4243 = vmatpush.msra.mxu0 0.0
  %4244 = vmatpush.msra.mxu0 0.0
  %4245 = vmatpush.msra.mxu0 0.0
  %4246 = vmatpush.msra.mxu0 0.0
  %4247 = vmatpush.msra.mxu0 0.0
  %4248 = vmatpush.msra.mxu0 %v2637
  %4249 = vmatpush.msra.mxu0 %v2636
  %4250 = vmatpush.msra.mxu0 %v2635
  %4251 = vmatpush.msra.mxu0 %v2634
  %4252 = vmatpush.msra.mxu0 %v2633
  %4253 = vmatpush.msra.mxu0 %v2632
  %4254 = vmatpush.msra.mxu0 %v2631
  %4255 = vmatpush.msra.mxu0 %v2630
  %4256 = vmatmul.f32.gmra.mxu0 %v4235
  %v4257 = vpop.f32.mrf.mxu0
  %v4258 = vadd.f32 %v2640, %v4257
  %4259 = vmatmul.f32.gmra.mxu0 %v4238
  %v4260 = vpop.f32.mrf.mxu0
  %v4261 = vadd.f32 %v2640, %v4260
  %4262 = vdwg.mxu0
  %v4264 = vsel %vm162, %v4258, 0
  %v4267 = vsel %vm162, %v4261, 0
  %4269 = vmatpush.xpose.msra.mxu0 %v2725
  %4270 = vmatpush.xpose.msra.mxu0 %v2722
  %4271 = vmatpush.xpose.msra.mxu0 %v2719
  %4272 = vmatpush.xpose.msra.mxu0 %v2716
  %4273 = vmatpush.xpose.msra.mxu0 %v2713
  %4274 = vmatpush.xpose.msra.mxu0 %v2710
  %4275 = vmatpush.xpose.msra.mxu0 %v2707
  %4276 = vmatpush.xpose.msra.mxu0 %v2704
  %4277 = vmatpush.xpose.msra.mxu0 %v2701
  %4278 = vmatpush.xpose.msra.mxu0 %v2698
  %4279 = vmatpush.xpose.msra.mxu0 %v2695
  %4280 = vmatpush.xpose.msra.mxu0 %v2692
  %4281 = vmatpush.xpose.msra.mxu0 %v2689
  %4282 = vmatpush.xpose.msra.mxu0 %v2686
  %4283 = vmatpush.xpose.msra.mxu0 %v2683
  %4284 = vmatpush.xpose.msra.mxu0 %v2680
  %4285 = vmatmul.f32.gmra.mxu0 %v4264
  %v4286 = vpop.f32.mrf.mxu0
  %v4287 = vadd.f32 0.0, %v4286
  %4288 = vmatmul.f32.gmra.mxu0 %v4267
  %v4289 = vpop.f32.mrf.mxu0
  %v4290 = vadd.f32 0.0, %v4289
  %4291 = vdwg.mxu0
  %v4292 = vmul.f32 %v4287, 0.35355338
  %v4293 = vmul.f32 %v4290, 0.35355338
  %v4294 = vadd.f32 %v4292, %v2671
  %v4295 = vadd.f32 %v4293, %v2672
  %4296 = vmax.xlane.f32.xlu0 %v4294
  %v4297 = vpop.xlane.xlu0 %4296
  %4298 = vmax.xlane.f32.xlu0 %v4295
  %v4299 = vpop.xlane.xlu0 %4298
  %v4300 = vsub.f32 %v4294, %v4297
  %v4301 = vsub.f32 %v4295, %v4299
  %v4302 = vmul.f32 %v4300, 1.442695
  %v4303 = vpow.pop %v4302
  %v4304 = vmul.f32 %v4301, 1.442695
  %v4305 = vpow.pop %v4304
  %4306 = vmatpush.msra.mxu0 %v2147
  %4307 = vmatpush.msra.mxu0 %v2146
  %4308 = vmatpush.msra.mxu0 %v2145
  %4309 = vmatpush.msra.mxu0 %v2144
  %4310 = vmatpush.msra.mxu0 %v2143
  %4311 = vmatpush.msra.mxu0 %v2142
  %4312 = vmatpush.msra.mxu0 %v2141
  %4313 = vmatpush.msra.mxu0 %v2140
  %4314 = vmatpush.msra.mxu0 %v2139
  %4315 = vmatpush.msra.mxu0 %v2138
  %4316 = vmatpush.msra.mxu0 %v2137
  %4317 = vmatpush.msra.mxu0 %v2136
  %4318 = vmatpush.msra.mxu0 %v2135
  %4319 = vmatpush.msra.mxu0 %v2134
  %4320 = vmatpush.msra.mxu0 %v2133
  %4321 = vmatpush.msra.mxu0 %v2132
  %4322 = vmatmul.f32.gmra.mxu0 %v4303
  %v4323 = vpop.f32.mrf.mxu0
  %v4324 = vadd.f32 0.0, %v4323
  %4325 = vmatmul.f32.gmra.mxu0 %v4305
  %v4326 = vpop.f32.mrf.mxu0
  %v4327 = vadd.f32 0.0, %v4326
  %4328 = vdwg.mxu0
  %4329 = vmatpush.msra.mxu0 %v246
  %4330 = vmatpush.msra.mxu0 %v245
  %4331 = vmatpush.msra.mxu0 %v244
  %4332 = vmatpush.msra.mxu0 %v243
  %4333 = vmatpush.msra.mxu0 %v242
  %4334 = vmatpush.msra.mxu0 %v241
  %4335 = vmatpush.msra.mxu0 %v240
  %4336 = vmatpush.msra.mxu0 %v239
  %4337 = vmatpush.msra.mxu0 %v238
  %4338 = vmatpush.msra.mxu0 %v237
  %4339 = vmatpush.msra.mxu0 %v236
  %4340 = vmatpush.msra.mxu0 %v235
  %4341 = vmatpush.msra.mxu0 %v234
  %4342 = vmatpush.msra.mxu0 %v233
  %4343 = vmatpush.msra.mxu0 %v232
  %4344 = vmatpush.msra.mxu0 %v231
  %4345 = vmatmul.f32.gmra.mxu0 %v4303
  %v4346 = vpop.f32.mrf.mxu0
  %v4347 = vadd.f32 0.0, %v4346
  %4348 = vmatmul.f32.gmra.mxu0 %v4305
  %v4349 = vpop.f32.mrf.mxu0
  %v4350 = vadd.f32 0.0, %v4349
  %4351 = vdwg.mxu0
  %v4352 = vrcp.pop %v4347
  %v4353 = vrcp.pop %v4350
  %v4354 = vmul.f32 %v4324, %v4352
  %v4355 = vmul.f32 %v4327, %v4353
  %v4357 = vsel %vm162, %v4354, 0
  %v4360 = vsel %vm162, %v4355, 0
  %4362 = vmatpush.msra.mxu0 0.0
  %4363 = vmatpush.msra.mxu0 0.0
  %4364 = vmatpush.msra.mxu0 0.0
  %4365 = vmatpush.msra.mxu0 0.0
  %4366 = vmatpush.msra.mxu0 0.0
  %4367 = vmatpush.msra.mxu0 0.0
  %4368 = vmatpush.msra.mxu0 0.0
  %4369 = vmatpush.msra.mxu0 0.0
  %4370 = vmatpush.msra.mxu0 %v2821
  %4371 = vmatpush.msra.mxu0 %v2820
  %4372 = vmatpush.msra.mxu0 %v2819
  %4373 = vmatpush.msra.mxu0 %v2818
  %4374 = vmatpush.msra.mxu0 %v2817
  %4375 = vmatpush.msra.mxu0 %v2816
  %4376 = vmatpush.msra.mxu0 %v2815
  %4377 = vmatpush.msra.mxu0 %v2814
  %4378 = vmatmul.f32.gmra.mxu0 %v4357
  %v4379 = vpop.f32.mrf.mxu0
  %v4380 = vadd.f32 %v2824, %v4379
  %4381 = vmatmul.f32.gmra.mxu0 %v4360
  %v4382 = vpop.f32.mrf.mxu0
  %v4383 = vadd.f32 %v2824, %v4382
  %4384 = vdwg.mxu0
  %v4385 = vadd.f32 %v4232, %v4380
  %v4386 = vadd.f32 %v4233, %v4383
  %v4387 = vsel %vm162, %v4385, 0.0
  %4388 = vadd.xlane.f32.xlu0 %v4387
  %v4389 = vpop.xlane.xlu0 %4388
  %v4390 = vsel %vm162, %v4386, 0.0
  %4391 = vadd.xlane.f32.xlu0 %v4390
  %v4392 = vpop.xlane.xlu0 %4391
  %v4393 = vmul.f32 %v4389, %v664
  %v4394 = vmul.f32 %v4392, %v664
  %v4395 = vsub.f32 %v4385, %v4393
  %v4396 = vsub.f32 %v4386, %v4394
  %v4397 = vmul.f32 %v4395, %v4395
  %v4398 = vmul.f32 %v4396, %v4396
  %v4399 = vsel %vm162, %v4397, 0.0
  %4400 = vadd.xlane.f32.xlu0 %v4399
  %v4401 = vpop.xlane.xlu0 %4400
  %v4402 = vsel %vm162, %v4398, 0.0
  %4403 = vadd.xlane.f32.xlu0 %v4402
  %v4404 = vpop.xlane.xlu0 %4403
  %v4405 = vmul.f32 %v4401, %v664
  %v4406 = vmul.f32 %v4404, %v664
  %v4407 = vadd.f32 %v4405, 1e-05
  %v4408 = vadd.f32 %v4406, 1e-05
  %v4409 = vrsqrt.pop %v4407
  %v4410 = vmul.f32 %v4409, %v4407
  %v4411 = vmul.f32 %v4410, %v4409
  %v4412 = vmul.f32 0.5, %v4411
  %v4413 = vsub.f32 1.5, %v4412
  %v4414 = vmul.f32 %v4409, %v4413
  %vm4415 = vweird.f32 %v4407
  %vm4416 = vweird.f32 %v4409
  %vm4417 = vmor %vm4415, %vm4416
  %v4418 = vsel %vm4417, %v4409, %v4414
  %v4419 = vrsqrt.pop %v4408
  %v4420 = vmul.f32 %v4419, %v4408
  %v4421 = vmul.f32 %v4420, %v4419
  %v4422 = vmul.f32 0.5, %v4421
  %v4423 = vsub.f32 1.5, %v4422
  %v4424 = vmul.f32 %v4419, %v4423
  %vm4425 = vweird.f32 %v4408
  %vm4426 = vweird.f32 %v4419
  %vm4427 = vmor %vm4425, %vm4426
  %v4428 = vsel %vm4427, %v4419, %v4424
  %v4429 = vmul.f32 %v4395, %v4418
  %v4430 = vmul.f32 %v4396, %v4428
  %v4431 = vmul.f32 %v4429, %v2903
  %v4432 = vmul.f32 %v4430, %v2903
  %v4433 = vadd.f32 %v4431, %v2906
  %v4434 = vadd.f32 %v4432, %v2906
  %v4436 = vsel %vm162, %v4433, 0
  %v4439 = vsel %vm162, %v4434, 0
  %4441 = vmatpush.msra.mxu0 0.0
  %4442 = vmatpush.msra.mxu0 0.0
  %4443 = vmatpush.msra.mxu0 0.0
  %4444 = vmatpush.msra.mxu0 0.0
  %4445 = vmatpush.msra.mxu0 0.0
  %4446 = vmatpush.msra.mxu0 0.0
  %4447 = vmatpush.msra.mxu0 0.0
  %4448 = vmatpush.msra.mxu0 0.0
  %4449 = vmatpush.msra.mxu0 %v2916
  %4450 = vmatpush.msra.mxu0 %v2915
  %4451 = vmatpush.msra.mxu0 %v2914
  %4452 = vmatpush.msra.mxu0 %v2913
  %4453 = vmatpush.msra.mxu0 %v2912
  %4454 = vmatpush.msra.mxu0 %v2911
  %4455 = vmatpush.msra.mxu0 %v2910
  %4456 = vmatpush.msra.mxu0 %v2909
  %4457 = vmatmul.f32.gmra.mxu0 %v4436
  %v4458 = vpop.f32.mrf.mxu0
  %v4459 = vadd.f32 %v2919, %v4458
  %4460 = vmatmul.f32.gmra.mxu0 %v4439
  %v4461 = vpop.f32.mrf.mxu0
  %v4462 = vadd.f32 %v2919, %v4461
  %4463 = vdwg.mxu0
  %v4464 = vmax.f32 %v4459, 0.0
  %v4465 = vmax.f32 %v4462, 0.0
  %4466 = vmatpush.msra.mxu0 %v2967
  %4467 = vmatpush.msra.mxu0 %v2966
  %4468 = vmatpush.msra.mxu0 %v2965
  %4469 = vmatpush.msra.mxu0 %v2964
  %4470 = vmatpush.msra.mxu0 %v2963
  %4471 = vmatpush.msra.mxu0 %v2962
  %4472 = vmatpush.msra.mxu0 %v2961
  %4473 = vmatpush.msra.mxu0 %v2960
  %4474 = vmatpush.msra.mxu0 %v2959
  %4475 = vmatpush.msra.mxu0 %v2958
  %4476 = vmatpush.msra.mxu0 %v2957
  %4477 = vmatpush.msra.mxu0 %v2956
  %4478 = vmatpush.msra.mxu0 %v2955
  %4479 = vmatpush.msra.mxu0 %v2954
  %4480 = vmatpush.msra.mxu0 %v2953
  %4481 = vmatpush.msra.mxu0 %v2952
  %4482 = vmatmul.f32.gmra.mxu0 %v4464
  %v4483 = vpop.f32.mrf.mxu0
  %v4484 = vadd.f32 %v2970, %v4483
  %4485 = vmatmul.f32.gmra.mxu0 %v4465
  %v4486 = vpop.f32.mrf.mxu0
  %v4487 = vadd.f32 %v2970, %v4486
  %4488 = vdwg.mxu0
  %v4489 = vadd.f32 %v4433, %v4484
  %v4490 = vadd.f32 %v4434, %v4487
  %v4491 = vsel %vm162, %v4489, 0.0
  %4492 = vadd.xlane.f32.xlu0 %v4491
  %v4493 = vpop.xlane.xlu0 %4492
  %v4494 = vsel %vm162, %v4490, 0.0
  %4495 = vadd.xlane.f32.xlu0 %v4494
  %v4496 = vpop.xlane.xlu0 %4495
  %v4497 = vmul.f32 %v4493, %v664
  %v4498 = vmul.f32 %v4496, %v664
  %v4499 = vsub.f32 %v4489, %v4497
  %v4500 = vsub.f32 %v4490, %v4498
  %v4501 = vmul.f32 %v4499, %v4499
  %v4502 = vmul.f32 %v4500, %v4500
  %v4503 = vsel %vm162, %v4501, 0.0
  %4504 = vadd.xlane.f32.xlu0 %v4503
  %v4505 = vpop.xlane.xlu0 %4504
  %v4506 = vsel %vm162, %v4502, 0.0
  %4507 = vadd.xlane.f32.xlu0 %v4506
  %v4508 = vpop.xlane.xlu0 %4507
  %v4509 = vmul.f32 %v4505, %v664
  %v4510 = vmul.f32 %v4508, %v664
  %v4511 = vadd.f32 %v4509, 1e-05
  %v4512 = vadd.f32 %v4510, 1e-05
  %v4513 = vrsqrt.pop %v4511
  %v4514 = vmul.f32 %v4513, %v4511
  %v4515 = vmul.f32 %v4514, %v4513
  %v4516 = vmul.f32 0.5, %v4515
  %v4517 = vsub.f32 1.5, %v4516
  %v4518 = vmul.f32 %v4513, %v4517
  %vm4519 = vweird.f32 %v4511
  %vm4520 = vweird.f32 %v4513
  %vm4521 = vmor %vm4519, %vm4520
  %v4522 = vsel %vm4521, %v4513, %v4518
  %v4523 = vrsqrt.pop %v4512
  %v4524 = vmul.f32 %v4523, %v4512
  %v4525 = vmul.f32 %v4524, %v4523
  %v4526 = vmul.f32 0.5, %v4525
  %v4527 = vsub.f32 1.5, %v4526
  %v4528 = vmul.f32 %v4523, %v4527
  %vm4529 = vweird.f32 %v4512
  %vm4530 = vweird.f32 %v4523
  %vm4531 = vmor %vm4529, %vm4530
  %v4532 = vsel %vm4531, %v4523, %v4528
  %v4533 = vmul.f32 %v4499, %v4522
  %v4534 = vmul.f32 %v4500, %v4532
  %v4535 = vmul.f32 %v4533, %v3043
  %v4536 = vmul.f32 %v4534, %v3043
  %v4537 = vadd.f32 %v4535, %v3046
  %v4538 = vadd.f32 %v4536, %v3046
  %v4539 = vld [vmem:[%s63] sm:$0xff]
  %v4540 = vld [vmem:[%s63 + $0x8] sm:$0xff]
  %v4541 = vld [vmem:[%s63 + $0x10] sm:$0xff]
  %v4542 = vld [vmem:[%s63 + $0x18] sm:$0xff]
  %v4543 = vld [vmem:[%s63 + $0x20] sm:$0xff]
  %v4544 = vld [vmem:[%s63 + $0x28] sm:$0xff]
  %v4545 = vld [vmem:[%s63 + $0x30] sm:$0xff]
  %v4546 = vld [vmem:[%s63 + $0x38] sm:$0xff]
  %v4547 = vld [vmem:[%s65] sm:$0x1]
  %v4549 = vperm.slane %v4547, 0
  %v4552 = vsel %vm162, %v4537, 0
  %v4555 = vsel %vm162, %v4538, 0
  %4557 = vmatpush.msra.mxu0 0.0
  %4558 = vmatpush.msra.mxu0 0.0
  %4559 = vmatpush.msra.mxu0 0.0
  %4560 = vmatpush.msra.mxu0 0.0
  %4561 = vmatpush.msra.mxu0 0.0
  %4562 = vmatpush.msra.mxu0 0.0
  %4563 = vmatpush.msra.mxu0 0.0
  %4564 = vmatpush.msra.mxu0 0.0
  %4565 = vmatpush.msra.mxu0 %v4546
  %4566 = vmatpush.msra.mxu0 %v4545
  %4567 = vmatpush.msra.mxu0 %v4544
  %4568 = vmatpush.msra.mxu0 %v4543
  %4569 = vmatpush.msra.mxu0 %v4542
  %4570 = vmatpush.msra.mxu0 %v4541
  %4571 = vmatpush.msra.mxu0 %v4540
  %4572 = vmatpush.msra.mxu0 %v4539
  %4573 = vmatmul.f32.gmra.mxu0 %v4552
  %v4574 = vpop.f32.mrf.mxu0
  %v4575 = vadd.f32 %v4549, %v4574
  %4576 = vmatmul.f32.gmra.mxu0 %v4555
  %v4577 = vpop.f32.mrf.mxu0
  %v4578 = vadd.f32 %v4549, %v4577
  %4579 = vdwg.mxu0
  %4580 = vst [vmem:[%s67] sm:$0xff] %v4575
  %4581 = vst [vmem:[%s67 + $0x8] sm:$0xff] %v4578
  // Predicated region
  $region134: #{retranet_forward.1} parent=0 // pred_check
    _
  $region135: #{retranet_forward.1} parent=0 // pred_check_branch
    %4583 = sbr.rel (0) target = $region137
  $region136: #{retranet_forward.1} parent=0 // pred_region
    _
  $region137: #{retranet_forward.1} parent=0 // pred_fallthru
    _
  // Predicated region
  $region138: #{retranet_forward.1} parent=0 // pred_check
    _
  $region139: #{retranet_forward.1} parent=0 // pred_check_branch
    %4585 = sbr.rel (0) target = $region141
  $region140: #{retranet_forward.1} parent=0 // pred_region
    _
  $region141: #{retranet_forward.1} parent=0 // pred_fallthru
    _

</llo_original>
